<compile_context>
chip_gen: v7x
topology: tpu7x:2x2x1
jax: 0.10.0
libtpu: 0.0.40
codegen_flags: <defaults>
</compile_context>

<pallas_src>
import jax
import jax.numpy as jnp
from jax.experimental import pallas as pl
from jax.experimental.pallas import tpu as pltpu

_EPS = 1e-5
_VMEM_LIMIT = 48 * 1024 * 1024  # explicit headroom for v7x (64 MiB/TC physical)


# ----------------------------- Pallas kernels ------------------------------

def _make_conv_kernel(H, W, cins, cout, tile_h, apply_bn_relu_in):
    """Fused 3x3 'same' conv kernel (no bias) over concat(inputs).

    Grid = (N, H // tile_h).  At h == 0 (once per image) it builds, in a VMEM
    scratch, the zero-padded + column-im2col'd input
        cols[r, j, dx*Cin + c] = x_padded[r, j + dx, c],   r in [0, H+2)
    fusing the channel concat of multiple inputs and (optionally) a BN+ReLU
    prologue.  Per row tile it runs 3 MXU matmuls (one per dy) contracting 3*Cin,
    writes the conv output tile, and accumulates per-image BN stats (sum, sum^2).
    """
    n_in = len(cins)
    cin = sum(cins)

    def kernel(*refs):
        idx = 0
        x_refs = refs[idx:idx + n_in]
        idx += n_in
        if apply_bn_relu_in:
            sc_ref, sh_ref = refs[idx], refs[idx + 1]
            idx += 2
        w_ref = refs[idx]
        y_ref, ssum_ref, ssq_ref = refs[idx + 1], refs[idx + 2], refs[idx + 3]
        cols_ref = refs[idx + 4]

        h = pl.program_id(1)

        # ---- once per image: build padded, column-cat'd input in VMEM scratch ----
        @pl.when(h == 0)
        def _():
            parts = []
            for k in range(n_in):
                x = x_refs[k][0].astype(jnp.float32)            # (H, W, Ck)
                if apply_bn_relu_in:
                    sc = sc_ref[...].reshape(1, 1, -1)
                    sh = sh_ref[...].reshape(1, 1, -1)
                    x = jnp.maximum(x * sc + sh, 0.0)           # fused BN+ReLU prologue
                parts.append(x)
            # channel concat fused in VMEM (never materialized in HBM)
            x = parts[0] if n_in == 1 else jnp.concatenate(parts, axis=-1)  # (H,W,Cin)

            zcol = jnp.zeros((H, 1, cin), jnp.float32)
            left = jnp.concatenate([zcol, x[:, :W - 1, :]], axis=1)   # tap dx = 0
            right = jnp.concatenate([x[:, 1:, :], zcol], axis=1)      # tap dx = 2
            body = jnp.concatenate([left, x, right], axis=-1)         # (H, W, 3*Cin)
            zrow = jnp.zeros((1, W, 3 * cin), jnp.float32)
            cols_ref[...] = jnp.concatenate([zrow, body, zrow], axis=0)

            ssum_ref[...] = jnp.zeros_like(ssum_ref)
            ssq_ref[...] = jnp.zeros_like(ssq_ref)

        # ---- per row tile: 3 matmuls, each contracting 3*Cin ----
        row0 = pl.multiple_of(h * tile_h, tile_h)
        rows = cols_ref[pl.ds(row0, tile_h + 2)]                      # (tile_h+2, W, 3*Cin)
        acc = jnp.zeros((tile_h * W, cout), jnp.float32)
        for dy in range(3):
            acc = acc + jnp.dot(
                rows[dy:dy + tile_h].reshape(tile_h * W, 3 * cin),
                w_ref[dy],
                preferred_element_type=jnp.float32)

        y_ref[...] = acc.reshape(1, tile_h, W, cout).astype(y_ref.dtype)
        # partial BatchNorm statistics for this image (accumulated across row tiles)
        ssum_ref[...] += jnp.sum(acc, axis=0, keepdims=True).reshape(1, 1, cout)
        ssq_ref[...] += jnp.sum(acc * acc, axis=0, keepdims=True).reshape(1, 1, cout)

    return kernel


def _bn_relu_kernel(y_ref, sc_ref, sh_ref, o_ref):
    """y -> max(y * scale + shift, 0) with per-channel (folded BN) scale/shift."""
    y = y_ref[...].astype(jnp.float32)
    sc = sc_ref[...].reshape(1, 1, 1, -1)
    sh = sh_ref[...].reshape(1, 1, 1, -1)
    o_ref[...] = jnp.maximum(y * sc + sh, 0.0).astype(o_ref.dtype)


# ------------------------------- wrappers -----------------------------------

def _pick_tile_h(H):
    for t in (8, 4, 2, 1):
        if H % t == 0:
            return t
    return 1


def conv3x3_fused(inputs, w_hwio, tile_h, scale=None, shift=None):
    """Fused 3x3 conv over concat(inputs) with optional BN+ReLU prologue.

    Returns (conv_out NHWC f32, per-image channel sums, per-image channel
    sums-of-squares) so BatchNorm statistics never require an extra HBM pass.
    """
    N, H, W, _ = inputs[0].shape
    cins = tuple(a.shape[-1] for a in inputs)
    cin = sum(cins)
    cout = w_hwio.shape[-1]
    n_tiles = H // tile_h

    # (3, 3, Cin, Cout) -> (3, 3*Cin, Cout): flatten (dx, cin) to match the
    # column-im2col channel layout built inside the kernel.
    w3 = w_hwio.reshape(3, 3 * cin, cout)

    args = list(inputs)
    in_specs = [pl.BlockSpec((1, H, W, c), lambda n, h: (n, 0, 0, 0)) for c in cins]
    if scale is not None:
        args += [scale.reshape(1, -1).astype(jnp.float32),
                 shift.reshape(1, -1).astype(jnp.float32)]
        in_specs += [pl.BlockSpec((1, cins[0]), lambda n, h: (0, 0)),
                     pl.BlockSpec((1, cins[0]), lambda n, h: (0, 0))]
    args.append(w3)
    in_specs.append(pl.BlockSpec((3, 3 * cin, cout), lambda n, h: (0, 0, 0)))

    kernel = _make_conv_kernel(H, W, cins, cout, tile_h, scale is not None)

    y, ssum, ssq = pl.pallas_call(
        kernel,
        out_shape=(jax.ShapeDtypeStruct((N, H, W, cout), jnp.float32),
                   jax.ShapeDtypeStruct((N, 1, cout), jnp.float32),
                   jax.ShapeDtypeStruct((N, 1, cout), jnp.float32)),
        grid=(N, n_tiles),
        in_specs=in_specs,
        out_specs=(pl.BlockSpec((1, tile_h, W, cout), lambda n, h: (n, h, 0, 0)),
                   pl.BlockSpec((1, 1, cout), lambda n, h: (n, 0, 0)),
                   pl.BlockSpec((1, 1, cout), lambda n, h: (n, 0, 0))),
        scratch_shapes=[pltpu.VMEM((H + 2, W, 3 * cin), jnp.float32)],
        compiler_params=pltpu.CompilerParams(
            dimension_semantics=("parallel", "arbitrary"),
            vmem_limit_bytes=_VMEM_LIMIT),
    )(*args)
    return y, ssum, ssq


def bn_relu_apply(y, scale, shift, tile_h):
    N, H, W, C = y.shape
    n_tiles = H // tile_h
    return pl.pallas_call(
        _bn_relu_kernel,
        out_shape=jax.ShapeDtypeStruct((N, H, W, C), jnp.float32),
        grid=(N, n_tiles),
        in_specs=[pl.BlockSpec((1, tile_h, W, C), lambda n, h: (n, h, 0, 0)),
                  pl.BlockSpec((1, C), lambda n, h: (0, 0)),
                  pl.BlockSpec((1, C), lambda n, h: (0, 0))],
        out_specs=pl.BlockSpec((1, tile_h, W, C), lambda n, h: (n, h, 0, 0)),
        compiler_params=pltpu.CompilerParams(
            dimension_semantics=("parallel", "parallel"),
            vmem_limit_bytes=_VMEM_LIMIT),
    )(y, scale.reshape(1, C).astype(jnp.float32),
       shift.reshape(1, C).astype(jnp.float32))


def _bn_scale_shift(ssum, ssq, count, gamma, beta, eps=_EPS):
    """Fold training-mode BatchNorm (biased variance) into per-channel scale/shift."""
    s = jnp.sum(ssum, axis=(0, 1))
    sq = jnp.sum(ssq, axis=(0, 1))
    mean = s / count
    var = sq / count - mean * mean          # biased variance (BN training mode)
    inv = jax.lax.rsqrt(var + eps)
    scale = gamma * inv
    shift = beta - mean * scale
    return scale, shift


def _interp_matrix(n_in, n_out):
    """1-D linear resize matrix, align_corners=True (PyTorch semantics)."""
    if n_in == 1:
        return jnp.ones((n_out, 1), jnp.float32)      # replicate the single sample
    if n_out == 1:
        return jnp.zeros((1, n_in), jnp.float32).at[0, 0].set(1.0)
    src = jnp.arange(n_out, dtype=jnp.float32) * (n_in - 1) / (n_out - 1)
    lo = jnp.clip(jnp.floor(src).astype(jnp.int32), 0, n_in - 2)
    frac = src - lo.astype(jnp.float32)
    rows = jnp.arange(n_out)
    m = jnp.zeros((n_out, n_in), jnp.float32)
    m = m.at[rows, lo].add(1.0 - frac)
    m = m.at[rows, lo + 1].add(frac)
    return m


def up_forward(params, x1_nchw, x2_nchw):
    """Up.forward(x1, x2) with NCHW inputs/outputs like PyTorch."""
    x1 = jnp.transpose(x1_nchw, (0, 2, 3, 1)).astype(jnp.float32)  # NHWC
    x2 = jnp.transpose(x2_nchw, (0, 2, 3, 1)).astype(jnp.float32)  # NHWC

    # Glue: bilinear upsample (scale 2, align_corners=True) via separable matrices.
    # TODO(synk): fold the fixed 4-tap scale-2 upsample stencil into the conv1
    # kernel to avoid writing the 4x-size upsampled tensor to HBM.
    _, H1, W1, _ = x1.shape
    A = _interp_matrix(H1, 2 * H1)
    B = _interp_matrix(W1, 2 * W1)
    x1u = jnp.einsum('ip,jq,npqc->nijc', A, B, x1)

    # Glue: F.pad to x2 spatial size (zero for standard U-Net shapes).
    dY = x2.shape[1] - x1u.shape[1]
    dX = x2.shape[2] - x1u.shape[2]
    if dY or dX:
        x1u = jnp.pad(x1u, ((0, 0), (dY // 2, dY - dY // 2),
                            (dX // 2, dX - dX // 2), (0, 0)))

    N, H, W, _ = x2.shape
    count = float(N * H * W)
    tile_h = _pick_tile_h(H)

    # conv1: channel concat([x2, x1u]) fused into the kernel + BN1 statistics.
    y1, s1, q1 = conv3x3_fused([x2, x1u], params['w1'], tile_h)
    sc1, sh1 = _bn_scale_shift(s1, q1, count, params['g1'], params['b1'])

    # conv2: BN1+ReLU1 applied as an in-kernel prologue + BN2 statistics.
    y2, s2, q2 = conv3x3_fused([y1], params['w2'], tile_h, scale=sc1, shift=sh1)
    sc2, sh2 = _bn_scale_shift(s2, q2, count, params['g2'], params['b2'])

    # Final BN2+ReLU2 (tiled, parallel over batch and row tiles).
    out = bn_relu_apply(y2, sc2, sh2, tile_h)
    return jnp.transpose(out, (0, 3, 1, 2))  # back to NCHW


def init_params(key, in_channels, out_channels):
    """Up(in_channels, out_channels, bilinear=True): mid = in_channels // 2."""
    mid = in_channels // 2
    k1, k2 = jax.random.split(key, 2)
    return {
        # conv weights stored HWIO (PyTorch Conv2d weight is (O, I, 3, 3)).
        'w1': 0.1 * jax.random.normal(k1, (3, 3, in_channels, mid), jnp.float32),
        'g1': jnp.ones((mid,), jnp.float32),          # BN weight init = 1
        'b1': jnp.zeros((mid,), jnp.float32),         # BN bias init = 0
        'w2': 0.1 * jax.random.normal(k2, (3, 3, mid, out_channels), jnp.float32),
        'g2': jnp.ones((out_channels,), jnp.float32),
        'b2': jnp.zeros((out_channels,), jnp.float32),
    }


if __name__ == "__main__":
    key = jax.random.PRNGKey(0)
    kp, kx1, kx2 = jax.random.split(key, 3)

    in_channels, out_channels = 8, 4
    params = init_params(kp, in_channels, out_channels)

    # x1: low-res feature map (N, in_ch//2, H, W); x2: skip connection at 2x res.
    x1 = jax.random.normal(kx1, (2, in_channels // 2, 8, 8), jnp.float32)    # NCHW
    x2 = jax.random.normal(kx2, (2, in_channels // 2, 16, 16), jnp.float32)  # NCHW

    fwd = jax.jit(lambda a, b: up_forward(params, a, b))
    y = fwd(x1, x2)
    jax.block_until_ready(y)

    assert y.shape == (2, out_channels, 16, 16), y.shape
    assert bool(jnp.all(jnp.isfinite(y)))
    assert bool(jnp.all(y >= 0.0))  # ends with ReLU
    print("KERNEL_OK")
</pallas_src>

<mosaic_0001>
module attributes {stable_mosaic.version = 11 : i64} {
  func.func private @main(%arg0: i32) attributes {dimension_semantics = [#tpu.dimension_semantics<core_parallel>], iteration_bounds = array<i64: 2>, tpu.core_type = #tpu.core_type<sc_scalar_subcore>, window_params = []} {
    return
  }
}

module attributes {stable_mosaic.version = 11 : i64} {
  func.func private @main(%arg0: i32) attributes {dimension_semantics = [#tpu.dimension_semantics<core_parallel>], iteration_bounds = array<i64: 2>, tpu.core_type = #tpu.core_type<sc_scalar_subcore>, window_params = []} {
    return
  }
}

module attributes {stable_mosaic.version = 11 : i64} {
  func.func @kernel(%arg0: i32, %arg1: i32, %arg2: memref<1x16x16x4xf32, #tpu.memory_space<vmem>>, %arg3: memref<1x16x16x4xf32, #tpu.memory_space<vmem>>, %arg4: memref<3x24x4xf32, #tpu.memory_space<vmem>>, %arg5: memref<1x8x16x4xf32, #tpu.memory_space<vmem>>, %arg6: memref<1x1x4xf32, #tpu.memory_space<vmem>>, %arg7: memref<1x1x4xf32, #tpu.memory_space<vmem>>, %arg8: memref<18x16x24xf32, #tpu.memory_space<vmem>>) attributes {dimension_semantics = [#tpu.dimension_semantics<parallel>, #tpu.dimension_semantics<arbitrary>], iteration_bounds = array<i64: 2, 2>, scalar_prefetch = 0 : i64, scratch_operands = 1 : i64, tpu.core_type = #tpu.core_type<tc>, window_params = [{transform_indices = @transform_0, window_bounds = array<i64: 1, 16, 16, 4>}, {transform_indices = @transform_1, window_bounds = array<i64: 1, 16, 16, 4>}, {pipeline_mode = #tpu.pipeline_mode<synchronous>, transform_indices = @transform_2, window_bounds = array<i64: 3, 24, 4>}, {transform_indices = @transform_3, window_bounds = array<i64: 1, 8, 16, 4>}, {transform_indices = @transform_4, window_bounds = array<i64: 1, 1, 4>}, {transform_indices = @transform_5, window_bounds = array<i64: 1, 1, 4>}]} {
    %c0_i32 = arith.constant 0 : i32
    %0 = arith.cmpi eq, %arg1, %c0_i32 : i32
    %1 = arith.extui %0 : i1 to i32
    %c0_i32_0 = arith.constant 0 : i32
    %2 = arith.cmpi ne, %1, %c0_i32_0 : i32
    scf.if %2 {
      %c0_30 = arith.constant 0 : index
      %c0_31 = arith.constant 0 : index
      %c0_32 = arith.constant 0 : index
      %c0_33 = arith.constant 0 : index
      %41 = vector.load %arg2[%c0_30, %c0_31, %c0_32, %c0_33] : memref<1x16x16x4xf32, #tpu.memory_space<vmem>>, vector<1x16x16x4xf32>
      %42 = vector.shape_cast %41 : vector<1x16x16x4xf32> to vector<16x16x4xf32>
      %c0_34 = arith.constant 0 : index
      %c0_35 = arith.constant 0 : index
      %c0_36 = arith.constant 0 : index
      %c0_37 = arith.constant 0 : index
      %43 = vector.load %arg3[%c0_34, %c0_35, %c0_36, %c0_37] : memref<1x16x16x4xf32, #tpu.memory_space<vmem>>, vector<1x16x16x4xf32>
      %44 = vector.shape_cast %43 : vector<1x16x16x4xf32> to vector<16x16x4xf32>
      %45 = tpu.concatenate %42, %44 in 2 : vector<16x16x4xf32>, vector<16x16x4xf32> -> vector<16x16x8xf32>
      %cst_38 = arith.constant 0.000000e+00 : f32
      %46 = vector.broadcast %cst_38 : f32 to vector<16x1x8xf32>
      %47 = vector.extract_strided_slice %45 {offsets = [0, 0, 0], sizes = [16, 15, 8], strides = [1, 1, 1]} : vector<16x16x8xf32> to vector<16x15x8xf32>
      %48 = tpu.concatenate %46, %47 in 1 : vector<16x1x8xf32>, vector<16x15x8xf32> -> vector<16x16x8xf32>
      %49 = vector.extract_strided_slice %45 {offsets = [0, 1, 0], sizes = [16, 15, 8], strides = [1, 1, 1]} : vector<16x16x8xf32> to vector<16x15x8xf32>
      %50 = tpu.concatenate %49, %46 in 1 : vector<16x15x8xf32>, vector<16x1x8xf32> -> vector<16x16x8xf32>
      %51 = tpu.concatenate %48, %45, %50 in 2 : vector<16x16x8xf32>, vector<16x16x8xf32>, vector<16x16x8xf32> -> vector<16x16x24xf32>
      %cst_39 = arith.constant 0.000000e+00 : f32
      %52 = vector.broadcast %cst_39 : f32 to vector<1x16x24xf32>
      %53 = tpu.concatenate %52, %51, %52 in 0 : vector<1x16x24xf32>, vector<16x16x24xf32>, vector<1x16x24xf32> -> vector<18x16x24xf32>
      %c0_40 = arith.constant 0 : index
      %c0_41 = arith.constant 0 : index
      %c0_42 = arith.constant 0 : index
      %54 = vector.load %arg8[%c0_40, %c0_41, %c0_42] : memref<18x16x24xf32, #tpu.memory_space<vmem>>, vector<18x16x24xf32>
      tpu.vector_store %arg8[%c0_40, %c0_41, %c0_42], %53 {strides = array<i32>} : memref<18x16x24xf32, #tpu.memory_space<vmem>>, vector<18x16x24xf32>,
      %cst_43 = arith.constant 0.000000e+00 : f32
      %55 = vector.broadcast %cst_43 : f32 to vector<1x1x4xf32>
      %c0_44 = arith.constant 0 : index
      %c0_45 = arith.constant 0 : index
      %c0_46 = arith.constant 0 : index
      %56 = vector.load %arg6[%c0_44, %c0_45, %c0_46] : memref<1x1x4xf32, #tpu.memory_space<vmem>>, vector<1x1x4xf32>
      tpu.vector_store %arg6[%c0_44, %c0_45, %c0_46], %55 {strides = array<i32>} : memref<1x1x4xf32, #tpu.memory_space<vmem>>, vector<1x1x4xf32>,
      %cst_47 = arith.constant 0.000000e+00 : f32
      %57 = vector.broadcast %cst_47 : f32 to vector<1x1x4xf32>
      %c0_48 = arith.constant 0 : index
      %c0_49 = arith.constant 0 : index
      %c0_50 = arith.constant 0 : index
      %58 = vector.load %arg7[%c0_48, %c0_49, %c0_50] : memref<1x1x4xf32, #tpu.memory_space<vmem>>, vector<1x1x4xf32>
      tpu.vector_store %arg7[%c0_48, %c0_49, %c0_50], %57 {strides = array<i32>} : memref<1x1x4xf32, #tpu.memory_space<vmem>>, vector<1x1x4xf32>,
    } else {
    }
    %c8_i32 = arith.constant 8 : i32
    %3 = arith.muli %arg1, %c8_i32 : i32
    %4 = tpu.assume_multiple %3, 8 : i32
    %5 = arith.index_cast %4 : i32 to index
    %c0 = arith.constant 0 : index
    %c0_1 = arith.constant 0 : index
    %6 = vector.load %arg8[%5, %c0, %c0_1] : memref<18x16x24xf32, #tpu.memory_space<vmem>>, vector<10x16x24xf32>
    %cst = arith.constant 0.000000e+00 : f32
    %7 = vector.broadcast %cst : f32 to vector<128x4xf32>
    %8 = vector.extract_strided_slice %6 {offsets = [0, 0, 0], sizes = [8, 16, 24], strides = [1, 1, 1]} : vector<10x16x24xf32> to vector<8x16x24xf32>
    %9 = vector.shape_cast %8 : vector<8x16x24xf32> to vector<128x24xf32>
    %c0_2 = arith.constant 0 : index
    %c0_3 = arith.constant 0 : index
    %c0_4 = arith.constant 0 : index
    %10 = vector.load %arg4[%c0_2, %c0_3, %c0_4] : memref<3x24x4xf32, #tpu.memory_space<vmem>>, vector<1x24x4xf32>
    %11 = vector.shape_cast %10 : vector<1x24x4xf32> to vector<24x4xf32>
    %cst_5 = arith.constant dense<0.000000e+00> : vector<128x4xf32>
    %12 = tpu.matmul %9, %11, %cst_5 {dimension_numbers = #tpu.dot_dimension_numbers<[1], [0], [0], [1], [0, 0, 1, 1], [], []>} : vector<128x24xf32>, vector<24x4xf32>, vector<128x4xf32> -> vector<128x4xf32>
    %13 = arith.addf %7, %12 : vector<128x4xf32>
    %14 = vector.extract_strided_slice %6 {offsets = [1, 0, 0], sizes = [8, 16, 24], strides = [1, 1, 1]} : vector<10x16x24xf32> to vector<8x16x24xf32>
    %15 = vector.shape_cast %14 : vector<8x16x24xf32> to vector<128x24xf32>
    %c1 = arith.constant 1 : index
    %c0_6 = arith.constant 0 : index
    %c0_7 = arith.constant 0 : index
    %16 = vector.load %arg4[%c1, %c0_6, %c0_7] : memref<3x24x4xf32, #tpu.memory_space<vmem>>, vector<1x24x4xf32>
    %17 = vector.shape_cast %16 : vector<1x24x4xf32> to vector<24x4xf32>
    %cst_8 = arith.constant dense<0.000000e+00> : vector<128x4xf32>
    %18 = tpu.matmul %15, %17, %cst_8 {dimension_numbers = #tpu.dot_dimension_numbers<[1], [0], [0], [1], [0, 0, 1, 1], [], []>} : vector<128x24xf32>, vector<24x4xf32>, vector<128x4xf32> -> vector<128x4xf32>
    %19 = arith.addf %13, %18 : vector<128x4xf32>
    %20 = vector.extract_strided_slice %6 {offsets = [2, 0, 0], sizes = [8, 16, 24], strides = [1, 1, 1]} : vector<10x16x24xf32> to vector<8x16x24xf32>
    %21 = vector.shape_cast %20 : vector<8x16x24xf32> to vector<128x24xf32>
    %c2 = arith.constant 2 : index
    %c0_9 = arith.constant 0 : index
    %c0_10 = arith.constant 0 : index
    %22 = vector.load %arg4[%c2, %c0_9, %c0_10] : memref<3x24x4xf32, #tpu.memory_space<vmem>>, vector<1x24x4xf32>
    %23 = vector.shape_cast %22 : vector<1x24x4xf32> to vector<24x4xf32>
    %cst_11 = arith.constant dense<0.000000e+00> : vector<128x4xf32>
    %24 = tpu.matmul %21, %23, %cst_11 {dimension_numbers = #tpu.dot_dimension_numbers<[1], [0], [0], [1], [0, 0, 1, 1], [], []>} : vector<128x24xf32>, vector<24x4xf32>, vector<128x4xf32> -> vector<128x4xf32>
    %25 = arith.addf %19, %24 : vector<128x4xf32>
    %26 = vector.shape_cast %25 : vector<128x4xf32> to vector<1x8x16x4xf32>
    %c0_12 = arith.constant 0 : index
    %c0_13 = arith.constant 0 : index
    %c0_14 = arith.constant 0 : index
    %c0_15 = arith.constant 0 : index
    %27 = vector.load %arg5[%c0_12, %c0_13, %c0_14, %c0_15] : memref<1x8x16x4xf32, #tpu.memory_space<vmem>>, vector<1x8x16x4xf32>
    tpu.vector_store %arg5[%c0_12, %c0_13, %c0_14, %c0_15], %26 {strides = array<i32>} : memref<1x8x16x4xf32, #tpu.memory_space<vmem>>, vector<1x8x16x4xf32>,
    %c0_16 = arith.constant 0 : index
    %c0_17 = arith.constant 0 : index
    %c0_18 = arith.constant 0 : index
    %28 = vector.load %arg6[%c0_16, %c0_17, %c0_18] : memref<1x1x4xf32, #tpu.memory_space<vmem>>, vector<1x1x4xf32>
    %cst_19 = arith.constant dense<0.000000e+00> : vector<4xf32>
    %29 = vector.multi_reduction <add>, %25, %cst_19 [0] : vector<128x4xf32> to vector<4xf32>
    %30 = vector.shape_cast %29 : vector<4xf32> to vector<1x4xf32>
    %31 = vector.shape_cast %30 : vector<1x4xf32> to vector<1x1x4xf32>
    %32 = arith.addf %28, %31 : vector<1x1x4xf32>
    %c0_20 = arith.constant 0 : index
    %c0_21 = arith.constant 0 : index
    %c0_22 = arith.constant 0 : index
    %33 = vector.load %arg6[%c0_20, %c0_21, %c0_22] : memref<1x1x4xf32, #tpu.memory_space<vmem>>, vector<1x1x4xf32>
    tpu.vector_store %arg6[%c0_20, %c0_21, %c0_22], %32 {strides = array<i32>} : memref<1x1x4xf32, #tpu.memory_space<vmem>>, vector<1x1x4xf32>,
    %c0_23 = arith.constant 0 : index
    %c0_24 = arith.constant 0 : index
    %c0_25 = arith.constant 0 : index
    %34 = vector.load %arg7[%c0_23, %c0_24, %c0_25] : memref<1x1x4xf32, #tpu.memory_space<vmem>>, vector<1x1x4xf32>
    %35 = arith.mulf %25, %25 : vector<128x4xf32>
    %cst_26 = arith.constant dense<0.000000e+00> : vector<4xf32>
    %36 = vector.multi_reduction <add>, %35, %cst_26 [0] : vector<128x4xf32> to vector<4xf32>
    %37 = vector.shape_cast %36 : vector<4xf32> to vector<1x4xf32>
    %38 = vector.shape_cast %37 : vector<1x4xf32> to vector<1x1x4xf32>
    %39 = arith.addf %34, %38 : vector<1x1x4xf32>
    %c0_27 = arith.constant 0 : index
    %c0_28 = arith.constant 0 : index
    %c0_29 = arith.constant 0 : index
    %40 = vector.load %arg7[%c0_27, %c0_28, %c0_29] : memref<1x1x4xf32, #tpu.memory_space<vmem>>, vector<1x1x4xf32>
    tpu.vector_store %arg7[%c0_27, %c0_28, %c0_29], %39 {strides = array<i32>} : memref<1x1x4xf32, #tpu.memory_space<vmem>>, vector<1x1x4xf32>,
    return
  }
  func.func @transform_0(%arg0: i32, %arg1: i32) -> (i32, i32, i32, i32) {
    %c0_i32 = arith.constant 0 : i32
    %c0_i32_0 = arith.constant 0 : i32
    %c0_i32_1 = arith.constant 0 : i32
    %c0_i32_2 = arith.constant 0 : i32
    return %arg0, %c0_i32, %c0_i32_0, %c0_i32_1 : i32, i32, i32, i32
  }
  func.func @transform_1(%arg0: i32, %arg1: i32) -> (i32, i32, i32, i32) {
    %c0_i32 = arith.constant 0 : i32
    %c0_i32_0 = arith.constant 0 : i32
    %c0_i32_1 = arith.constant 0 : i32
    %c0_i32_2 = arith.constant 0 : i32
    return %arg0, %c0_i32, %c0_i32_0, %c0_i32_1 : i32, i32, i32, i32
  }
  func.func @transform_2(%arg0: i32, %arg1: i32) -> (i32, i32, i32) {
    %c0_i32 = arith.constant 0 : i32
    %c0_i32_0 = arith.constant 0 : i32
    %c0_i32_1 = arith.constant 0 : i32
    %c0_i32_2 = arith.constant 0 : i32
    return %c0_i32, %c0_i32_0, %c0_i32_1 : i32, i32, i32
  }
  func.func @transform_3(%arg0: i32, %arg1: i32) -> (i32, i32, i32, i32) {
    %c0_i32 = arith.constant 0 : i32
    %c0_i32_0 = arith.constant 0 : i32
    %c0_i32_1 = arith.constant 0 : i32
    return %arg0, %arg1, %c0_i32, %c0_i32_0 : i32, i32, i32, i32
  }
  func.func @transform_4(%arg0: i32, %arg1: i32) -> (i32, i32, i32) {
    %c0_i32 = arith.constant 0 : i32
    %c0_i32_0 = arith.constant 0 : i32
    %c0_i32_1 = arith.constant 0 : i32
    return %arg0, %c0_i32, %c0_i32_0 : i32, i32, i32
  }
  func.func @transform_5(%arg0: i32, %arg1: i32) -> (i32, i32, i32) {
    %c0_i32 = arith.constant 0 : i32
    %c0_i32_0 = arith.constant 0 : i32
    %c0_i32_1 = arith.constant 0 : i32
    return %arg0, %c0_i32, %c0_i32_0 : i32, i32, i32
  }
}

module attributes {stable_mosaic.version = 11 : i64} {
  func.func @_bn_relu_kernel(%arg0: i32, %arg1: i32, %arg2: memref<1x8x16x4xf32, #tpu.memory_space<vmem>>, %arg3: memref<1x4xf32, #tpu.memory_space<vmem>>, %arg4: memref<1x4xf32, #tpu.memory_space<vmem>>, %arg5: memref<1x8x16x4xf32, #tpu.memory_space<vmem>>) attributes {dimension_semantics = [#tpu.dimension_semantics<parallel>, #tpu.dimension_semantics<parallel>], iteration_bounds = array<i64: 2, 2>, scalar_prefetch = 0 : i64, scratch_operands = 0 : i64, tpu.core_type = #tpu.core_type<tc>, window_params = [{transform_indices = @transform_0, window_bounds = array<i64: 1, 8, 16, 4>}, {pipeline_mode = #tpu.pipeline_mode<synchronous>, transform_indices = @transform_1, window_bounds = array<i64: 1, 4>}, {pipeline_mode = #tpu.pipeline_mode<synchronous>, transform_indices = @transform_2, window_bounds = array<i64: 1, 4>}, {transform_indices = @transform_3, window_bounds = array<i64: 1, 8, 16, 4>}]} {
    %c0 = arith.constant 0 : index
    %c0_0 = arith.constant 0 : index
    %c0_1 = arith.constant 0 : index
    %c0_2 = arith.constant 0 : index
    %0 = vector.load %arg2[%c0, %c0_0, %c0_1, %c0_2] : memref<1x8x16x4xf32, #tpu.memory_space<vmem>>, vector<1x8x16x4xf32>
    %c0_3 = arith.constant 0 : index
    %c0_4 = arith.constant 0 : index
    %1 = vector.load %arg3[%c0_3, %c0_4] : memref<1x4xf32, #tpu.memory_space<vmem>>, vector<1x4xf32>
    %2 = vector.shape_cast %1 : vector<1x4xf32> to vector<1x1x1x4xf32>
    %c0_5 = arith.constant 0 : index
    %c0_6 = arith.constant 0 : index
    %3 = vector.load %arg4[%c0_5, %c0_6] : memref<1x4xf32, #tpu.memory_space<vmem>>, vector<1x4xf32>
    %4 = vector.shape_cast %3 : vector<1x4xf32> to vector<1x1x1x4xf32>
    %5 = vector.broadcast %2 : vector<1x1x1x4xf32> to vector<1x8x16x4xf32>
    %6 = arith.mulf %0, %5 : vector<1x8x16x4xf32>
    %7 = vector.broadcast %4 : vector<1x1x1x4xf32> to vector<1x8x16x4xf32>
    %8 = arith.addf %6, %7 : vector<1x8x16x4xf32>
    %cst = arith.constant 0.000000e+00 : f32
    %9 = vector.broadcast %cst : f32 to vector<1x8x16x4xf32>
    %10 = arith.maximumf %8, %9 : vector<1x8x16x4xf32>
    %c0_7 = arith.constant 0 : index
    %c0_8 = arith.constant 0 : index
    %c0_9 = arith.constant 0 : index
    %c0_10 = arith.constant 0 : index
    %11 = vector.load %arg5[%c0_7, %c0_8, %c0_9, %c0_10] : memref<1x8x16x4xf32, #tpu.memory_space<vmem>>, vector<1x8x16x4xf32>
    tpu.vector_store %arg5[%c0_7, %c0_8, %c0_9, %c0_10], %10 {strides = array<i32>} : memref<1x8x16x4xf32, #tpu.memory_space<vmem>>, vector<1x8x16x4xf32>,
    return
  }
  func.func @transform_0(%arg0: i32, %arg1: i32) -> (i32, i32, i32, i32) {
    %c0_i32 = arith.constant 0 : i32
    %c0_i32_0 = arith.constant 0 : i32
    %c0_i32_1 = arith.constant 0 : i32
    return %arg0, %arg1, %c0_i32, %c0_i32_0 : i32, i32, i32, i32
  }
  func.func @transform_1(%arg0: i32, %arg1: i32) -> (i32, i32) {
    %c0_i32 = arith.constant 0 : i32
    %c0_i32_0 = arith.constant 0 : i32
    %c0_i32_1 = arith.constant 0 : i32
    return %c0_i32, %c0_i32_0 : i32, i32
  }
  func.func @transform_2(%arg0: i32, %arg1: i32) -> (i32, i32) {
    %c0_i32 = arith.constant 0 : i32
    %c0_i32_0 = arith.constant 0 : i32
    %c0_i32_1 = arith.constant 0 : i32
    return %c0_i32, %c0_i32_0 : i32, i32
  }
  func.func @transform_3(%arg0: i32, %arg1: i32) -> (i32, i32, i32, i32) {
    %c0_i32 = arith.constant 0 : i32
    %c0_i32_0 = arith.constant 0 : i32
    %c0_i32_1 = arith.constant 0 : i32
    return %arg0, %arg1, %c0_i32, %c0_i32_0 : i32, i32, i32, i32
  }
}

module attributes {stable_mosaic.version = 11 : i64} {
  func.func @kernel(%arg0: i32, %arg1: i32, %arg2: memref<1x16x16x4xf32, #tpu.memory_space<vmem>>, %arg3: memref<1x4xf32, #tpu.memory_space<vmem>>, %arg4: memref<1x4xf32, #tpu.memory_space<vmem>>, %arg5: memref<3x12x4xf32, #tpu.memory_space<vmem>>, %arg6: memref<1x8x16x4xf32, #tpu.memory_space<vmem>>, %arg7: memref<1x1x4xf32, #tpu.memory_space<vmem>>, %arg8: memref<1x1x4xf32, #tpu.memory_space<vmem>>, %arg9: memref<18x16x12xf32, #tpu.memory_space<vmem>>) attributes {dimension_semantics = [#tpu.dimension_semantics<parallel>, #tpu.dimension_semantics<arbitrary>], iteration_bounds = array<i64: 2, 2>, scalar_prefetch = 0 : i64, scratch_operands = 1 : i64, tpu.core_type = #tpu.core_type<tc>, window_params = [{transform_indices = @transform_0, window_bounds = array<i64: 1, 16, 16, 4>}, {pipeline_mode = #tpu.pipeline_mode<synchronous>, transform_indices = @transform_1, window_bounds = array<i64: 1, 4>}, {pipeline_mode = #tpu.pipeline_mode<synchronous>, transform_indices = @transform_2, window_bounds = array<i64: 1, 4>}, {pipeline_mode = #tpu.pipeline_mode<synchronous>, transform_indices = @transform_3, window_bounds = array<i64: 3, 12, 4>}, {transform_indices = @transform_4, window_bounds = array<i64: 1, 8, 16, 4>}, {transform_indices = @transform_5, window_bounds = array<i64: 1, 1, 4>}, {transform_indices = @transform_6, window_bounds = array<i64: 1, 1, 4>}]} {
    %c0_i32 = arith.constant 0 : i32
    %0 = arith.cmpi eq, %arg1, %c0_i32 : i32
    %1 = arith.extui %0 : i1 to i32
    %c0_i32_0 = arith.constant 0 : i32
    %2 = arith.cmpi ne, %1, %c0_i32_0 : i32
    scf.if %2 {
      %c0_30 = arith.constant 0 : index
      %c0_31 = arith.constant 0 : index
      %c0_32 = arith.constant 0 : index
      %c0_33 = arith.constant 0 : index
      %41 = vector.load %arg2[%c0_30, %c0_31, %c0_32, %c0_33] : memref<1x16x16x4xf32, #tpu.memory_space<vmem>>, vector<1x16x16x4xf32>
      %42 = vector.shape_cast %41 : vector<1x16x16x4xf32> to vector<16x16x4xf32>
      %c0_34 = arith.constant 0 : index
      %c0_35 = arith.constant 0 : index
      %43 = vector.load %arg3[%c0_34, %c0_35] : memref<1x4xf32, #tpu.memory_space<vmem>>, vector<1x4xf32>
      %44 = vector.shape_cast %43 : vector<1x4xf32> to vector<1x1x4xf32>
      %c0_36 = arith.constant 0 : index
      %c0_37 = arith.constant 0 : index
      %45 = vector.load %arg4[%c0_36, %c0_37] : memref<1x4xf32, #tpu.memory_space<vmem>>, vector<1x4xf32>
      %46 = vector.shape_cast %45 : vector<1x4xf32> to vector<1x1x4xf32>
      %47 = vector.broadcast %44 : vector<1x1x4xf32> to vector<16x16x4xf32>
      %48 = arith.mulf %42, %47 : vector<16x16x4xf32>
      %49 = vector.broadcast %46 : vector<1x1x4xf32> to vector<16x16x4xf32>
      %50 = arith.addf %48, %49 : vector<16x16x4xf32>
      %cst_38 = arith.constant 0.000000e+00 : f32
      %51 = vector.broadcast %cst_38 : f32 to vector<16x16x4xf32>
      %52 = arith.maximumf %50, %51 : vector<16x16x4xf32>
      %cst_39 = arith.constant 0.000000e+00 : f32
      %53 = vector.broadcast %cst_39 : f32 to vector<16x1x4xf32>
      %54 = vector.extract_strided_slice %52 {offsets = [0, 0, 0], sizes = [16, 15, 4], strides = [1, 1, 1]} : vector<16x16x4xf32> to vector<16x15x4xf32>
      %55 = tpu.concatenate %53, %54 in 1 : vector<16x1x4xf32>, vector<16x15x4xf32> -> vector<16x16x4xf32>
      %56 = vector.extract_strided_slice %52 {offsets = [0, 1, 0], sizes = [16, 15, 4], strides = [1, 1, 1]} : vector<16x16x4xf32> to vector<16x15x4xf32>
      %57 = tpu.concatenate %56, %53 in 1 : vector<16x15x4xf32>, vector<16x1x4xf32> -> vector<16x16x4xf32>
      %58 = tpu.concatenate %55, %52, %57 in 2 : vector<16x16x4xf32>, vector<16x16x4xf32>, vector<16x16x4xf32> -> vector<16x16x12xf32>
      %cst_40 = arith.constant 0.000000e+00 : f32
      %59 = vector.broadcast %cst_40 : f32 to vector<1x16x12xf32>
      %60 = tpu.concatenate %59, %58, %59 in 0 : vector<1x16x12xf32>, vector<16x16x12xf32>, vector<1x16x12xf32> -> vector<18x16x12xf32>
      %c0_41 = arith.constant 0 : index
      %c0_42 = arith.constant 0 : index
      %c0_43 = arith.constant 0 : index
      %61 = vector.load %arg9[%c0_41, %c0_42, %c0_43] : memref<18x16x12xf32, #tpu.memory_space<vmem>>, vector<18x16x12xf32>
      tpu.vector_store %arg9[%c0_41, %c0_42, %c0_43], %60 {strides = array<i32>} : memref<18x16x12xf32, #tpu.memory_space<vmem>>, vector<18x16x12xf32>,
      %cst_44 = arith.constant 0.000000e+00 : f32
      %62 = vector.broadcast %cst_44 : f32 to vector<1x1x4xf32>
      %c0_45 = arith.constant 0 : index
      %c0_46 = arith.constant 0 : index
      %c0_47 = arith.constant 0 : index
      %63 = vector.load %arg7[%c0_45, %c0_46, %c0_47] : memref<1x1x4xf32, #tpu.memory_space<vmem>>, vector<1x1x4xf32>
      tpu.vector_store %arg7[%c0_45, %c0_46, %c0_47], %62 {strides = array<i32>} : memref<1x1x4xf32, #tpu.memory_space<vmem>>, vector<1x1x4xf32>,
      %cst_48 = arith.constant 0.000000e+00 : f32
      %64 = vector.broadcast %cst_48 : f32 to vector<1x1x4xf32>
      %c0_49 = arith.constant 0 : index
      %c0_50 = arith.constant 0 : index
      %c0_51 = arith.constant 0 : index
      %65 = vector.load %arg8[%c0_49, %c0_50, %c0_51] : memref<1x1x4xf32, #tpu.memory_space<vmem>>, vector<1x1x4xf32>
      tpu.vector_store %arg8[%c0_49, %c0_50, %c0_51], %64 {strides = array<i32>} : memref<1x1x4xf32, #tpu.memory_space<vmem>>, vector<1x1x4xf32>,
    } else {
    }
    %c8_i32 = arith.constant 8 : i32
    %3 = arith.muli %arg1, %c8_i32 : i32
    %4 = tpu.assume_multiple %3, 8 : i32
    %5 = arith.index_cast %4 : i32 to index
    %c0 = arith.constant 0 : index
    %c0_1 = arith.constant 0 : index
    %6 = vector.load %arg9[%5, %c0, %c0_1] : memref<18x16x12xf32, #tpu.memory_space<vmem>>, vector<10x16x12xf32>
    %cst = arith.constant 0.000000e+00 : f32
    %7 = vector.broadcast %cst : f32 to vector<128x4xf32>
    %8 = vector.extract_strided_slice %6 {offsets = [0, 0, 0], sizes = [8, 16, 12], strides = [1, 1, 1]} : vector<10x16x12xf32> to vector<8x16x12xf32>
    %9 = vector.shape_cast %8 : vector<8x16x12xf32> to vector<128x12xf32>
    %c0_2 = arith.constant 0 : index
    %c0_3 = arith.constant 0 : index
    %c0_4 = arith.constant 0 : index
    %10 = vector.load %arg5[%c0_2, %c0_3, %c0_4] : memref<3x12x4xf32, #tpu.memory_space<vmem>>, vector<1x12x4xf32>
    %11 = vector.shape_cast %10 : vector<1x12x4xf32> to vector<12x4xf32>
    %cst_5 = arith.constant dense<0.000000e+00> : vector<128x4xf32>
    %12 = tpu.matmul %9, %11, %cst_5 {dimension_numbers = #tpu.dot_dimension_numbers<[1], [0], [0], [1], [0, 0, 1, 1], [], []>} : vector<128x12xf32>, vector<12x4xf32>, vector<128x4xf32> -> vector<128x4xf32>
    %13 = arith.addf %7, %12 : vector<128x4xf32>
    %14 = vector.extract_strided_slice %6 {offsets = [1, 0, 0], sizes = [8, 16, 12], strides = [1, 1, 1]} : vector<10x16x12xf32> to vector<8x16x12xf32>
    %15 = vector.shape_cast %14 : vector<8x16x12xf32> to vector<128x12xf32>
    %c1 = arith.constant 1 : index
    %c0_6 = arith.constant 0 : index
    %c0_7 = arith.constant 0 : index
    %16 = vector.load %arg5[%c1, %c0_6, %c0_7] : memref<3x12x4xf32, #tpu.memory_space<vmem>>, vector<1x12x4xf32>
    %17 = vector.shape_cast %16 : vector<1x12x4xf32> to vector<12x4xf32>
    %cst_8 = arith.constant dense<0.000000e+00> : vector<128x4xf32>
    %18 = tpu.matmul %15, %17, %cst_8 {dimension_numbers = #tpu.dot_dimension_numbers<[1], [0], [0], [1], [0, 0, 1, 1], [], []>} : vector<128x12xf32>, vector<12x4xf32>, vector<128x4xf32> -> vector<128x4xf32>
    %19 = arith.addf %13, %18 : vector<128x4xf32>
    %20 = vector.extract_strided_slice %6 {offsets = [2, 0, 0], sizes = [8, 16, 12], strides = [1, 1, 1]} : vector<10x16x12xf32> to vector<8x16x12xf32>
    %21 = vector.shape_cast %20 : vector<8x16x12xf32> to vector<128x12xf32>
    %c2 = arith.constant 2 : index
    %c0_9 = arith.constant 0 : index
    %c0_10 = arith.constant 0 : index
    %22 = vector.load %arg5[%c2, %c0_9, %c0_10] : memref<3x12x4xf32, #tpu.memory_space<vmem>>, vector<1x12x4xf32>
    %23 = vector.shape_cast %22 : vector<1x12x4xf32> to vector<12x4xf32>
    %cst_11 = arith.constant dense<0.000000e+00> : vector<128x4xf32>
    %24 = tpu.matmul %21, %23, %cst_11 {dimension_numbers = #tpu.dot_dimension_numbers<[1], [0], [0], [1], [0, 0, 1, 1], [], []>} : vector<128x12xf32>, vector<12x4xf32>, vector<128x4xf32> -> vector<128x4xf32>
    %25 = arith.addf %19, %24 : vector<128x4xf32>
    %26 = vector.shape_cast %25 : vector<128x4xf32> to vector<1x8x16x4xf32>
    %c0_12 = arith.constant 0 : index
    %c0_13 = arith.constant 0 : index
    %c0_14 = arith.constant 0 : index
    %c0_15 = arith.constant 0 : index
    %27 = vector.load %arg6[%c0_12, %c0_13, %c0_14, %c0_15] : memref<1x8x16x4xf32, #tpu.memory_space<vmem>>, vector<1x8x16x4xf32>
    tpu.vector_store %arg6[%c0_12, %c0_13, %c0_14, %c0_15], %26 {strides = array<i32>} : memref<1x8x16x4xf32, #tpu.memory_space<vmem>>, vector<1x8x16x4xf32>,
    %c0_16 = arith.constant 0 : index
    %c0_17 = arith.constant 0 : index
    %c0_18 = arith.constant 0 : index
    %28 = vector.load %arg7[%c0_16, %c0_17, %c0_18] : memref<1x1x4xf32, #tpu.memory_space<vmem>>, vector<1x1x4xf32>
    %cst_19 = arith.constant dense<0.000000e+00> : vector<4xf32>
    %29 = vector.multi_reduction <add>, %25, %cst_19 [0] : vector<128x4xf32> to vector<4xf32>
    %30 = vector.shape_cast %29 : vector<4xf32> to vector<1x4xf32>
    %31 = vector.shape_cast %30 : vector<1x4xf32> to vector<1x1x4xf32>
    %32 = arith.addf %28, %31 : vector<1x1x4xf32>
    %c0_20 = arith.constant 0 : index
    %c0_21 = arith.constant 0 : index
    %c0_22 = arith.constant 0 : index
    %33 = vector.load %arg7[%c0_20, %c0_21, %c0_22] : memref<1x1x4xf32, #tpu.memory_space<vmem>>, vector<1x1x4xf32>
    tpu.vector_store %arg7[%c0_20, %c0_21, %c0_22], %32 {strides = array<i32>} : memref<1x1x4xf32, #tpu.memory_space<vmem>>, vector<1x1x4xf32>,
    %c0_23 = arith.constant 0 : index
    %c0_24 = arith.constant 0 : index
    %c0_25 = arith.constant 0 : index
    %34 = vector.load %arg8[%c0_23, %c0_24, %c0_25] : memref<1x1x4xf32, #tpu.memory_space<vmem>>, vector<1x1x4xf32>
    %35 = arith.mulf %25, %25 : vector<128x4xf32>
    %cst_26 = arith.constant dense<0.000000e+00> : vector<4xf32>
    %36 = vector.multi_reduction <add>, %35, %cst_26 [0] : vector<128x4xf32> to vector<4xf32>
    %37 = vector.shape_cast %36 : vector<4xf32> to vector<1x4xf32>
    %38 = vector.shape_cast %37 : vector<1x4xf32> to vector<1x1x4xf32>
    %39 = arith.addf %34, %38 : vector<1x1x4xf32>
    %c0_27 = arith.constant 0 : index
    %c0_28 = arith.constant 0 : index
    %c0_29 = arith.constant 0 : index
    %40 = vector.load %arg8[%c0_27, %c0_28, %c0_29] : memref<1x1x4xf32, #tpu.memory_space<vmem>>, vector<1x1x4xf32>
    tpu.vector_store %arg8[%c0_27, %c0_28, %c0_29], %39 {strides = array<i32>} : memref<1x1x4xf32, #tpu.memory_space<vmem>>, vector<1x1x4xf32>,
    return
  }
  func.func @transform_0(%arg0: i32, %arg1: i32) -> (i32, i32, i32, i32) {
    %c0_i32 = arith.constant 0 : i32
    %c0_i32_0 = arith.constant 0 : i32
    %c0_i32_1 = arith.constant 0 : i32
    %c0_i32_2 = arith.constant 0 : i32
    return %arg0, %c0_i32, %c0_i32_0, %c0_i32_1 : i32, i32, i32, i32
  }
  func.func @transform_1(%arg0: i32, %arg1: i32) -> (i32, i32) {
    %c0_i32 = arith.constant 0 : i32
    %c0_i32_0 = arith.constant 0 : i32
    %c0_i32_1 = arith.constant 0 : i32
    return %c0_i32, %c0_i32_0 : i32, i32
  }
  func.func @transform_2(%arg0: i32, %arg1: i32) -> (i32, i32) {
    %c0_i32 = arith.constant 0 : i32
    %c0_i32_0 = arith.constant 0 : i32
    %c0_i32_1 = arith.constant 0 : i32
    return %c0_i32, %c0_i32_0 : i32, i32
  }
  func.func @transform_3(%arg0: i32, %arg1: i32) -> (i32, i32, i32) {
    %c0_i32 = arith.constant 0 : i32
    %c0_i32_0 = arith.constant 0 : i32
    %c0_i32_1 = arith.constant 0 : i32
    %c0_i32_2 = arith.constant 0 : i32
    return %c0_i32, %c0_i32_0, %c0_i32_1 : i32, i32, i32
  }
  func.func @transform_4(%arg0: i32, %arg1: i32) -> (i32, i32, i32, i32) {
    %c0_i32 = arith.constant 0 : i32
    %c0_i32_0 = arith.constant 0 : i32
    %c0_i32_1 = arith.constant 0 : i32
    return %arg0, %arg1, %c0_i32, %c0_i32_0 : i32, i32, i32, i32
  }
  func.func @transform_5(%arg0: i32, %arg1: i32) -> (i32, i32, i32) {
    %c0_i32 = arith.constant 0 : i32
    %c0_i32_0 = arith.constant 0 : i32
    %c0_i32_1 = arith.constant 0 : i32
    return %arg0, %c0_i32, %c0_i32_0 : i32, i32, i32
  }
  func.func @transform_6(%arg0: i32, %arg1: i32) -> (i32, i32, i32) {
    %c0_i32 = arith.constant 0 : i32
    %c0_i32_0 = arith.constant 0 : i32
    %c0_i32_1 = arith.constant 0 : i32
    return %arg0, %c0_i32, %c0_i32_0 : i32, i32, i32
  }
}

</mosaic_0001>

<llo_original>
// kernel: _lambda_.5
$region0: #{_lambda_.5}
  #allocation0 [shape = 'u32[]', space=smem, size = 0x4, offset = 0x4, fixed_abs, tag = 'smem constant byte address 0x4 - core index']
  #allocation1 [shape = 'u32[144,128]{1,0:T(1,128)}', space=vmem, size = 0x12000, scoped, tag = 'internal scratch']
  %s0 = inlined_call_operand.vmem [shape: f32[2,16,16,4], index: 0, kind: input, shape index: {}]
  %s1 = inlined_call_operand.vmem [shape: f32[1,4], index: 1, kind: input, shape index: {}]
  %s2 = inlined_call_operand.vmem [shape: f32[1,4], index: 2, kind: input, shape index: {}]
  %s3 = inlined_call_operand.vmem [shape: f32[2,16,16,4], index: 3, kind: output, shape index: {}]
  %s4 = sld [smem:[#allocation0]]
  $region45: #{_lambda_.5} parent=0
    _
  %s6 = ssub.s32 1, %s4
  %s7 = scalar_select 0, %s6, %s4
  loop: start=0, step=1, limit=6
  $region2: #{_lambda_.5} parent=0 // loop_pre_header
    _
  $region3: #{_lambda_.5} parent=0 // loop_header
    %s9 = sphi 0, %s13
    %p10 = scmp.ge.s32.totalorder %s9, 6
    %s16 = sphi 0, %s28
    %s17 = sphi 0, %s24
    %s18 = sphi 0, %s16
    %s19 = sphi 0, %s17
    %s20 = sphi 0, %s18
    %s21 = sphi 0, %s19
    %s33 = sphi 0, %s35
    %s36 = sphi 0, %s33
    %s37 = sphi 0, %s36
    %s53 = sphi 0, %s37
    %s57 = sphi 0, %s57
    %s59 = sphi 0, %s57
    %s60 = sphi 0, %s59
    %s74 = sphi 0, %s60
    %s78 = sphi 0, %s78
    %s80 = sphi 0, %s78
    %s81 = sphi 0, %s80
    %s95 = sphi 0, %s81
    %s103 = sphi 0, %s105
    %s106 = sphi 0, %s103
    %s107 = sphi 0, %s106
    %s123 = sphi 0, %s107
  $region4: #{_lambda_.5} parent=0 // loop_header_branch
    %12 = sbr.rel (%p10) target = $region8
  $region5: #{_lambda_.5} parent=0 // loop_body
    %s14 = ssub.s32 %s9, 1
    %s15 = ssub.s32 %s9, 2
    %s22 = sadd.s32 1, %s17
    %p23 = scmp.ge.s32.totalorder %s22, 2
    %s24 = scalar_select %p23, 0, %s22
    %s25 = sadd.s32 1, %s16
    %s26 = scalar_select %p23, %s25, %s16
    %p27 = scmp.ge.s32.totalorder %s26, 2
    %s28 = scalar_select %p27, 0, %s26
    %s29 = ssub.s32 %s16, %s28
    %s30 = ssub.s32 %s17, %s24
    %s31 = sor.u32 %s29, %s30
    %p32 = scmp.eq.s32.totalorder %s31, 0
    %s34 = sadd.s32 %s33, 1
    %s35 = scalar_select %p32, %s33, %s34
    %p38 = pneg %p32
    %p39 = scmp.eq.s32.totalorder %s9, 3
    %p40 = por %p38, %p39
    %p41 = scmp.ne.s32.totalorder %s33, %s36
    %p42 = scmp.eq.s32.totalorder %s9, 0
    %p43 = por %p41, %p42
    %p44 = scmp.ne.s32.totalorder %s33, %s36
    %p45 = scmp.eq.s32.totalorder %s14, 3
    %p46 = por %p44, %p45
    %p47 = scmp.ne.s32.totalorder %s36, %s37
    %p48 = scmp.eq.s32.totalorder %s14, 0
    %p49 = por %p47, %p48
    %p50 = scmp.ne.s32.totalorder %s36, %s37
    %p51 = scmp.eq.s32.totalorder %s15, 3
    %p52 = por %p50, %p51
    %p54 = scmp.ne.s32.totalorder %s37, %s53
    %p55 = scmp.eq.s32.totalorder %s15, 0
    %p56 = por %p54, %p55
    %s58 = sadd.s32 %s57, 1
    %p61 = scmp.eq.s32.totalorder %s9, 3
    %p62 = scmp.ne.s32.totalorder %s57, %s59
    %p63 = scmp.eq.s32.totalorder %s9, 0
    %p64 = por %p62, %p63
    %p65 = scmp.ne.s32.totalorder %s57, %s59
    %p66 = scmp.eq.s32.totalorder %s14, 3
    %p67 = por %p65, %p66
    %p68 = scmp.ne.s32.totalorder %s59, %s60
    %p69 = scmp.eq.s32.totalorder %s14, 0
    %p70 = por %p68, %p69
    %p71 = scmp.ne.s32.totalorder %s59, %s60
    %p72 = scmp.eq.s32.totalorder %s15, 3
    %p73 = por %p71, %p72
    %p75 = scmp.ne.s32.totalorder %s60, %s74
    %p76 = scmp.eq.s32.totalorder %s15, 0
    %p77 = por %p75, %p76
    %s79 = sadd.s32 %s78, 1
    %p82 = scmp.eq.s32.totalorder %s9, 3
    %p83 = scmp.ne.s32.totalorder %s78, %s80
    %p84 = scmp.eq.s32.totalorder %s9, 0
    %p85 = por %p83, %p84
    %p86 = scmp.ne.s32.totalorder %s78, %s80
    %p87 = scmp.eq.s32.totalorder %s14, 3
    %p88 = por %p86, %p87
    %p89 = scmp.ne.s32.totalorder %s80, %s81
    %p90 = scmp.eq.s32.totalorder %s14, 0
    %p91 = por %p89, %p90
    %p92 = scmp.ne.s32.totalorder %s80, %s81
    %p93 = scmp.eq.s32.totalorder %s15, 3
    %p94 = por %p92, %p93
    %p96 = scmp.ne.s32.totalorder %s81, %s95
    %p97 = scmp.eq.s32.totalorder %s15, 0
    %p98 = por %p96, %p97
    %s99 = ssub.s32 %s16, %s28
    %s100 = ssub.s32 %s17, %s24
    %s101 = sor.u32 %s99, %s100
    %p102 = scmp.eq.s32.totalorder %s101, 0
    %s104 = sadd.s32 %s103, 1
    %s105 = scalar_select %p102, %s103, %s104
    %p108 = pneg %p102
    %p109 = scmp.eq.s32.totalorder %s9, 3
    %p110 = por %p108, %p109
    %p111 = scmp.ne.s32.totalorder %s103, %s106
    %p112 = scmp.eq.s32.totalorder %s9, 0
    %p113 = por %p111, %p112
    %p114 = scmp.ne.s32.totalorder %s103, %s106
    %p115 = scmp.eq.s32.totalorder %s14, 3
    %p116 = por %p114, %p115
    %p117 = scmp.ne.s32.totalorder %s106, %s107
    %p118 = scmp.eq.s32.totalorder %s14, 0
    %p119 = por %p117, %p118
    %p120 = scmp.ne.s32.totalorder %s106, %s107
    %p121 = scmp.eq.s32.totalorder %s15, 3
    %p122 = por %p120, %p121
    %p124 = scmp.ne.s32.totalorder %s107, %s123
    %p125 = scmp.eq.s32.totalorder %s15, 0
    %p126 = por %p124, %p125
    %p127 = scmp.le.s32.totalorder 1, %s9
    %p128 = scmp.lt.s32.totalorder %s9, 5
    %p129 = pnand %p127, %p128
    %p130 = pneg %p129
    // Predicated region
    $region9: #{_lambda_.5} parent=5 // pred_check
      _
    $region10: #{_lambda_.5} parent=5 // pred_check_branch
      %132 = sbr.rel (%p129) target = $region12
    $region11: #{_lambda_.5} parent=5 // pred_region
      %s133 = ssub.s32 %s9, 1
      // Predicated region
      $region13: #{_lambda_.5} parent=11 // pred_check
        %p134 = pneg %p70
      $region14: #{_lambda_.5} parent=11 // pred_check_branch
        %136 = sbr.rel (%p134) target = $region16
      $region15: #{_lambda_.5} parent=11 // pred_region
        _
      $region16: #{_lambda_.5} parent=11 // pred_fallthru
        _
      // Predicated region
      $region17: #{_lambda_.5} parent=11 // pred_check
        %p137 = pneg %p91
      $region18: #{_lambda_.5} parent=11 // pred_check_branch
        %139 = sbr.rel (%p137) target = $region20
      $region19: #{_lambda_.5} parent=11 // pred_region
        _
      $region20: #{_lambda_.5} parent=11 // pred_fallthru
        _
    $region12: #{_lambda_.5} parent=5 // pred_fallthru
      _
    %p140 = scmp.lt.s32.totalorder %s9, 4
    // Predicated region
    $region21: #{_lambda_.5} parent=5 // pred_check
      %p141 = pneg %p140
    $region22: #{_lambda_.5} parent=5 // pred_check_branch
      %143 = sbr.rel (%p141) target = $region24
    $region23: #{_lambda_.5} parent=5 // pred_region
      // Predicated region
      $region25: #{_lambda_.5} parent=23 // pred_check
        %p144 = pneg %p43
      $region26: #{_lambda_.5} parent=23 // pred_check_branch
        %146 = sbr.rel (%p144) target = $region28
      $region27: #{_lambda_.5} parent=23 // pred_region
        %s147 = smul.u32 8, %s17
        %p148 = scmp.lt.s32.totalorder %s16, 1
        %s149 = scalar_select %p148, %s16, 1
        %p150 = scmp.lt.s32.totalorder %s147, 15
        %s151 = scalar_select %p150, %s147, 15
        %s152 = smul.addr %s151, 2
        %s153 = smul.addr %s149, 32
        %s154 = sadd.s32 %s152, %s153
        %s155 = smul.addr %s154, 8
        %s156 = scalar_lea.vmem %s0, %s155
        %s157 = smul.u32 8, %s17
      $region28: #{_lambda_.5} parent=23 // pred_fallthru
        _
    $region24: #{_lambda_.5} parent=5 // pred_fallthru
      _
    %p158 = scmp.le.s32.totalorder 1, %s9
    %p159 = scmp.lt.s32.totalorder %s9, 5
    %p160 = pnand %p158, %p159
    %p161 = pneg %p160
    // Predicated region
    $region29: #{_lambda_.5} parent=5 // pred_check
      _
    $region30: #{_lambda_.5} parent=5 // pred_check_branch
      %163 = sbr.rel (%p160) target = $region32
    $region31: #{_lambda_.5} parent=5 // pred_region
      %s164 = ssub.s32 %s9, 1
      %s165 = smul.u32 8, %s19
      %p166 = scmp.lt.s32.totalorder %s18, 1
      %s167 = scalar_select %p166, %s18, 1
      %p168 = scmp.lt.s32.totalorder %s165, 15
      %s169 = scalar_select %p168, %s165, 15
      %s170 = smul.addr %s169, 2
      %s171 = smul.addr %s167, 32
      %s172 = sadd.s32 %s170, %s171
      %s173 = smul.addr %s172, 8
      %s174 = scalar_lea.vmem %s0, %s173
      %p175 = pneg %p49
      %p176 = pneg %p46
      %p177 = pneg %p70
      %p178 = pneg %p67
      %p179 = pneg %p91
      %p180 = pneg %p88
      %p181 = pneg %p119
      %p182 = pneg %p116
      %s183 = smul.u32 8, %s19
      %p184 = scmp.lt.s32.totalorder %s18, 1
      %s185 = scalar_select %p184, %s18, 1
      %p186 = scmp.lt.s32.totalorder %s183, 15
      %s187 = scalar_select %p186, %s183, 15
      %s188 = smul.addr %s187, 2
      %s189 = smul.addr %s185, 32
      %s190 = sadd.s32 %s188, %s189
      %s191 = smul.addr %s190, 8
      %s192 = scalar_lea.vmem %s3, %s191
      %s193 = smul.u32 8, %s19
      %p194 = scmp.lt.s32.totalorder %s18, 1
      %s195 = scalar_select %p194, %s18, 1
      %p196 = scmp.lt.s32.totalorder %s193, 15
      %s197 = scalar_select %p196, %s193, 15
      %s198 = smul.addr %s197, 2
      %s199 = smul.addr %s195, 32
      %s200 = sadd.s32 %s198, %s199
      %s201 = smul.addr %s200, 8
      %s202 = scalar_lea.vmem %s0, %s201
      %s203 = smul.u32 8, %s19
      %s204 = smul.u32 8, %s19
      %p205 = scmp.lt.s32.totalorder %s18, 1
      %s206 = scalar_select %p205, %s18, 1
      %p207 = scmp.lt.s32.totalorder %s204, 15
      %s208 = scalar_select %p207, %s204, 15
      %s209 = smul.addr %s208, 2
      %s210 = smul.addr %s206, 32
      %s211 = sadd.s32 %s209, %s210
      %s212 = smul.addr %s211, 8
      %s213 = scalar_lea.vmem %s3, %s212
      %s214 = smul.u32 8, %s19
      %v215 = vld [vmem:[%s202] sm:$0xff]
      %v216 = vld [vmem:[%s202 + $0x8] sm:$0xff]
      %v217 = vld [vmem:[%s202 + $0x10] sm:$0xff]
      %v218 = vld [vmem:[%s202 + $0x18] sm:$0xff]
      %v219 = vld [vmem:[%s202 + $0x20] sm:$0xff]
      %v220 = vld [vmem:[%s202 + $0x28] sm:$0xff]
      %v221 = vld [vmem:[%s202 + $0x30] sm:$0xff]
      %v222 = vld [vmem:[%s202 + $0x38] sm:$0xff]
      %v223 = vld [vmem:[%s202 + $0x40] sm:$0xff]
      %v224 = vld [vmem:[%s202 + $0x48] sm:$0xff]
      %v225 = vld [vmem:[%s202 + $0x50] sm:$0xff]
      %v226 = vld [vmem:[%s202 + $0x58] sm:$0xff]
      %v227 = vld [vmem:[%s202 + $0x60] sm:$0xff]
      %v228 = vld [vmem:[%s202 + $0x68] sm:$0xff]
      %v229 = vld [vmem:[%s202 + $0x70] sm:$0xff]
      %v230 = vld [vmem:[%s202 + $0x78] sm:$0xff]
      %v231 = vld [vmem:[%s1] sm:$0x1]
      %v232 = vld [vmem:[%s2] sm:$0x1]
      %v234 = vlaneseq
      %v235 = vshrl.u32 %v234, 7
      %v236 = vsub.s32 0, %v235
      %v237 = vrot.slane %v231, %v236
      %v239 = vmul.f32 %v215, %v237
      %v240 = vmul.f32 %v216, %v237
      %v241 = vmul.f32 %v217, %v237
      %v242 = vmul.f32 %v218, %v237
      %v243 = vmul.f32 %v219, %v237
      %v244 = vmul.f32 %v220, %v237
      %v245 = vmul.f32 %v221, %v237
      %v246 = vmul.f32 %v222, %v237
      %v247 = vmul.f32 %v223, %v237
      %v248 = vmul.f32 %v224, %v237
      %v249 = vmul.f32 %v225, %v237
      %v250 = vmul.f32 %v226, %v237
      %v251 = vmul.f32 %v227, %v237
      %v252 = vmul.f32 %v228, %v237
      %v253 = vmul.f32 %v229, %v237
      %v254 = vmul.f32 %v230, %v237
      %v256 = vlaneseq
      %v257 = vshrl.u32 %v256, 7
      %v258 = vsub.s32 0, %v257
      %v259 = vrot.slane %v232, %v258
      %v261 = vadd.f32 %v239, %v259
      %v262 = vadd.f32 %v240, %v259
      %v263 = vadd.f32 %v241, %v259
      %v264 = vadd.f32 %v242, %v259
      %v265 = vadd.f32 %v243, %v259
      %v266 = vadd.f32 %v244, %v259
      %v267 = vadd.f32 %v245, %v259
      %v268 = vadd.f32 %v246, %v259
      %v269 = vadd.f32 %v247, %v259
      %v270 = vadd.f32 %v248, %v259
      %v271 = vadd.f32 %v249, %v259
      %v272 = vadd.f32 %v250, %v259
      %v273 = vadd.f32 %v251, %v259
      %v274 = vadd.f32 %v252, %v259
      %v275 = vadd.f32 %v253, %v259
      %v276 = vadd.f32 %v254, %v259
      %v277 = vmax.f32 %v261, 0.0
      %v278 = vmax.f32 %v262, 0.0
      %v279 = vmax.f32 %v263, 0.0
      %v280 = vmax.f32 %v264, 0.0
      %v281 = vmax.f32 %v265, 0.0
      %v282 = vmax.f32 %v266, 0.0
      %v283 = vmax.f32 %v267, 0.0
      %v284 = vmax.f32 %v268, 0.0
      %v285 = vmax.f32 %v269, 0.0
      %v286 = vmax.f32 %v270, 0.0
      %v287 = vmax.f32 %v271, 0.0
      %v288 = vmax.f32 %v272, 0.0
      %v289 = vmax.f32 %v273, 0.0
      %v290 = vmax.f32 %v274, 0.0
      %v291 = vmax.f32 %v275, 0.0
      %v292 = vmax.f32 %v276, 0.0
      %vm293 = vcmask 31744
      %294 = vst.msk [vmem:[%s213] sm:$0xff] %vm293, %v277
      %295 = vst.msk [vmem:[%s213 + $0x8] sm:$0xff] %vm293, %v278
      %296 = vst.msk [vmem:[%s213 + $0x10] sm:$0xff] %vm293, %v279
      %297 = vst.msk [vmem:[%s213 + $0x18] sm:$0xff] %vm293, %v280
      %298 = vst.msk [vmem:[%s213 + $0x20] sm:$0xff] %vm293, %v281
      %299 = vst.msk [vmem:[%s213 + $0x28] sm:$0xff] %vm293, %v282
      %300 = vst.msk [vmem:[%s213 + $0x30] sm:$0xff] %vm293, %v283
      %301 = vst.msk [vmem:[%s213 + $0x38] sm:$0xff] %vm293, %v284
      %302 = vst.msk [vmem:[%s213 + $0x40] sm:$0xff] %vm293, %v285
      %303 = vst.msk [vmem:[%s213 + $0x48] sm:$0xff] %vm293, %v286
      %304 = vst.msk [vmem:[%s213 + $0x50] sm:$0xff] %vm293, %v287
      %305 = vst.msk [vmem:[%s213 + $0x58] sm:$0xff] %vm293, %v288
      %306 = vst.msk [vmem:[%s213 + $0x60] sm:$0xff] %vm293, %v289
      %307 = vst.msk [vmem:[%s213 + $0x68] sm:$0xff] %vm293, %v290
      %308 = vst.msk [vmem:[%s213 + $0x70] sm:$0xff] %vm293, %v291
      %309 = vst.msk [vmem:[%s213 + $0x78] sm:$0xff] %vm293, %v292
      %s310 = smul.u32 8, %s19
      %p311 = scmp.lt.s32.totalorder %s18, 1
      %s312 = scalar_select %p311, %s18, 1
      %p313 = scmp.lt.s32.totalorder %s310, 15
      %s314 = scalar_select %p313, %s310, 15
      %s315 = smul.addr %s314, 2
      %s316 = smul.addr %s312, 32
      %s317 = sadd.s32 %s315, %s316
      %s318 = smul.addr %s317, 8
      %s319 = scalar_lea.vmem %s3, %s318
      // Predicated region
      $region33: #{_lambda_.5} parent=31 // pred_check
        %p320 = pneg %p116
      $region34: #{_lambda_.5} parent=31 // pred_check_branch
        %322 = sbr.rel (%p320) target = $region36
      $region35: #{_lambda_.5} parent=31 // pred_region
        %s323 = smul.u32 8, %s19
      $region36: #{_lambda_.5} parent=31 // pred_fallthru
        _
    $region32: #{_lambda_.5} parent=5 // pred_fallthru
      _
    %p324 = scmp.le.s32.totalorder 2, %s9
    // Predicated region
    $region37: #{_lambda_.5} parent=5 // pred_check
      %p325 = pneg %p324
    $region38: #{_lambda_.5} parent=5 // pred_check_branch
      %327 = sbr.rel (%p325) target = $region40
    $region39: #{_lambda_.5} parent=5 // pred_region
      %s328 = ssub.s32 %s9, 2
      // Predicated region
      $region41: #{_lambda_.5} parent=39 // pred_check
        %p329 = pneg %p122
      $region42: #{_lambda_.5} parent=39 // pred_check_branch
        %331 = sbr.rel (%p329) target = $region44
      $region43: #{_lambda_.5} parent=39 // pred_region
        %s332 = smul.u32 8, %s21
        %p333 = scmp.lt.s32.totalorder %s20, 1
        %s334 = scalar_select %p333, %s20, 1
        %p335 = scmp.lt.s32.totalorder %s332, 15
        %s336 = scalar_select %p335, %s332, 15
        %s337 = smul.addr %s336, 2
        %s338 = smul.addr %s334, 32
        %s339 = sadd.s32 %s337, %s338
        %s340 = smul.addr %s339, 8
        %s341 = scalar_lea.vmem %s3, %s340
      $region44: #{_lambda_.5} parent=39 // pred_fallthru
        _
    $region40: #{_lambda_.5} parent=5 // pred_fallthru
      _
  $region6: #{_lambda_.5} parent=0 // loop_footer
    %s13 = sadd.s32 1, %s9
  $region7: #{_lambda_.5} parent=0 // loop_footer_branch
    %8 = sbr.rel target = $region3
  $region8: #{_lambda_.5} parent=0 // loop_exit
    _

// kernel: _lambda_.3
$region0: #{_lambda_.3}
  #allocation0 [shape = 'u32[]', space=smem, size = 0x4, offset = 0x4, fixed_abs, tag = 'smem constant byte address 0x4 - core index']
  #allocation1 [shape = 'u32[144,128]{1,0:T(1,128)}', space=vmem, size = 0x12000, scoped, tag = 'internal scratch']
  #allocation2 [shape = 'f32[18,16,24]{2,1,0:T(8,128)}', space=vmem, size = 0x24000, scoped, tag = 'scratch operand']
  %s0 = inlined_call_operand.vmem [shape: f32[2,16,16,4], index: 0, kind: input, shape index: {}]
  %s1 = inlined_call_operand.vmem [shape: f32[2,16,16,4], index: 1, kind: input, shape index: {}]
  %s2 = inlined_call_operand.vmem [shape: f32[3,24,4], index: 2, kind: input, shape index: {}]
  %s3 = inlined_call_operand.vmem [shape: f32[2,16,16,4], index: 3, kind: output, shape index: {0}]
  %s4 = inlined_call_operand.vmem [shape: f32[2,1,4], index: 4, kind: output, shape index: {1}]
  %s5 = inlined_call_operand.vmem [shape: f32[2,1,4], index: 5, kind: output, shape index: {2}]
  %6 = xla_tuple %s3, %s4, %s5
  %s7 = sld [smem:[#allocation0]]
  $region65: #{_lambda_.3} parent=0
    _
  %s9 = ssub.s32 1, %s7
  %s10 = scalar_select 0, %s9, %s7
  loop: start=0, step=1, limit=6
  $region2: #{_lambda_.3} parent=0 // loop_pre_header
    _
  $region3: #{_lambda_.3} parent=0 // loop_header
    %s12 = sphi 0, %s16
    %p13 = scmp.ge.s32.totalorder %s12, 6
    %s19 = sphi 0, %s31
    %s20 = sphi 0, %s27
    %s21 = sphi 0, %s19
    %s22 = sphi 0, %s20
    %s23 = sphi 0, %s21
    %s24 = sphi 0, %s22
    %s34 = sphi 0, %s36
    %s37 = sphi 0, %s34
    %s38 = sphi 0, %s37
    %s54 = sphi 0, %s38
    %s60 = sphi 0, %s62
    %s63 = sphi 0, %s60
    %s64 = sphi 0, %s63
    %s80 = sphi 0, %s64
    %s84 = sphi 0, %s84
    %s86 = sphi 0, %s84
    %s87 = sphi 0, %s86
    %s101 = sphi 0, %s87
    %s109 = sphi 0, %s111
    %s112 = sphi 0, %s109
    %s113 = sphi 0, %s112
    %s129 = sphi 0, %s113
    %s135 = sphi 0, %s137
    %s138 = sphi 0, %s135
    %s139 = sphi 0, %s138
    %s155 = sphi 0, %s139
    %s161 = sphi 0, %s163
    %s164 = sphi 0, %s161
    %s165 = sphi 0, %s164
    %s181 = sphi 0, %s165
  $region4: #{_lambda_.3} parent=0 // loop_header_branch
    %15 = sbr.rel (%p13) target = $region8
  $region5: #{_lambda_.3} parent=0 // loop_body
    %s17 = ssub.s32 %s12, 1
    %s18 = ssub.s32 %s12, 2
    %s25 = sadd.s32 1, %s20
    %p26 = scmp.ge.s32.totalorder %s25, 2
    %s27 = scalar_select %p26, 0, %s25
    %s28 = sadd.s32 1, %s19
    %s29 = scalar_select %p26, %s28, %s19
    %p30 = scmp.ge.s32.totalorder %s29, 2
    %s31 = scalar_select %p30, 0, %s29
    %s32 = ssub.s32 %s19, %s31
    %p33 = scmp.eq.s32.totalorder %s32, 0
    %s35 = sadd.s32 %s34, 1
    %s36 = scalar_select %p33, %s34, %s35
    %p39 = pneg %p33
    %p40 = scmp.eq.s32.totalorder %s12, 3
    %p41 = por %p39, %p40
    %p42 = scmp.ne.s32.totalorder %s34, %s37
    %p43 = scmp.eq.s32.totalorder %s12, 0
    %p44 = por %p42, %p43
    %p45 = scmp.ne.s32.totalorder %s34, %s37
    %p46 = scmp.eq.s32.totalorder %s17, 3
    %p47 = por %p45, %p46
    %p48 = scmp.ne.s32.totalorder %s37, %s38
    %p49 = scmp.eq.s32.totalorder %s17, 0
    %p50 = por %p48, %p49
    %p51 = scmp.ne.s32.totalorder %s37, %s38
    %p52 = scmp.eq.s32.totalorder %s18, 3
    %p53 = por %p51, %p52
    %p55 = scmp.ne.s32.totalorder %s38, %s54
    %p56 = scmp.eq.s32.totalorder %s18, 0
    %p57 = por %p55, %p56
    %s58 = ssub.s32 %s19, %s31
    %p59 = scmp.eq.s32.totalorder %s58, 0
    %s61 = sadd.s32 %s60, 1
    %s62 = scalar_select %p59, %s60, %s61
    %p65 = pneg %p59
    %p66 = scmp.eq.s32.totalorder %s12, 3
    %p67 = por %p65, %p66
    %p68 = scmp.ne.s32.totalorder %s60, %s63
    %p69 = scmp.eq.s32.totalorder %s12, 0
    %p70 = por %p68, %p69
    %p71 = scmp.ne.s32.totalorder %s60, %s63
    %p72 = scmp.eq.s32.totalorder %s17, 3
    %p73 = por %p71, %p72
    %p74 = scmp.ne.s32.totalorder %s63, %s64
    %p75 = scmp.eq.s32.totalorder %s17, 0
    %p76 = por %p74, %p75
    %p77 = scmp.ne.s32.totalorder %s63, %s64
    %p78 = scmp.eq.s32.totalorder %s18, 3
    %p79 = por %p77, %p78
    %p81 = scmp.ne.s32.totalorder %s64, %s80
    %p82 = scmp.eq.s32.totalorder %s18, 0
    %p83 = por %p81, %p82
    %s85 = sadd.s32 %s84, 1
    %p88 = scmp.eq.s32.totalorder %s12, 3
    %p89 = scmp.ne.s32.totalorder %s84, %s86
    %p90 = scmp.eq.s32.totalorder %s12, 0
    %p91 = por %p89, %p90
    %p92 = scmp.ne.s32.totalorder %s84, %s86
    %p93 = scmp.eq.s32.totalorder %s17, 3
    %p94 = por %p92, %p93
    %p95 = scmp.ne.s32.totalorder %s86, %s87
    %p96 = scmp.eq.s32.totalorder %s17, 0
    %p97 = por %p95, %p96
    %p98 = scmp.ne.s32.totalorder %s86, %s87
    %p99 = scmp.eq.s32.totalorder %s18, 3
    %p100 = por %p98, %p99
    %p102 = scmp.ne.s32.totalorder %s87, %s101
    %p103 = scmp.eq.s32.totalorder %s18, 0
    %p104 = por %p102, %p103
    %s105 = ssub.s32 %s19, %s31
    %s106 = ssub.s32 %s20, %s27
    %s107 = sor.u32 %s105, %s106
    %p108 = scmp.eq.s32.totalorder %s107, 0
    %s110 = sadd.s32 %s109, 1
    %s111 = scalar_select %p108, %s109, %s110
    %p114 = pneg %p108
    %p115 = scmp.eq.s32.totalorder %s12, 3
    %p116 = por %p114, %p115
    %p117 = scmp.ne.s32.totalorder %s109, %s112
    %p118 = scmp.eq.s32.totalorder %s12, 0
    %p119 = por %p117, %p118
    %p120 = scmp.ne.s32.totalorder %s109, %s112
    %p121 = scmp.eq.s32.totalorder %s17, 3
    %p122 = por %p120, %p121
    %p123 = scmp.ne.s32.totalorder %s112, %s113
    %p124 = scmp.eq.s32.totalorder %s17, 0
    %p125 = por %p123, %p124
    %p126 = scmp.ne.s32.totalorder %s112, %s113
    %p127 = scmp.eq.s32.totalorder %s18, 3
    %p128 = por %p126, %p127
    %p130 = scmp.ne.s32.totalorder %s113, %s129
    %p131 = scmp.eq.s32.totalorder %s18, 0
    %p132 = por %p130, %p131
    %s133 = ssub.s32 %s19, %s31
    %p134 = scmp.eq.s32.totalorder %s133, 0
    %s136 = sadd.s32 %s135, 1
    %s137 = scalar_select %p134, %s135, %s136
    %p140 = pneg %p134
    %p141 = scmp.eq.s32.totalorder %s12, 3
    %p142 = por %p140, %p141
    %p143 = scmp.ne.s32.totalorder %s135, %s138
    %p144 = scmp.eq.s32.totalorder %s12, 0
    %p145 = por %p143, %p144
    %p146 = scmp.ne.s32.totalorder %s135, %s138
    %p147 = scmp.eq.s32.totalorder %s17, 3
    %p148 = por %p146, %p147
    %p149 = scmp.ne.s32.totalorder %s138, %s139
    %p150 = scmp.eq.s32.totalorder %s17, 0
    %p151 = por %p149, %p150
    %p152 = scmp.ne.s32.totalorder %s138, %s139
    %p153 = scmp.eq.s32.totalorder %s18, 3
    %p154 = por %p152, %p153
    %p156 = scmp.ne.s32.totalorder %s139, %s155
    %p157 = scmp.eq.s32.totalorder %s18, 0
    %p158 = por %p156, %p157
    %s159 = ssub.s32 %s19, %s31
    %p160 = scmp.eq.s32.totalorder %s159, 0
    %s162 = sadd.s32 %s161, 1
    %s163 = scalar_select %p160, %s161, %s162
    %p166 = pneg %p160
    %p167 = scmp.eq.s32.totalorder %s12, 3
    %p168 = por %p166, %p167
    %p169 = scmp.ne.s32.totalorder %s161, %s164
    %p170 = scmp.eq.s32.totalorder %s12, 0
    %p171 = por %p169, %p170
    %p172 = scmp.ne.s32.totalorder %s161, %s164
    %p173 = scmp.eq.s32.totalorder %s17, 3
    %p174 = por %p172, %p173
    %p175 = scmp.ne.s32.totalorder %s164, %s165
    %p176 = scmp.eq.s32.totalorder %s17, 0
    %p177 = por %p175, %p176
    %p178 = scmp.ne.s32.totalorder %s164, %s165
    %p179 = scmp.eq.s32.totalorder %s18, 3
    %p180 = por %p178, %p179
    %p182 = scmp.ne.s32.totalorder %s165, %s181
    %p183 = scmp.eq.s32.totalorder %s18, 0
    %p184 = por %p182, %p183
    %p185 = scmp.le.s32.totalorder 1, %s12
    %p186 = scmp.lt.s32.totalorder %s12, 5
    %p187 = pnand %p185, %p186
    %p188 = pneg %p187
    // Predicated region
    $region9: #{_lambda_.3} parent=5 // pred_check
      _
    $region10: #{_lambda_.3} parent=5 // pred_check_branch
      %190 = sbr.rel (%p187) target = $region12
    $region11: #{_lambda_.3} parent=5 // pred_region
      %s191 = ssub.s32 %s12, 1
      // Predicated region
      $region13: #{_lambda_.3} parent=11 // pred_check
        %p192 = pneg %p97
      $region14: #{_lambda_.3} parent=11 // pred_check_branch
        %194 = sbr.rel (%p192) target = $region16
      $region15: #{_lambda_.3} parent=11 // pred_region
        _
      $region16: #{_lambda_.3} parent=11 // pred_fallthru
        _
    $region12: #{_lambda_.3} parent=5 // pred_fallthru
      _
    %p195 = scmp.lt.s32.totalorder %s12, 4
    // Predicated region
    $region17: #{_lambda_.3} parent=5 // pred_check
      %p196 = pneg %p195
    $region18: #{_lambda_.3} parent=5 // pred_check_branch
      %198 = sbr.rel (%p196) target = $region20
    $region19: #{_lambda_.3} parent=5 // pred_region
      // Predicated region
      $region21: #{_lambda_.3} parent=19 // pred_check
        %p199 = pneg %p44
      $region22: #{_lambda_.3} parent=19 // pred_check_branch
        %201 = sbr.rel (%p199) target = $region24
      $region23: #{_lambda_.3} parent=19 // pred_region
        %p202 = scmp.lt.s32.totalorder %s19, 1
        %s203 = scalar_select %p202, %s19, 1
        %s204 = smul.addr %s203, 32
        %s205 = smul.addr %s204, 8
        %s206 = scalar_lea.vmem %s0, %s205
      $region24: #{_lambda_.3} parent=19 // pred_fallthru
        _
      // Predicated region
      $region25: #{_lambda_.3} parent=19 // pred_check
        %p207 = pneg %p70
      $region26: #{_lambda_.3} parent=19 // pred_check_branch
        %209 = sbr.rel (%p207) target = $region28
      $region27: #{_lambda_.3} parent=19 // pred_region
        %p210 = scmp.lt.s32.totalorder %s19, 1
        %s211 = scalar_select %p210, %s19, 1
        %s212 = smul.addr %s211, 32
        %s213 = smul.addr %s212, 8
        %s214 = scalar_lea.vmem %s1, %s213
      $region28: #{_lambda_.3} parent=19 // pred_fallthru
        _
    $region20: #{_lambda_.3} parent=5 // pred_fallthru
      _
    %p215 = scmp.le.s32.totalorder 1, %s12
    %p216 = scmp.lt.s32.totalorder %s12, 5
    %p217 = pnand %p215, %p216
    %p218 = pneg %p217
    // Predicated region
    $region29: #{_lambda_.3} parent=5 // pred_check
      _
    $region30: #{_lambda_.3} parent=5 // pred_check_branch
      %220 = sbr.rel (%p217) target = $region32
    $region31: #{_lambda_.3} parent=5 // pred_region
      %s221 = ssub.s32 %s12, 1
      %p222 = scmp.lt.s32.totalorder %s21, 1
      %s223 = scalar_select %p222, %s21, 1
      %s224 = smul.addr %s223, 32
      %s225 = smul.addr %s224, 8
      %s226 = scalar_lea.vmem %s0, %s225
      %p227 = pneg %p50
      %p228 = pneg %p47
      %p229 = scmp.lt.s32.totalorder %s21, 1
      %s230 = scalar_select %p229, %s21, 1
      %s231 = smul.addr %s230, 32
      %s232 = smul.addr %s231, 8
      %s233 = scalar_lea.vmem %s1, %s232
      %p234 = pneg %p76
      %p235 = pneg %p73
      %p236 = pneg %p97
      %p237 = pneg %p94
      %p238 = pneg %p125
      %p239 = pneg %p122
      %s240 = smul.u32 8, %s22
      %p241 = scmp.lt.s32.totalorder %s21, 1
      %s242 = scalar_select %p241, %s21, 1
      %p243 = scmp.lt.s32.totalorder %s240, 15
      %s244 = scalar_select %p243, %s240, 15
      %s245 = smul.addr %s244, 2
      %s246 = smul.addr %s242, 32
      %s247 = sadd.s32 %s245, %s246
      %s248 = smul.addr %s247, 8
      %s249 = scalar_lea.vmem %s3, %s248
      %p250 = pneg %p151
      %p251 = pneg %p148
      %p252 = scmp.lt.s32.totalorder %s21, 1
      %s253 = scalar_select %p252, %s21, 1
      %s254 = scalar_lea.vmem %s4, %s253
      %p255 = pneg %p177
      %p256 = pneg %p174
      %p257 = scmp.lt.s32.totalorder %s21, 1
      %s258 = scalar_select %p257, %s21, 1
      %s259 = scalar_lea.vmem %s5, %s258
      %p260 = scmp.lt.s32.totalorder %s21, 1
      %s261 = scalar_select %p260, %s21, 1
      %s262 = smul.addr %s261, 32
      %s263 = smul.addr %s262, 8
      %s264 = scalar_lea.vmem %s0, %s263
      %p265 = scmp.lt.s32.totalorder %s21, 1
      %s266 = scalar_select %p265, %s21, 1
      %s267 = smul.addr %s266, 32
      %s268 = smul.addr %s267, 8
      %s269 = scalar_lea.vmem %s1, %s268
      %s270 = smul.u32 8, %s22
      %p271 = scmp.lt.s32.totalorder %s21, 1
      %s272 = scalar_select %p271, %s21, 1
      %p273 = scmp.lt.s32.totalorder %s270, 15
      %s274 = scalar_select %p273, %s270, 15
      %s275 = smul.addr %s274, 2
      %s276 = smul.addr %s272, 32
      %s277 = sadd.s32 %s275, %s276
      %s278 = smul.addr %s277, 8
      %s279 = scalar_lea.vmem %s3, %s278
      %s280 = smul.u32 8, %s22
      %p281 = scmp.lt.s32.totalorder %s21, 1
      %s282 = scalar_select %p281, %s21, 1
      %s283 = scalar_lea.vmem %s4, %s282
      %p284 = scmp.lt.s32.totalorder %s21, 1
      %s285 = scalar_select %p284, %s21, 1
      %s286 = scalar_lea.vmem %s5, %s285
      %p287 = scmp.eq.s32.totalorder %s22, 0
      // Predicated region
      $region33: #{_lambda_.3} parent=31 // pred_check
        %p288 = pneg %p287
      $region34: #{_lambda_.3} parent=31 // pred_check_branch
        %290 = sbr.rel (%p288) target = $region36
      $region35: #{_lambda_.3} parent=31 // pred_region
        %v291 = vld [vmem:[%s264] sm:$0xff]
        %v292 = vld [vmem:[%s264 + $0x8] sm:$0xff]
        %v293 = vld [vmem:[%s264 + $0x10] sm:$0xff]
        %v294 = vld [vmem:[%s264 + $0x18] sm:$0xff]
        %v295 = vld [vmem:[%s264 + $0x20] sm:$0xff]
        %v296 = vld [vmem:[%s264 + $0x28] sm:$0xff]
        %v297 = vld [vmem:[%s264 + $0x30] sm:$0xff]
        %v298 = vld [vmem:[%s264 + $0x38] sm:$0xff]
        %v299 = vld [vmem:[%s264 + $0x40] sm:$0xff]
        %v300 = vld [vmem:[%s264 + $0x48] sm:$0xff]
        %v301 = vld [vmem:[%s264 + $0x50] sm:$0xff]
        %v302 = vld [vmem:[%s264 + $0x58] sm:$0xff]
        %v303 = vld [vmem:[%s264 + $0x60] sm:$0xff]
        %v304 = vld [vmem:[%s264 + $0x68] sm:$0xff]
        %v305 = vld [vmem:[%s264 + $0x70] sm:$0xff]
        %v306 = vld [vmem:[%s264 + $0x78] sm:$0xff]
        %v307 = vld [vmem:[%s264 + $0x80] sm:$0xff]
        %v308 = vld [vmem:[%s264 + $0x88] sm:$0xff]
        %v309 = vld [vmem:[%s264 + $0x90] sm:$0xff]
        %v310 = vld [vmem:[%s264 + $0x98] sm:$0xff]
        %v311 = vld [vmem:[%s264 + $0xa0] sm:$0xff]
        %v312 = vld [vmem:[%s264 + $0xa8] sm:$0xff]
        %v313 = vld [vmem:[%s264 + $0xb0] sm:$0xff]
        %v314 = vld [vmem:[%s264 + $0xb8] sm:$0xff]
        %v315 = vld [vmem:[%s264 + $0xc0] sm:$0xff]
        %v316 = vld [vmem:[%s264 + $0xc8] sm:$0xff]
        %v317 = vld [vmem:[%s264 + $0xd0] sm:$0xff]
        %v318 = vld [vmem:[%s264 + $0xd8] sm:$0xff]
        %v319 = vld [vmem:[%s264 + $0xe0] sm:$0xff]
        %v320 = vld [vmem:[%s264 + $0xe8] sm:$0xff]
        %v321 = vld [vmem:[%s264 + $0xf0] sm:$0xff]
        %v322 = vld [vmem:[%s264 + $0xf8] sm:$0xff]
        %v323 = vld [vmem:[%s269] sm:$0xff]
        %v324 = vld [vmem:[%s269 + $0x8] sm:$0xff]
        %v325 = vld [vmem:[%s269 + $0x10] sm:$0xff]
        %v326 = vld [vmem:[%s269 + $0x18] sm:$0xff]
        %v327 = vld [vmem:[%s269 + $0x20] sm:$0xff]
        %v328 = vld [vmem:[%s269 + $0x28] sm:$0xff]
        %v329 = vld [vmem:[%s269 + $0x30] sm:$0xff]
        %v330 = vld [vmem:[%s269 + $0x38] sm:$0xff]
        %v331 = vld [vmem:[%s269 + $0x40] sm:$0xff]
        %v332 = vld [vmem:[%s269 + $0x48] sm:$0xff]
        %v333 = vld [vmem:[%s269 + $0x50] sm:$0xff]
        %v334 = vld [vmem:[%s269 + $0x58] sm:$0xff]
        %v335 = vld [vmem:[%s269 + $0x60] sm:$0xff]
        %v336 = vld [vmem:[%s269 + $0x68] sm:$0xff]
        %v337 = vld [vmem:[%s269 + $0x70] sm:$0xff]
        %v338 = vld [vmem:[%s269 + $0x78] sm:$0xff]
        %v339 = vld [vmem:[%s269 + $0x80] sm:$0xff]
        %v340 = vld [vmem:[%s269 + $0x88] sm:$0xff]
        %v341 = vld [vmem:[%s269 + $0x90] sm:$0xff]
        %v342 = vld [vmem:[%s269 + $0x98] sm:$0xff]
        %v343 = vld [vmem:[%s269 + $0xa0] sm:$0xff]
        %v344 = vld [vmem:[%s269 + $0xa8] sm:$0xff]
        %v345 = vld [vmem:[%s269 + $0xb0] sm:$0xff]
        %v346 = vld [vmem:[%s269 + $0xb8] sm:$0xff]
        %v347 = vld [vmem:[%s269 + $0xc0] sm:$0xff]
        %v348 = vld [vmem:[%s269 + $0xc8] sm:$0xff]
        %v349 = vld [vmem:[%s269 + $0xd0] sm:$0xff]
        %v350 = vld [vmem:[%s269 + $0xd8] sm:$0xff]
        %v351 = vld [vmem:[%s269 + $0xe0] sm:$0xff]
        %v352 = vld [vmem:[%s269 + $0xe8] sm:$0xff]
        %v353 = vld [vmem:[%s269 + $0xf0] sm:$0xff]
        %v354 = vld [vmem:[%s269 + $0xf8] sm:$0xff]
        %387 = vrot.lane.b32.xlu0 %v323, 4
        %v388 = vpop.permute.xlu0 %387
        %389 = vrot.lane.b32.xlu0 %v324, 4
        %v390 = vpop.permute.xlu0 %389
        %391 = vrot.lane.b32.xlu0 %v325, 4
        %v392 = vpop.permute.xlu0 %391
        %393 = vrot.lane.b32.xlu0 %v326, 4
        %v394 = vpop.permute.xlu0 %393
        %395 = vrot.lane.b32.xlu0 %v327, 4
        %v396 = vpop.permute.xlu0 %395
        %397 = vrot.lane.b32.xlu0 %v328, 4
        %v398 = vpop.permute.xlu0 %397
        %399 = vrot.lane.b32.xlu0 %v329, 4
        %v400 = vpop.permute.xlu0 %399
        %401 = vrot.lane.b32.xlu0 %v330, 4
        %v402 = vpop.permute.xlu0 %401
        %403 = vrot.lane.b32.xlu0 %v331, 4
        %v404 = vpop.permute.xlu0 %403
        %405 = vrot.lane.b32.xlu0 %v332, 4
        %v406 = vpop.permute.xlu0 %405
        %407 = vrot.lane.b32.xlu0 %v333, 4
        %v408 = vpop.permute.xlu0 %407
        %409 = vrot.lane.b32.xlu0 %v334, 4
        %v410 = vpop.permute.xlu0 %409
        %411 = vrot.lane.b32.xlu0 %v335, 4
        %v412 = vpop.permute.xlu0 %411
        %413 = vrot.lane.b32.xlu0 %v336, 4
        %v414 = vpop.permute.xlu0 %413
        %415 = vrot.lane.b32.xlu0 %v337, 4
        %v416 = vpop.permute.xlu0 %415
        %417 = vrot.lane.b32.xlu0 %v338, 4
        %v418 = vpop.permute.xlu0 %417
        %419 = vrot.lane.b32.xlu0 %v339, 4
        %v420 = vpop.permute.xlu0 %419
        %421 = vrot.lane.b32.xlu0 %v340, 4
        %v422 = vpop.permute.xlu0 %421
        %423 = vrot.lane.b32.xlu0 %v341, 4
        %v424 = vpop.permute.xlu0 %423
        %425 = vrot.lane.b32.xlu0 %v342, 4
        %v426 = vpop.permute.xlu0 %425
        %427 = vrot.lane.b32.xlu0 %v343, 4
        %v428 = vpop.permute.xlu0 %427
        %429 = vrot.lane.b32.xlu0 %v344, 4
        %v430 = vpop.permute.xlu0 %429
        %431 = vrot.lane.b32.xlu0 %v345, 4
        %v432 = vpop.permute.xlu0 %431
        %433 = vrot.lane.b32.xlu0 %v346, 4
        %v434 = vpop.permute.xlu0 %433
        %435 = vrot.lane.b32.xlu0 %v347, 4
        %v436 = vpop.permute.xlu0 %435
        %437 = vrot.lane.b32.xlu0 %v348, 4
        %v438 = vpop.permute.xlu0 %437
        %439 = vrot.lane.b32.xlu0 %v349, 4
        %v440 = vpop.permute.xlu0 %439
        %441 = vrot.lane.b32.xlu0 %v350, 4
        %v442 = vpop.permute.xlu0 %441
        %443 = vrot.lane.b32.xlu0 %v351, 4
        %v444 = vpop.permute.xlu0 %443
        %445 = vrot.lane.b32.xlu0 %v352, 4
        %v446 = vpop.permute.xlu0 %445
        %447 = vrot.lane.b32.xlu0 %v353, 4
        %v448 = vpop.permute.xlu0 %447
        %449 = vrot.lane.b32.xlu0 %v354, 4
        %v450 = vpop.permute.xlu0 %449
        %vm483 = vcmask 31744
        %v484 = vsel %vm483, %v291, %v388
        %v485 = vsel %vm483, %v292, %v390
        %v486 = vsel %vm483, %v293, %v392
        %v487 = vsel %vm483, %v294, %v394
        %v488 = vsel %vm483, %v295, %v396
        %v489 = vsel %vm483, %v296, %v398
        %v490 = vsel %vm483, %v297, %v400
        %v491 = vsel %vm483, %v298, %v402
        %v492 = vsel %vm483, %v299, %v404
        %v493 = vsel %vm483, %v300, %v406
        %v494 = vsel %vm483, %v301, %v408
        %v495 = vsel %vm483, %v302, %v410
        %v496 = vsel %vm483, %v303, %v412
        %v497 = vsel %vm483, %v304, %v414
        %v498 = vsel %vm483, %v305, %v416
        %v499 = vsel %vm483, %v306, %v418
        %v500 = vsel %vm483, %v307, %v420
        %v501 = vsel %vm483, %v308, %v422
        %v502 = vsel %vm483, %v309, %v424
        %v503 = vsel %vm483, %v310, %v426
        %v504 = vsel %vm483, %v311, %v428
        %v505 = vsel %vm483, %v312, %v430
        %v506 = vsel %vm483, %v313, %v432
        %v507 = vsel %vm483, %v314, %v434
        %v508 = vsel %vm483, %v315, %v436
        %v509 = vsel %vm483, %v316, %v438
        %v510 = vsel %vm483, %v317, %v440
        %v511 = vsel %vm483, %v318, %v442
        %v512 = vsel %vm483, %v319, %v444
        %v513 = vsel %vm483, %v320, %v446
        %v514 = vsel %vm483, %v321, %v448
        %v515 = vsel %vm483, %v322, %v450
        %vm548 = vcmask 1040384
        %v549 = vrot.slane %v484, 7
        %v550 = vrot.slane %v485, 7
        %v551 = vsel %vm548, %v549, %v550
        %v552 = vrot.slane %v486, 7
        %v553 = vrot.slane %v487, 7
        %v554 = vsel %vm548, %v552, %v553
        %v555 = vrot.slane %v488, 7
        %v556 = vrot.slane %v489, 7
        %v557 = vsel %vm548, %v555, %v556
        %v558 = vrot.slane %v490, 7
        %v559 = vrot.slane %v491, 7
        %v560 = vsel %vm548, %v558, %v559
        %v561 = vrot.slane %v492, 7
        %v562 = vrot.slane %v493, 7
        %v563 = vsel %vm548, %v561, %v562
        %v564 = vrot.slane %v494, 7
        %v565 = vrot.slane %v495, 7
        %v566 = vsel %vm548, %v564, %v565
        %v567 = vrot.slane %v496, 7
        %v568 = vrot.slane %v497, 7
        %v569 = vsel %vm548, %v567, %v568
        %v570 = vrot.slane %v498, 7
        %v571 = vrot.slane %v499, 7
        %v572 = vsel %vm548, %v570, %v571
        %v573 = vrot.slane %v500, 7
        %v574 = vrot.slane %v501, 7
        %v575 = vsel %vm548, %v573, %v574
        %v576 = vrot.slane %v502, 7
        %v577 = vrot.slane %v503, 7
        %v578 = vsel %vm548, %v576, %v577
        %v579 = vrot.slane %v504, 7
        %v580 = vrot.slane %v505, 7
        %v581 = vsel %vm548, %v579, %v580
        %v582 = vrot.slane %v506, 7
        %v583 = vrot.slane %v507, 7
        %v584 = vsel %vm548, %v582, %v583
        %v585 = vrot.slane %v508, 7
        %v586 = vrot.slane %v509, 7
        %v587 = vsel %vm548, %v585, %v586
        %v588 = vrot.slane %v510, 7
        %v589 = vrot.slane %v511, 7
        %v590 = vsel %vm548, %v588, %v589
        %v591 = vrot.slane %v512, 7
        %v592 = vrot.slane %v513, 7
        %v593 = vsel %vm548, %v591, %v592
        %v594 = vrot.slane %v514, 7
        %v595 = vrot.slane %v515, 7
        %v596 = vsel %vm548, %v594, %v595
        %v629 = vsel %vm548, 0.0, %v549
        %v630 = vsel %vm548, 0.0, %v552
        %v631 = vsel %vm548, 0.0, %v555
        %v632 = vsel %vm548, 0.0, %v558
        %v633 = vsel %vm548, 0.0, %v561
        %v634 = vsel %vm548, 0.0, %v564
        %v635 = vsel %vm548, 0.0, %v567
        %v636 = vsel %vm548, 0.0, %v570
        %v637 = vsel %vm548, 0.0, %v573
        %v638 = vsel %vm548, 0.0, %v576
        %v639 = vsel %vm548, 0.0, %v579
        %v640 = vsel %vm548, 0.0, %v582
        %v641 = vsel %vm548, 0.0, %v585
        %v642 = vsel %vm548, 0.0, %v588
        %v643 = vsel %vm548, 0.0, %v591
        %v644 = vsel %vm548, 0.0, %v594
        %vm645 = vcmask 1046528
        %v646 = vrot.slane %v484, 1
        %v647 = vrot.slane %v485, 1
        %v648 = vsel %vm645, %v646, %v647
        %v649 = vrot.slane %v486, 1
        %v650 = vrot.slane %v487, 1
        %v651 = vsel %vm645, %v649, %v650
        %v652 = vrot.slane %v488, 1
        %v653 = vrot.slane %v489, 1
        %v654 = vsel %vm645, %v652, %v653
        %v655 = vrot.slane %v490, 1
        %v656 = vrot.slane %v491, 1
        %v657 = vsel %vm645, %v655, %v656
        %v658 = vrot.slane %v492, 1
        %v659 = vrot.slane %v493, 1
        %v660 = vsel %vm645, %v658, %v659
        %v661 = vrot.slane %v494, 1
        %v662 = vrot.slane %v495, 1
        %v663 = vsel %vm645, %v661, %v662
        %v664 = vrot.slane %v496, 1
        %v665 = vrot.slane %v497, 1
        %v666 = vsel %vm645, %v664, %v665
        %v667 = vrot.slane %v498, 1
        %v668 = vrot.slane %v499, 1
        %v669 = vsel %vm645, %v667, %v668
        %v670 = vrot.slane %v500, 1
        %v671 = vrot.slane %v501, 1
        %v672 = vsel %vm645, %v670, %v671
        %v673 = vrot.slane %v502, 1
        %v674 = vrot.slane %v503, 1
        %v675 = vsel %vm645, %v673, %v674
        %v676 = vrot.slane %v504, 1
        %v677 = vrot.slane %v505, 1
        %v678 = vsel %vm645, %v676, %v677
        %v679 = vrot.slane %v506, 1
        %v680 = vrot.slane %v507, 1
        %v681 = vsel %vm645, %v679, %v680
        %v682 = vrot.slane %v508, 1
        %v683 = vrot.slane %v509, 1
        %v684 = vsel %vm645, %v682, %v683
        %v685 = vrot.slane %v510, 1
        %v686 = vrot.slane %v511, 1
        %v687 = vsel %vm645, %v685, %v686
        %v688 = vrot.slane %v512, 1
        %v689 = vrot.slane %v513, 1
        %v690 = vsel %vm645, %v688, %v689
        %v691 = vrot.slane %v514, 1
        %v692 = vrot.slane %v515, 1
        %v693 = vsel %vm645, %v691, %v692
        %v710 = vsel %vm645, %v647, 0.0
        %v711 = vsel %vm645, %v650, 0.0
        %v712 = vsel %vm645, %v653, 0.0
        %v713 = vsel %vm645, %v656, 0.0
        %v714 = vsel %vm645, %v659, 0.0
        %v715 = vsel %vm645, %v662, 0.0
        %v716 = vsel %vm645, %v665, 0.0
        %v717 = vsel %vm645, %v668, 0.0
        %v718 = vsel %vm645, %v671, 0.0
        %v719 = vsel %vm645, %v674, 0.0
        %v720 = vsel %vm645, %v677, 0.0
        %v721 = vsel %vm645, %v680, 0.0
        %v722 = vsel %vm645, %v683, 0.0
        %v723 = vsel %vm645, %v686, 0.0
        %v724 = vsel %vm645, %v689, 0.0
        %v725 = vsel %vm645, %v692, 0.0
        %726 = vrot.lane.b32.xlu0 %v484, 8
        %v727 = vpop.permute.xlu0 %726
        %728 = vrot.lane.b32.xlu0 %v485, 8
        %v729 = vpop.permute.xlu0 %728
        %730 = vrot.lane.b32.xlu0 %v486, 8
        %v731 = vpop.permute.xlu0 %730
        %732 = vrot.lane.b32.xlu0 %v487, 8
        %v733 = vpop.permute.xlu0 %732
        %734 = vrot.lane.b32.xlu0 %v488, 8
        %v735 = vpop.permute.xlu0 %734
        %736 = vrot.lane.b32.xlu0 %v489, 8
        %v737 = vpop.permute.xlu0 %736
        %738 = vrot.lane.b32.xlu0 %v490, 8
        %v739 = vpop.permute.xlu0 %738
        %740 = vrot.lane.b32.xlu0 %v491, 8
        %v741 = vpop.permute.xlu0 %740
        %742 = vrot.lane.b32.xlu0 %v492, 8
        %v743 = vpop.permute.xlu0 %742
        %744 = vrot.lane.b32.xlu0 %v493, 8
        %v745 = vpop.permute.xlu0 %744
        %746 = vrot.lane.b32.xlu0 %v494, 8
        %v747 = vpop.permute.xlu0 %746
        %748 = vrot.lane.b32.xlu0 %v495, 8
        %v749 = vpop.permute.xlu0 %748
        %750 = vrot.lane.b32.xlu0 %v496, 8
        %v751 = vpop.permute.xlu0 %750
        %752 = vrot.lane.b32.xlu0 %v497, 8
        %v753 = vpop.permute.xlu0 %752
        %754 = vrot.lane.b32.xlu0 %v498, 8
        %v755 = vpop.permute.xlu0 %754
        %756 = vrot.lane.b32.xlu0 %v499, 8
        %v757 = vpop.permute.xlu0 %756
        %758 = vrot.lane.b32.xlu0 %v500, 8
        %v759 = vpop.permute.xlu0 %758
        %760 = vrot.lane.b32.xlu0 %v501, 8
        %v761 = vpop.permute.xlu0 %760
        %762 = vrot.lane.b32.xlu0 %v502, 8
        %v763 = vpop.permute.xlu0 %762
        %764 = vrot.lane.b32.xlu0 %v503, 8
        %v765 = vpop.permute.xlu0 %764
        %766 = vrot.lane.b32.xlu0 %v504, 8
        %v767 = vpop.permute.xlu0 %766
        %768 = vrot.lane.b32.xlu0 %v505, 8
        %v769 = vpop.permute.xlu0 %768
        %770 = vrot.lane.b32.xlu0 %v506, 8
        %v771 = vpop.permute.xlu0 %770
        %772 = vrot.lane.b32.xlu0 %v507, 8
        %v773 = vpop.permute.xlu0 %772
        %774 = vrot.lane.b32.xlu0 %v508, 8
        %v775 = vpop.permute.xlu0 %774
        %776 = vrot.lane.b32.xlu0 %v509, 8
        %v777 = vpop.permute.xlu0 %776
        %778 = vrot.lane.b32.xlu0 %v510, 8
        %v779 = vpop.permute.xlu0 %778
        %780 = vrot.lane.b32.xlu0 %v511, 8
        %v781 = vpop.permute.xlu0 %780
        %782 = vrot.lane.b32.xlu0 %v512, 8
        %v783 = vpop.permute.xlu0 %782
        %784 = vrot.lane.b32.xlu0 %v513, 8
        %v785 = vpop.permute.xlu0 %784
        %786 = vrot.lane.b32.xlu0 %v514, 8
        %v787 = vpop.permute.xlu0 %786
        %788 = vrot.lane.b32.xlu0 %v515, 8
        %v789 = vpop.permute.xlu0 %788
        %838 = vrot.lane.b32.xlu0 %v648, 16
        %v839 = vpop.permute.xlu0 %838
        %840 = vrot.lane.b32.xlu0 %v710, 16
        %v841 = vpop.permute.xlu0 %840
        %842 = vrot.lane.b32.xlu0 %v651, 16
        %v843 = vpop.permute.xlu0 %842
        %844 = vrot.lane.b32.xlu0 %v711, 16
        %v845 = vpop.permute.xlu0 %844
        %846 = vrot.lane.b32.xlu0 %v654, 16
        %v847 = vpop.permute.xlu0 %846
        %848 = vrot.lane.b32.xlu0 %v712, 16
        %v849 = vpop.permute.xlu0 %848
        %850 = vrot.lane.b32.xlu0 %v657, 16
        %v851 = vpop.permute.xlu0 %850
        %852 = vrot.lane.b32.xlu0 %v713, 16
        %v853 = vpop.permute.xlu0 %852
        %854 = vrot.lane.b32.xlu0 %v660, 16
        %v855 = vpop.permute.xlu0 %854
        %856 = vrot.lane.b32.xlu0 %v714, 16
        %v857 = vpop.permute.xlu0 %856
        %858 = vrot.lane.b32.xlu0 %v663, 16
        %v859 = vpop.permute.xlu0 %858
        %860 = vrot.lane.b32.xlu0 %v715, 16
        %v861 = vpop.permute.xlu0 %860
        %862 = vrot.lane.b32.xlu0 %v666, 16
        %v863 = vpop.permute.xlu0 %862
        %864 = vrot.lane.b32.xlu0 %v716, 16
        %v865 = vpop.permute.xlu0 %864
        %866 = vrot.lane.b32.xlu0 %v669, 16
        %v867 = vpop.permute.xlu0 %866
        %868 = vrot.lane.b32.xlu0 %v717, 16
        %v869 = vpop.permute.xlu0 %868
        %870 = vrot.lane.b32.xlu0 %v672, 16
        %v871 = vpop.permute.xlu0 %870
        %872 = vrot.lane.b32.xlu0 %v718, 16
        %v873 = vpop.permute.xlu0 %872
        %874 = vrot.lane.b32.xlu0 %v675, 16
        %v875 = vpop.permute.xlu0 %874
        %876 = vrot.lane.b32.xlu0 %v719, 16
        %v877 = vpop.permute.xlu0 %876
        %878 = vrot.lane.b32.xlu0 %v678, 16
        %v879 = vpop.permute.xlu0 %878
        %880 = vrot.lane.b32.xlu0 %v720, 16
        %v881 = vpop.permute.xlu0 %880
        %882 = vrot.lane.b32.xlu0 %v681, 16
        %v883 = vpop.permute.xlu0 %882
        %884 = vrot.lane.b32.xlu0 %v721, 16
        %v885 = vpop.permute.xlu0 %884
        %886 = vrot.lane.b32.xlu0 %v684, 16
        %v887 = vpop.permute.xlu0 %886
        %888 = vrot.lane.b32.xlu0 %v722, 16
        %v889 = vpop.permute.xlu0 %888
        %890 = vrot.lane.b32.xlu0 %v687, 16
        %v891 = vpop.permute.xlu0 %890
        %892 = vrot.lane.b32.xlu0 %v723, 16
        %v893 = vpop.permute.xlu0 %892
        %894 = vrot.lane.b32.xlu0 %v690, 16
        %v895 = vpop.permute.xlu0 %894
        %896 = vrot.lane.b32.xlu0 %v724, 16
        %v897 = vpop.permute.xlu0 %896
        %898 = vrot.lane.b32.xlu0 %v693, 16
        %v899 = vpop.permute.xlu0 %898
        %900 = vrot.lane.b32.xlu0 %v725, 16
        %v901 = vpop.permute.xlu0 %900
        %vm934 = vcmask 64512
        %v935 = vsel %vm934, %v629, %v727
        %v936 = vsel %vm934, %v551, %v729
        %v937 = vsel %vm934, %v630, %v731
        %v938 = vsel %vm934, %v554, %v733
        %v939 = vsel %vm934, %v631, %v735
        %v940 = vsel %vm934, %v557, %v737
        %v941 = vsel %vm934, %v632, %v739
        %v942 = vsel %vm934, %v560, %v741
        %v943 = vsel %vm934, %v633, %v743
        %v944 = vsel %vm934, %v563, %v745
        %v945 = vsel %vm934, %v634, %v747
        %v946 = vsel %vm934, %v566, %v749
        %v947 = vsel %vm934, %v635, %v751
        %v948 = vsel %vm934, %v569, %v753
        %v949 = vsel %vm934, %v636, %v755
        %v950 = vsel %vm934, %v572, %v757
        %v951 = vsel %vm934, %v637, %v759
        %v952 = vsel %vm934, %v575, %v761
        %v953 = vsel %vm934, %v638, %v763
        %v954 = vsel %vm934, %v578, %v765
        %v955 = vsel %vm934, %v639, %v767
        %v956 = vsel %vm934, %v581, %v769
        %v957 = vsel %vm934, %v640, %v771
        %v958 = vsel %vm934, %v584, %v773
        %v959 = vsel %vm934, %v641, %v775
        %v960 = vsel %vm934, %v587, %v777
        %v961 = vsel %vm934, %v642, %v779
        %v962 = vsel %vm934, %v590, %v781
        %v963 = vsel %vm934, %v643, %v783
        %v964 = vsel %vm934, %v593, %v785
        %v965 = vsel %vm934, %v644, %v787
        %v966 = vsel %vm934, %v596, %v789
        %vm967 = vcmask 130048
        %v968 = vsel %vm967, %v935, %v839
        %v969 = vsel %vm967, %v936, %v841
        %v970 = vsel %vm967, %v937, %v843
        %v971 = vsel %vm967, %v938, %v845
        %v972 = vsel %vm967, %v939, %v847
        %v973 = vsel %vm967, %v940, %v849
        %v974 = vsel %vm967, %v941, %v851
        %v975 = vsel %vm967, %v942, %v853
        %v976 = vsel %vm967, %v943, %v855
        %v977 = vsel %vm967, %v944, %v857
        %v978 = vsel %vm967, %v945, %v859
        %v979 = vsel %vm967, %v946, %v861
        %v980 = vsel %vm967, %v947, %v863
        %v981 = vsel %vm967, %v948, %v865
        %v982 = vsel %vm967, %v949, %v867
        %v983 = vsel %vm967, %v950, %v869
        %v984 = vsel %vm967, %v951, %v871
        %v985 = vsel %vm967, %v952, %v873
        %v986 = vsel %vm967, %v953, %v875
        %v987 = vsel %vm967, %v954, %v877
        %v988 = vsel %vm967, %v955, %v879
        %v989 = vsel %vm967, %v956, %v881
        %v990 = vsel %vm967, %v957, %v883
        %v991 = vsel %vm967, %v958, %v885
        %v992 = vsel %vm967, %v959, %v887
        %v993 = vsel %vm967, %v960, %v889
        %v994 = vsel %vm967, %v961, %v891
        %v995 = vsel %vm967, %v962, %v893
        %v996 = vsel %vm967, %v963, %v895
        %v997 = vsel %vm967, %v964, %v897
        %v998 = vsel %vm967, %v965, %v899
        %v999 = vsel %vm967, %v966, %v901
        %vm1000 = vcmask 195584
        %1001 = vst.msk [vmem:[#allocation2] sm:$0xff] %vm1000, 0.0
        %1002 = vst.msk [vmem:[#allocation2 + $0x8] sm:$0xff] %vm1000, 0.0
        %1003 = vst.msk [vmem:[#allocation2 + $0x10] sm:$0xff] %vm1000, %v968
        %1004 = vst.msk [vmem:[#allocation2 + $0x18] sm:$0xff] %vm1000, %v969
        %1005 = vst.msk [vmem:[#allocation2 + $0x20] sm:$0xff] %vm1000, %v970
        %1006 = vst.msk [vmem:[#allocation2 + $0x28] sm:$0xff] %vm1000, %v971
        %1007 = vst.msk [vmem:[#allocation2 + $0x30] sm:$0xff] %vm1000, %v972
        %1008 = vst.msk [vmem:[#allocation2 + $0x38] sm:$0xff] %vm1000, %v973
        %1009 = vst.msk [vmem:[#allocation2 + $0x40] sm:$0xff] %vm1000, %v974
        %1010 = vst.msk [vmem:[#allocation2 + $0x48] sm:$0xff] %vm1000, %v975
        %1011 = vst.msk [vmem:[#allocation2 + $0x50] sm:$0xff] %vm1000, %v976
        %1012 = vst.msk [vmem:[#allocation2 + $0x58] sm:$0xff] %vm1000, %v977
        %1013 = vst.msk [vmem:[#allocation2 + $0x60] sm:$0xff] %vm1000, %v978
        %1014 = vst.msk [vmem:[#allocation2 + $0x68] sm:$0xff] %vm1000, %v979
        %1015 = vst.msk [vmem:[#allocation2 + $0x70] sm:$0xff] %vm1000, %v980
        %1016 = vst.msk [vmem:[#allocation2 + $0x78] sm:$0xff] %vm1000, %v981
        %1017 = vst.msk [vmem:[#allocation2 + $0x80] sm:$0xff] %vm1000, %v982
        %1018 = vst.msk [vmem:[#allocation2 + $0x88] sm:$0xff] %vm1000, %v983
        %1019 = vst.msk [vmem:[#allocation2 + $0x90] sm:$0xff] %vm1000, %v984
        %1020 = vst.msk [vmem:[#allocation2 + $0x98] sm:$0xff] %vm1000, %v985
        %1021 = vst.msk [vmem:[#allocation2 + $0xa0] sm:$0xff] %vm1000, %v986
        %1022 = vst.msk [vmem:[#allocation2 + $0xa8] sm:$0xff] %vm1000, %v987
        %1023 = vst.msk [vmem:[#allocation2 + $0xb0] sm:$0xff] %vm1000, %v988
        %1024 = vst.msk [vmem:[#allocation2 + $0xb8] sm:$0xff] %vm1000, %v989
        %1025 = vst.msk [vmem:[#allocation2 + $0xc0] sm:$0xff] %vm1000, %v990
        %1026 = vst.msk [vmem:[#allocation2 + $0xc8] sm:$0xff] %vm1000, %v991
        %1027 = vst.msk [vmem:[#allocation2 + $0xd0] sm:$0xff] %vm1000, %v992
        %1028 = vst.msk [vmem:[#allocation2 + $0xd8] sm:$0xff] %vm1000, %v993
        %1029 = vst.msk [vmem:[#allocation2 + $0xe0] sm:$0xff] %vm1000, %v994
        %1030 = vst.msk [vmem:[#allocation2 + $0xe8] sm:$0xff] %vm1000, %v995
        %1031 = vst.msk [vmem:[#allocation2 + $0xf0] sm:$0xff] %vm1000, %v996
        %1032 = vst.msk [vmem:[#allocation2 + $0xf8] sm:$0xff] %vm1000, %v997
        %1033 = vst.msk [vmem:[#allocation2 + $0x100] sm:$0xff] %vm1000, %v998
        %1034 = vst.msk [vmem:[#allocation2 + $0x108] sm:$0xff] %vm1000, %v999
        %1035 = vst.msk [vmem:[#allocation2 + $0x110] sm:$0xff] %vm1000, 0.0
        %1036 = vst.msk [vmem:[#allocation2 + $0x118] sm:$0xff] %vm1000, 0.0
        %vm1037 = vcmask 24576
        %1038 = vst.msk [vmem:[%s283] sm:$0x1] %vm1037, 0.0
        %1039 = vst.msk [vmem:[%s286] sm:$0x1] %vm1037, 0.0
      $region36: #{_lambda_.3} parent=31 // pred_fallthru
        _
      %s1040 = smul.u32 %s22, 8
      %s1041 = smul.u32 %s1040, 16
      %s1042 = scalar_lea.vmem [#allocation2], %s1041
      %v1043 = vld [vmem:[%s1042] sm:$0xff]
      %v1044 = vld [vmem:[%s1042 + $0x8] sm:$0xff]
      %v1045 = vld [vmem:[%s1042 + $0x10] sm:$0xff]
      %v1046 = vld [vmem:[%s1042 + $0x18] sm:$0xff]
      %v1047 = vld [vmem:[%s1042 + $0x20] sm:$0xff]
      %v1048 = vld [vmem:[%s1042 + $0x28] sm:$0xff]
      %v1049 = vld [vmem:[%s1042 + $0x30] sm:$0xff]
      %v1050 = vld [vmem:[%s1042 + $0x38] sm:$0xff]
      %v1051 = vld [vmem:[%s1042 + $0x40] sm:$0xff]
      %v1052 = vld [vmem:[%s1042 + $0x48] sm:$0xff]
      %v1053 = vld [vmem:[%s1042 + $0x50] sm:$0xff]
      %v1054 = vld [vmem:[%s1042 + $0x58] sm:$0xff]
      %v1055 = vld [vmem:[%s1042 + $0x60] sm:$0xff]
      %v1056 = vld [vmem:[%s1042 + $0x68] sm:$0xff]
      %v1057 = vld [vmem:[%s1042 + $0x70] sm:$0xff]
      %v1058 = vld [vmem:[%s1042 + $0x78] sm:$0xff]
      %v1059 = vld [vmem:[%s1042 + $0x80] sm:$0xff]
      %v1060 = vld [vmem:[%s1042 + $0x88] sm:$0xff]
      %v1061 = vld [vmem:[%s1042 + $0x90] sm:$0xff]
      %v1062 = vld [vmem:[%s1042 + $0x98] sm:$0xff]
      %v1063 = vld [vmem:[%s2] sm:$0xff]
      %v1064 = vld [vmem:[%s2 + $0x8] sm:$0xff]
      %v1065 = vld [vmem:[%s2 + $0x10] sm:$0xff]
      %s1066 = scalar_lea.vmem %s2, 24
      %v1067 = vld [vmem:[%s1066] sm:$0xff]
      %v1068 = vld [vmem:[%s1066 + $0x8] sm:$0xff]
      %v1069 = vld [vmem:[%s1066 + $0x10] sm:$0xff]
      %vm1070 = vcmask 195584
      %v1072 = vsel %vm1070, %v1045, 0
      %v1075 = vsel %vm1070, %v1046, 0
      %v1078 = vsel %vm1070, %v1047, 0
      %v1081 = vsel %vm1070, %v1048, 0
      %v1084 = vsel %vm1070, %v1049, 0
      %v1087 = vsel %vm1070, %v1050, 0
      %v1090 = vsel %vm1070, %v1051, 0
      %v1093 = vsel %vm1070, %v1052, 0
      %v1096 = vsel %vm1070, %v1053, 0
      %v1099 = vsel %vm1070, %v1054, 0
      %v1102 = vsel %vm1070, %v1055, 0
      %v1105 = vsel %vm1070, %v1056, 0
      %v1108 = vsel %vm1070, %v1057, 0
      %v1111 = vsel %vm1070, %v1058, 0
      %v1114 = vsel %vm1070, %v1059, 0
      %v1117 = vsel %vm1070, %v1060, 0
      %1119 = vmatprep.subr.mxu0 0.0
      %1120 = vmatpush1.msra.mxu0 %v1067
      %1121 = vmatprep.subr.mxu0 0.0
      %1122 = vmatpush1.msra.mxu0 %v1068
      %1123 = vmatprep.subr.mxu0 0.0
      %1124 = vmatpush1.msra.mxu0 %v1069
      %1125 = vmatprep.subr.mxu0 0.0
      %1126 = vmatpush1.msra.mxu0 0.0
      %1127 = vmatprep.subr.mxu0 0.0
      %1128 = vmatpush1.msra.mxu0 0.0
      %1129 = vmatprep.subr.mxu0 0.0
      %1130 = vmatpush1.msra.mxu0 0.0
      %1131 = vmatprep.subr.mxu0 0.0
      %1132 = vmatpush1.msra.mxu0 0.0
      %1133 = vmatprep.subr.mxu0 0.0
      %1134 = vmatpush1.msra.mxu0 0.0
      %1135 = vmatprep.subr.mxu0 0.0
      %1136 = vmatpush1.msra.mxu0 0.0
      %1137 = vmatprep.subr.mxu0 0.0
      %1138 = vmatpush1.msra.mxu0 0.0
      %1139 = vmatprep.subr.mxu0 0.0
      %1140 = vmatpush1.msra.mxu0 0.0
      %1141 = vmatprep.subr.mxu0 0.0
      %1142 = vmatpush1.msra.mxu0 0.0
      %1143 = vmatprep.subr.mxu0 0.0
      %1144 = vmatpush1.msra.mxu0 0.0
      %1145 = vmatprep.subr.mxu0 0.0
      %1146 = vmatpush1.msra.mxu0 0.0
      %1147 = vmatprep.subr.mxu0 0.0
      %1148 = vmatpush1.msra.mxu0 0.0
      %1149 = vmatprep.subr.mxu0 0.0
      %1150 = vmatpush1.msra.mxu0 0.0
      %1151 = vmatprep.subr.mxu0 0.0
      %1152 = vmatpush1.msra.mxu0 0.0
      %1153 = vmatprep.subr.mxu0 0.0
      %1154 = vmatpush1.msra.mxu0 0.0
      %1155 = vmatprep.subr.mxu0 0.0
      %1156 = vmatpush1.msra.mxu0 0.0
      %1157 = vmatprep.subr.mxu0 0.0
      %1158 = vmatpush1.msra.mxu0 0.0
      %1159 = vmatprep.subr.mxu0 0.0
      %1160 = vmatpush1.msra.mxu0 0.0
      %1161 = vmatprep.subr.mxu0 0.0
      %1162 = vmatpush1.msra.mxu0 0.0
      %1163 = vmatprep.subr.mxu0 0.0
      %1164 = vmatpush1.msra.mxu0 0.0
      %1165 = vmatprep.subr.mxu0 0.0
      %1166 = vmatpush1.msra.mxu0 0.0
      %1167 = vmatprep.subr.mxu0 0.0
      %1168 = vmatpush1.msra.mxu0 0.0
      %1169 = vmatprep.subr.mxu0 0.0
      %1170 = vmatpush1.msra.mxu0 0.0
      %1171 = vmatprep.subr.mxu0 0.0
      %1172 = vmatpush1.msra.mxu0 0.0
      %1173 = vmatprep.subr.mxu0 0.0
      %1174 = vmatpush1.msra.mxu0 0.0
      %1175 = vmatprep.subr.mxu0 0.0
      %1176 = vmatpush1.msra.mxu0 0.0
      %1177 = vmatprep.subr.mxu0 0.0
      %1178 = vmatpush1.msra.mxu0 0.0
      %1179 = vmatprep.subr.mxu0 0.0
      %1180 = vmatpush1.msra.mxu0 0.0
      %1181 = vmatprep.subr.mxu0 0.0
      %1182 = vmatpush1.msra.mxu0 0.0
      %1183 = vmatprep.mubr.f32.mxu0 0.0
      %1184 = vmatmul.mubr.f32.gmra.mrb[0].mxu0 %v1072
      %v1185 = vpop.f32.mrb[0].mxu0
      %v1186 = vadd.f32 0.0, %v1185
      %v1187 = vpop.f32.mrb[0].mxu0
      %1188 = vmatprep.mubr.f32.mxu0 0.0
      %1189 = vmatmul.mubr.f32.gmra.mrb[0].mxu0 %v1075
      %v1190 = vpop.f32.mrb[0].mxu0
      %v1191 = vadd.f32 0.0, %v1190
      %v1192 = vpop.f32.mrb[0].mxu0
      %1193 = vmatprep.mubr.f32.mxu0 0.0
      %1194 = vmatmul.mubr.f32.gmra.mrb[0].mxu0 %v1078
      %v1195 = vpop.f32.mrb[0].mxu0
      %v1196 = vadd.f32 0.0, %v1195
      %v1197 = vpop.f32.mrb[0].mxu0
      %1198 = vmatprep.mubr.f32.mxu0 0.0
      %1199 = vmatmul.mubr.f32.gmra.mrb[0].mxu0 %v1081
      %v1200 = vpop.f32.mrb[0].mxu0
      %v1201 = vadd.f32 0.0, %v1200
      %v1202 = vpop.f32.mrb[0].mxu0
      %1203 = vmatprep.mubr.f32.mxu0 0.0
      %1204 = vmatmul.mubr.f32.gmra.mrb[0].mxu0 %v1084
      %v1205 = vpop.f32.mrb[0].mxu0
      %v1206 = vadd.f32 0.0, %v1205
      %v1207 = vpop.f32.mrb[0].mxu0
      %1208 = vmatprep.mubr.f32.mxu0 0.0
      %1209 = vmatmul.mubr.f32.gmra.mrb[0].mxu0 %v1087
      %v1210 = vpop.f32.mrb[0].mxu0
      %v1211 = vadd.f32 0.0, %v1210
      %v1212 = vpop.f32.mrb[0].mxu0
      %1213 = vmatprep.mubr.f32.mxu0 0.0
      %1214 = vmatmul.mubr.f32.gmra.mrb[0].mxu0 %v1090
      %v1215 = vpop.f32.mrb[0].mxu0
      %v1216 = vadd.f32 0.0, %v1215
      %v1217 = vpop.f32.mrb[0].mxu0
      %1218 = vmatprep.mubr.f32.mxu0 0.0
      %1219 = vmatmul.mubr.f32.gmra.mrb[0].mxu0 %v1093
      %v1220 = vpop.f32.mrb[0].mxu0
      %v1221 = vadd.f32 0.0, %v1220
      %v1222 = vpop.f32.mrb[0].mxu0
      %1223 = vmatprep.mubr.f32.mxu0 0.0
      %1224 = vmatmul.mubr.f32.gmra.mrb[0].mxu0 %v1096
      %v1225 = vpop.f32.mrb[0].mxu0
      %v1226 = vadd.f32 0.0, %v1225
      %v1227 = vpop.f32.mrb[0].mxu0
      %1228 = vmatprep.mubr.f32.mxu0 0.0
      %1229 = vmatmul.mubr.f32.gmra.mrb[0].mxu0 %v1099
      %v1230 = vpop.f32.mrb[0].mxu0
      %v1231 = vadd.f32 0.0, %v1230
      %v1232 = vpop.f32.mrb[0].mxu0
      %1233 = vmatprep.mubr.f32.mxu0 0.0
      %1234 = vmatmul.mubr.f32.gmra.mrb[0].mxu0 %v1102
      %v1235 = vpop.f32.mrb[0].mxu0
      %v1236 = vadd.f32 0.0, %v1235
      %v1237 = vpop.f32.mrb[0].mxu0
      %1238 = vmatprep.mubr.f32.mxu0 0.0
      %1239 = vmatmul.mubr.f32.gmra.mrb[0].mxu0 %v1105
      %v1240 = vpop.f32.mrb[0].mxu0
      %v1241 = vadd.f32 0.0, %v1240
      %v1242 = vpop.f32.mrb[0].mxu0
      %1243 = vmatprep.mubr.f32.mxu0 0.0
      %1244 = vmatmul.mubr.f32.gmra.mrb[0].mxu0 %v1108
      %v1245 = vpop.f32.mrb[0].mxu0
      %v1246 = vadd.f32 0.0, %v1245
      %v1247 = vpop.f32.mrb[0].mxu0
      %1248 = vmatprep.mubr.f32.mxu0 0.0
      %1249 = vmatmul.mubr.f32.gmra.mrb[0].mxu0 %v1111
      %v1250 = vpop.f32.mrb[0].mxu0
      %v1251 = vadd.f32 0.0, %v1250
      %v1252 = vpop.f32.mrb[0].mxu0
      %1253 = vmatprep.mubr.f32.mxu0 0.0
      %1254 = vmatmul.mubr.f32.gmra.mrb[0].mxu0 %v1114
      %v1255 = vpop.f32.mrb[0].mxu0
      %v1256 = vadd.f32 0.0, %v1255
      %v1257 = vpop.f32.mrb[0].mxu0
      %1258 = vmatprep.mubr.f32.mxu0 0.0
      %1259 = vmatmul.mubr.f32.gmra.mrb[0].mxu0 %v1117
      %v1260 = vpop.f32.mrb[0].mxu0
      %v1261 = vadd.f32 0.0, %v1260
      %v1262 = vpop.f32.mrb[0].mxu0
      %1263 = vdwg.mxu0
      %v1265 = vsel %vm1070, %v1043, 0
      %v1268 = vsel %vm1070, %v1044, 0
      %1270 = vmatprep.subr.mxu0 0.0
      %1271 = vmatpush1.msra.mxu0 %v1063
      %1272 = vmatprep.subr.mxu0 0.0
      %1273 = vmatpush1.msra.mxu0 %v1064
      %1274 = vmatprep.subr.mxu0 0.0
      %1275 = vmatpush1.msra.mxu0 %v1065
      %1276 = vmatprep.subr.mxu0 0.0
      %1277 = vmatpush1.msra.mxu0 0.0
      %1278 = vmatprep.subr.mxu0 0.0
      %1279 = vmatpush1.msra.mxu0 0.0
      %1280 = vmatprep.subr.mxu0 0.0
      %1281 = vmatpush1.msra.mxu0 0.0
      %1282 = vmatprep.subr.mxu0 0.0
      %1283 = vmatpush1.msra.mxu0 0.0
      %1284 = vmatprep.subr.mxu0 0.0
      %1285 = vmatpush1.msra.mxu0 0.0
      %1286 = vmatprep.subr.mxu0 0.0
      %1287 = vmatpush1.msra.mxu0 0.0
      %1288 = vmatprep.subr.mxu0 0.0
      %1289 = vmatpush1.msra.mxu0 0.0
      %1290 = vmatprep.subr.mxu0 0.0
      %1291 = vmatpush1.msra.mxu0 0.0
      %1292 = vmatprep.subr.mxu0 0.0
      %1293 = vmatpush1.msra.mxu0 0.0
      %1294 = vmatprep.subr.mxu0 0.0
      %1295 = vmatpush1.msra.mxu0 0.0
      %1296 = vmatprep.subr.mxu0 0.0
      %1297 = vmatpush1.msra.mxu0 0.0
      %1298 = vmatprep.subr.mxu0 0.0
      %1299 = vmatpush1.msra.mxu0 0.0
      %1300 = vmatprep.subr.mxu0 0.0
      %1301 = vmatpush1.msra.mxu0 0.0
      %1302 = vmatprep.subr.mxu0 0.0
      %1303 = vmatpush1.msra.mxu0 0.0
      %1304 = vmatprep.subr.mxu0 0.0
      %1305 = vmatpush1.msra.mxu0 0.0
      %1306 = vmatprep.subr.mxu0 0.0
      %1307 = vmatpush1.msra.mxu0 0.0
      %1308 = vmatprep.subr.mxu0 0.0
      %1309 = vmatpush1.msra.mxu0 0.0
      %1310 = vmatprep.subr.mxu0 0.0
      %1311 = vmatpush1.msra.mxu0 0.0
      %1312 = vmatprep.subr.mxu0 0.0
      %1313 = vmatpush1.msra.mxu0 0.0
      %1314 = vmatprep.subr.mxu0 0.0
      %1315 = vmatpush1.msra.mxu0 0.0
      %1316 = vmatprep.subr.mxu0 0.0
      %1317 = vmatpush1.msra.mxu0 0.0
      %1318 = vmatprep.subr.mxu0 0.0
      %1319 = vmatpush1.msra.mxu0 0.0
      %1320 = vmatprep.subr.mxu0 0.0
      %1321 = vmatpush1.msra.mxu0 0.0
      %1322 = vmatprep.subr.mxu0 0.0
      %1323 = vmatpush1.msra.mxu0 0.0
      %1324 = vmatprep.subr.mxu0 0.0
      %1325 = vmatpush1.msra.mxu0 0.0
      %1326 = vmatprep.subr.mxu0 0.0
      %1327 = vmatpush1.msra.mxu0 0.0
      %1328 = vmatprep.subr.mxu0 0.0
      %1329 = vmatpush1.msra.mxu0 0.0
      %1330 = vmatprep.subr.mxu0 0.0
      %1331 = vmatpush1.msra.mxu0 0.0
      %1332 = vmatprep.subr.mxu0 0.0
      %1333 = vmatpush1.msra.mxu0 0.0
      %1334 = vmatprep.mubr.f32.mxu0 0.0
      %1335 = vmatmul.mubr.f32.gmra.mrb[0].mxu0 %v1265
      %v1336 = vpop.f32.mrb[0].mxu0
      %v1337 = vadd.f32 %v1186, %v1336
      %v1338 = vpop.f32.mrb[0].mxu0
      %1339 = vmatprep.mubr.f32.mxu0 0.0
      %1340 = vmatmul.mubr.f32.gmra.mrb[0].mxu0 %v1268
      %v1341 = vpop.f32.mrb[0].mxu0
      %v1342 = vadd.f32 %v1191, %v1341
      %v1343 = vpop.f32.mrb[0].mxu0
      %1344 = vmatprep.mubr.f32.mxu0 0.0
      %1345 = vmatmul.mubr.f32.gmra.mrb[0].mxu0 %v1072
      %v1346 = vpop.f32.mrb[0].mxu0
      %v1347 = vadd.f32 %v1196, %v1346
      %v1348 = vpop.f32.mrb[0].mxu0
      %1349 = vmatprep.mubr.f32.mxu0 0.0
      %1350 = vmatmul.mubr.f32.gmra.mrb[0].mxu0 %v1075
      %v1351 = vpop.f32.mrb[0].mxu0
      %v1352 = vadd.f32 %v1201, %v1351
      %v1353 = vpop.f32.mrb[0].mxu0
      %1354 = vmatprep.mubr.f32.mxu0 0.0
      %1355 = vmatmul.mubr.f32.gmra.mrb[0].mxu0 %v1078
      %v1356 = vpop.f32.mrb[0].mxu0
      %v1357 = vadd.f32 %v1206, %v1356
      %v1358 = vpop.f32.mrb[0].mxu0
      %1359 = vmatprep.mubr.f32.mxu0 0.0
      %1360 = vmatmul.mubr.f32.gmra.mrb[0].mxu0 %v1081
      %v1361 = vpop.f32.mrb[0].mxu0
      %v1362 = vadd.f32 %v1211, %v1361
      %v1363 = vpop.f32.mrb[0].mxu0
      %1364 = vmatprep.mubr.f32.mxu0 0.0
      %1365 = vmatmul.mubr.f32.gmra.mrb[0].mxu0 %v1084
      %v1366 = vpop.f32.mrb[0].mxu0
      %v1367 = vadd.f32 %v1216, %v1366
      %v1368 = vpop.f32.mrb[0].mxu0
      %1369 = vmatprep.mubr.f32.mxu0 0.0
      %1370 = vmatmul.mubr.f32.gmra.mrb[0].mxu0 %v1087
      %v1371 = vpop.f32.mrb[0].mxu0
      %v1372 = vadd.f32 %v1221, %v1371
      %v1373 = vpop.f32.mrb[0].mxu0
      %1374 = vmatprep.mubr.f32.mxu0 0.0
      %1375 = vmatmul.mubr.f32.gmra.mrb[0].mxu0 %v1090
      %v1376 = vpop.f32.mrb[0].mxu0
      %v1377 = vadd.f32 %v1226, %v1376
      %v1378 = vpop.f32.mrb[0].mxu0
      %1379 = vmatprep.mubr.f32.mxu0 0.0
      %1380 = vmatmul.mubr.f32.gmra.mrb[0].mxu0 %v1093
      %v1381 = vpop.f32.mrb[0].mxu0
      %v1382 = vadd.f32 %v1231, %v1381
      %v1383 = vpop.f32.mrb[0].mxu0
      %1384 = vmatprep.mubr.f32.mxu0 0.0
      %1385 = vmatmul.mubr.f32.gmra.mrb[0].mxu0 %v1096
      %v1386 = vpop.f32.mrb[0].mxu0
      %v1387 = vadd.f32 %v1236, %v1386
      %v1388 = vpop.f32.mrb[0].mxu0
      %1389 = vmatprep.mubr.f32.mxu0 0.0
      %1390 = vmatmul.mubr.f32.gmra.mrb[0].mxu0 %v1099
      %v1391 = vpop.f32.mrb[0].mxu0
      %v1392 = vadd.f32 %v1241, %v1391
      %v1393 = vpop.f32.mrb[0].mxu0
      %1394 = vmatprep.mubr.f32.mxu0 0.0
      %1395 = vmatmul.mubr.f32.gmra.mrb[0].mxu0 %v1102
      %v1396 = vpop.f32.mrb[0].mxu0
      %v1397 = vadd.f32 %v1246, %v1396
      %v1398 = vpop.f32.mrb[0].mxu0
      %1399 = vmatprep.mubr.f32.mxu0 0.0
      %1400 = vmatmul.mubr.f32.gmra.mrb[0].mxu0 %v1105
      %v1401 = vpop.f32.mrb[0].mxu0
      %v1402 = vadd.f32 %v1251, %v1401
      %v1403 = vpop.f32.mrb[0].mxu0
      %1404 = vmatprep.mubr.f32.mxu0 0.0
      %1405 = vmatmul.mubr.f32.gmra.mrb[0].mxu0 %v1108
      %v1406 = vpop.f32.mrb[0].mxu0
      %v1407 = vadd.f32 %v1256, %v1406
      %v1408 = vpop.f32.mrb[0].mxu0
      %1409 = vmatprep.mubr.f32.mxu0 0.0
      %1410 = vmatmul.mubr.f32.gmra.mrb[0].mxu0 %v1111
      %v1411 = vpop.f32.mrb[0].mxu0
      %v1412 = vadd.f32 %v1261, %v1411
      %v1413 = vpop.f32.mrb[0].mxu0
      %1414 = vdwg.mxu0
      %s1415 = scalar_lea.vmem %s2, 48
      %v1416 = vld [vmem:[%s1415] sm:$0xff]
      %v1417 = vld [vmem:[%s1415 + $0x8] sm:$0xff]
      %v1418 = vld [vmem:[%s1415 + $0x10] sm:$0xff]
      %v1420 = vsel %vm1070, %v1061, 0
      %v1423 = vsel %vm1070, %v1062, 0
      %1425 = vmatprep.subr.mxu0 0.0
      %1426 = vmatpush1.msra.mxu0 %v1416
      %1427 = vmatprep.subr.mxu0 0.0
      %1428 = vmatpush1.msra.mxu0 %v1417
      %1429 = vmatprep.subr.mxu0 0.0
      %1430 = vmatpush1.msra.mxu0 %v1418
      %1431 = vmatprep.subr.mxu0 0.0
      %1432 = vmatpush1.msra.mxu0 0.0
      %1433 = vmatprep.subr.mxu0 0.0
      %1434 = vmatpush1.msra.mxu0 0.0
      %1435 = vmatprep.subr.mxu0 0.0
      %1436 = vmatpush1.msra.mxu0 0.0
      %1437 = vmatprep.subr.mxu0 0.0
      %1438 = vmatpush1.msra.mxu0 0.0
      %1439 = vmatprep.subr.mxu0 0.0
      %1440 = vmatpush1.msra.mxu0 0.0
      %1441 = vmatprep.subr.mxu0 0.0
      %1442 = vmatpush1.msra.mxu0 0.0
      %1443 = vmatprep.subr.mxu0 0.0
      %1444 = vmatpush1.msra.mxu0 0.0
      %1445 = vmatprep.subr.mxu0 0.0
      %1446 = vmatpush1.msra.mxu0 0.0
      %1447 = vmatprep.subr.mxu0 0.0
      %1448 = vmatpush1.msra.mxu0 0.0
      %1449 = vmatprep.subr.mxu0 0.0
      %1450 = vmatpush1.msra.mxu0 0.0
      %1451 = vmatprep.subr.mxu0 0.0
      %1452 = vmatpush1.msra.mxu0 0.0
      %1453 = vmatprep.subr.mxu0 0.0
      %1454 = vmatpush1.msra.mxu0 0.0
      %1455 = vmatprep.subr.mxu0 0.0
      %1456 = vmatpush1.msra.mxu0 0.0
      %1457 = vmatprep.subr.mxu0 0.0
      %1458 = vmatpush1.msra.mxu0 0.0
      %1459 = vmatprep.subr.mxu0 0.0
      %1460 = vmatpush1.msra.mxu0 0.0
      %1461 = vmatprep.subr.mxu0 0.0
      %1462 = vmatpush1.msra.mxu0 0.0
      %1463 = vmatprep.subr.mxu0 0.0
      %1464 = vmatpush1.msra.mxu0 0.0
      %1465 = vmatprep.subr.mxu0 0.0
      %1466 = vmatpush1.msra.mxu0 0.0
      %1467 = vmatprep.subr.mxu0 0.0
      %1468 = vmatpush1.msra.mxu0 0.0
      %1469 = vmatprep.subr.mxu0 0.0
      %1470 = vmatpush1.msra.mxu0 0.0
      %1471 = vmatprep.subr.mxu0 0.0
      %1472 = vmatpush1.msra.mxu0 0.0
      %1473 = vmatprep.subr.mxu0 0.0
      %1474 = vmatpush1.msra.mxu0 0.0
      %1475 = vmatprep.subr.mxu0 0.0
      %1476 = vmatpush1.msra.mxu0 0.0
      %1477 = vmatprep.subr.mxu0 0.0
      %1478 = vmatpush1.msra.mxu0 0.0
      %1479 = vmatprep.subr.mxu0 0.0
      %1480 = vmatpush1.msra.mxu0 0.0
      %1481 = vmatprep.subr.mxu0 0.0
      %1482 = vmatpush1.msra.mxu0 0.0
      %1483 = vmatprep.subr.mxu0 0.0
      %1484 = vmatpush1.msra.mxu0 0.0
      %1485 = vmatprep.subr.mxu0 0.0
      %1486 = vmatpush1.msra.mxu0 0.0
      %1487 = vmatprep.subr.mxu0 0.0
      %1488 = vmatpush1.msra.mxu0 0.0
      %1489 = vmatprep.mubr.f32.mxu0 0.0
      %1490 = vmatmul.mubr.f32.gmra.mrb[0].mxu0 %v1078
      %v1491 = vpop.f32.mrb[0].mxu0
      %v1492 = vadd.f32 0.0, %v1491
      %v1493 = vpop.f32.mrb[0].mxu0
      %1494 = vmatprep.mubr.f32.mxu0 0.0
      %1495 = vmatmul.mubr.f32.gmra.mrb[0].mxu0 %v1081
      %v1496 = vpop.f32.mrb[0].mxu0
      %v1497 = vadd.f32 0.0, %v1496
      %v1498 = vpop.f32.mrb[0].mxu0
      %1499 = vmatprep.mubr.f32.mxu0 0.0
      %1500 = vmatmul.mubr.f32.gmra.mrb[0].mxu0 %v1084
      %v1501 = vpop.f32.mrb[0].mxu0
      %v1502 = vadd.f32 0.0, %v1501
      %v1503 = vpop.f32.mrb[0].mxu0
      %1504 = vmatprep.mubr.f32.mxu0 0.0
      %1505 = vmatmul.mubr.f32.gmra.mrb[0].mxu0 %v1087
      %v1506 = vpop.f32.mrb[0].mxu0
      %v1507 = vadd.f32 0.0, %v1506
      %v1508 = vpop.f32.mrb[0].mxu0
      %1509 = vmatprep.mubr.f32.mxu0 0.0
      %1510 = vmatmul.mubr.f32.gmra.mrb[0].mxu0 %v1090
      %v1511 = vpop.f32.mrb[0].mxu0
      %v1512 = vadd.f32 0.0, %v1511
      %v1513 = vpop.f32.mrb[0].mxu0
      %1514 = vmatprep.mubr.f32.mxu0 0.0
      %1515 = vmatmul.mubr.f32.gmra.mrb[0].mxu0 %v1093
      %v1516 = vpop.f32.mrb[0].mxu0
      %v1517 = vadd.f32 0.0, %v1516
      %v1518 = vpop.f32.mrb[0].mxu0
      %1519 = vmatprep.mubr.f32.mxu0 0.0
      %1520 = vmatmul.mubr.f32.gmra.mrb[0].mxu0 %v1096
      %v1521 = vpop.f32.mrb[0].mxu0
      %v1522 = vadd.f32 0.0, %v1521
      %v1523 = vpop.f32.mrb[0].mxu0
      %1524 = vmatprep.mubr.f32.mxu0 0.0
      %1525 = vmatmul.mubr.f32.gmra.mrb[0].mxu0 %v1099
      %v1526 = vpop.f32.mrb[0].mxu0
      %v1527 = vadd.f32 0.0, %v1526
      %v1528 = vpop.f32.mrb[0].mxu0
      %1529 = vmatprep.mubr.f32.mxu0 0.0
      %1530 = vmatmul.mubr.f32.gmra.mrb[0].mxu0 %v1102
      %v1531 = vpop.f32.mrb[0].mxu0
      %v1532 = vadd.f32 0.0, %v1531
      %v1533 = vpop.f32.mrb[0].mxu0
      %1534 = vmatprep.mubr.f32.mxu0 0.0
      %1535 = vmatmul.mubr.f32.gmra.mrb[0].mxu0 %v1105
      %v1536 = vpop.f32.mrb[0].mxu0
      %v1537 = vadd.f32 0.0, %v1536
      %v1538 = vpop.f32.mrb[0].mxu0
      %1539 = vmatprep.mubr.f32.mxu0 0.0
      %1540 = vmatmul.mubr.f32.gmra.mrb[0].mxu0 %v1108
      %v1541 = vpop.f32.mrb[0].mxu0
      %v1542 = vadd.f32 0.0, %v1541
      %v1543 = vpop.f32.mrb[0].mxu0
      %1544 = vmatprep.mubr.f32.mxu0 0.0
      %1545 = vmatmul.mubr.f32.gmra.mrb[0].mxu0 %v1111
      %v1546 = vpop.f32.mrb[0].mxu0
      %v1547 = vadd.f32 0.0, %v1546
      %v1548 = vpop.f32.mrb[0].mxu0
      %1549 = vmatprep.mubr.f32.mxu0 0.0
      %1550 = vmatmul.mubr.f32.gmra.mrb[0].mxu0 %v1114
      %v1551 = vpop.f32.mrb[0].mxu0
      %v1552 = vadd.f32 0.0, %v1551
      %v1553 = vpop.f32.mrb[0].mxu0
      %1554 = vmatprep.mubr.f32.mxu0 0.0
      %1555 = vmatmul.mubr.f32.gmra.mrb[0].mxu0 %v1117
      %v1556 = vpop.f32.mrb[0].mxu0
      %v1557 = vadd.f32 0.0, %v1556
      %v1558 = vpop.f32.mrb[0].mxu0
      %1559 = vmatprep.mubr.f32.mxu0 0.0
      %1560 = vmatmul.mubr.f32.gmra.mrb[0].mxu0 %v1420
      %v1561 = vpop.f32.mrb[0].mxu0
      %v1562 = vadd.f32 0.0, %v1561
      %v1563 = vpop.f32.mrb[0].mxu0
      %1564 = vmatprep.mubr.f32.mxu0 0.0
      %1565 = vmatmul.mubr.f32.gmra.mrb[0].mxu0 %v1423
      %v1566 = vpop.f32.mrb[0].mxu0
      %v1567 = vadd.f32 0.0, %v1566
      %v1568 = vpop.f32.mrb[0].mxu0
      %1569 = vdwg.mxu0
      %v1570 = vadd.f32 %v1337, %v1492
      %v1571 = vadd.f32 %v1342, %v1497
      %v1572 = vadd.f32 %v1347, %v1502
      %v1573 = vadd.f32 %v1352, %v1507
      %v1574 = vadd.f32 %v1357, %v1512
      %v1575 = vadd.f32 %v1362, %v1517
      %v1576 = vadd.f32 %v1367, %v1522
      %v1577 = vadd.f32 %v1372, %v1527
      %v1578 = vadd.f32 %v1377, %v1532
      %v1579 = vadd.f32 %v1382, %v1537
      %v1580 = vadd.f32 %v1387, %v1542
      %v1581 = vadd.f32 %v1392, %v1547
      %v1582 = vadd.f32 %v1397, %v1552
      %v1583 = vadd.f32 %v1402, %v1557
      %v1584 = vadd.f32 %v1407, %v1562
      %v1585 = vadd.f32 %v1412, %v1567
      %vm1586 = vcmask 31744
      %1587 = vst.msk [vmem:[%s279] sm:$0xff] %vm1586, %v1570
      %1588 = vst.msk [vmem:[%s279 + $0x8] sm:$0xff] %vm1586, %v1571
      %1589 = vst.msk [vmem:[%s279 + $0x10] sm:$0xff] %vm1586, %v1572
      %1590 = vst.msk [vmem:[%s279 + $0x18] sm:$0xff] %vm1586, %v1573
      %1591 = vst.msk [vmem:[%s279 + $0x20] sm:$0xff] %vm1586, %v1574
      %1592 = vst.msk [vmem:[%s279 + $0x28] sm:$0xff] %vm1586, %v1575
      %1593 = vst.msk [vmem:[%s279 + $0x30] sm:$0xff] %vm1586, %v1576
      %1594 = vst.msk [vmem:[%s279 + $0x38] sm:$0xff] %vm1586, %v1577
      %1595 = vst.msk [vmem:[%s279 + $0x40] sm:$0xff] %vm1586, %v1578
      %1596 = vst.msk [vmem:[%s279 + $0x48] sm:$0xff] %vm1586, %v1579
      %1597 = vst.msk [vmem:[%s279 + $0x50] sm:$0xff] %vm1586, %v1580
      %1598 = vst.msk [vmem:[%s279 + $0x58] sm:$0xff] %vm1586, %v1581
      %1599 = vst.msk [vmem:[%s279 + $0x60] sm:$0xff] %vm1586, %v1582
      %1600 = vst.msk [vmem:[%s279 + $0x68] sm:$0xff] %vm1586, %v1583
      %1601 = vst.msk [vmem:[%s279 + $0x70] sm:$0xff] %vm1586, %v1584
      %1602 = vst.msk [vmem:[%s279 + $0x78] sm:$0xff] %vm1586, %v1585
      %v1603 = vld [vmem:[%s283] sm:$0x1]
      %v1604 = vsel %vm1586, %v1570, 0.0
      %v1605 = vsel %vm1586, %v1571, 0.0
      %v1606 = vadd.f32 %v1604, %v1605
      %v1607 = vsel %vm1586, %v1572, 0.0
      %v1608 = vadd.f32 %v1606, %v1607
      %v1609 = vsel %vm1586, %v1573, 0.0
      %v1610 = vadd.f32 %v1608, %v1609
      %v1611 = vsel %vm1586, %v1574, 0.0
      %v1612 = vadd.f32 %v1610, %v1611
      %v1613 = vsel %vm1586, %v1575, 0.0
      %v1614 = vadd.f32 %v1612, %v1613
      %v1615 = vsel %vm1586, %v1576, 0.0
      %v1616 = vadd.f32 %v1614, %v1615
      %v1617 = vsel %vm1586, %v1577, 0.0
      %v1618 = vadd.f32 %v1616, %v1617
      %v1619 = vsel %vm1586, %v1578, 0.0
      %v1620 = vadd.f32 %v1618, %v1619
      %v1621 = vsel %vm1586, %v1579, 0.0
      %v1622 = vadd.f32 %v1620, %v1621
      %v1623 = vsel %vm1586, %v1580, 0.0
      %v1624 = vadd.f32 %v1622, %v1623
      %v1625 = vsel %vm1586, %v1581, 0.0
      %v1626 = vadd.f32 %v1624, %v1625
      %v1627 = vsel %vm1586, %v1582, 0.0
      %v1628 = vadd.f32 %v1626, %v1627
      %v1629 = vsel %vm1586, %v1583, 0.0
      %v1630 = vadd.f32 %v1628, %v1629
      %v1631 = vsel %vm1586, %v1584, 0.0
      %v1632 = vadd.f32 %v1630, %v1631
      %v1633 = vsel %vm1586, %v1585, 0.0
      %v1634 = vadd.f32 %v1632, %v1633
      %v1635 = vrot.slane %v1634, 4
      %v1636 = vadd.f32 %v1634, %v1635
      %v1637 = vrot.slane %v1636, 2
      %v1638 = vadd.f32 %v1636, %v1637
      %v1639 = vrot.slane %v1638, 1
      %v1640 = vadd.f32 %v1638, %v1639
      %v1641 = vadd.f32 %v1603, %v1640
      %vm1642 = vcmask 24576
      %1643 = vst.msk [vmem:[%s283] sm:$0x1] %vm1642, %v1641
      %v1644 = vld [vmem:[%s286] sm:$0x1]
      %v1645 = vmul.f32 %v1570, %v1570
      %v1646 = vmul.f32 %v1571, %v1571
      %v1647 = vmul.f32 %v1572, %v1572
      %v1648 = vmul.f32 %v1573, %v1573
      %v1649 = vmul.f32 %v1574, %v1574
      %v1650 = vmul.f32 %v1575, %v1575
      %v1651 = vmul.f32 %v1576, %v1576
      %v1652 = vmul.f32 %v1577, %v1577
      %v1653 = vmul.f32 %v1578, %v1578
      %v1654 = vmul.f32 %v1579, %v1579
      %v1655 = vmul.f32 %v1580, %v1580
      %v1656 = vmul.f32 %v1581, %v1581
      %v1657 = vmul.f32 %v1582, %v1582
      %v1658 = vmul.f32 %v1583, %v1583
      %v1659 = vmul.f32 %v1584, %v1584
      %v1660 = vmul.f32 %v1585, %v1585
      %v1661 = vsel %vm1586, %v1645, 0.0
      %v1662 = vsel %vm1586, %v1646, 0.0
      %v1663 = vadd.f32 %v1661, %v1662
      %v1664 = vsel %vm1586, %v1647, 0.0
      %v1665 = vadd.f32 %v1663, %v1664
      %v1666 = vsel %vm1586, %v1648, 0.0
      %v1667 = vadd.f32 %v1665, %v1666
      %v1668 = vsel %vm1586, %v1649, 0.0
      %v1669 = vadd.f32 %v1667, %v1668
      %v1670 = vsel %vm1586, %v1650, 0.0
      %v1671 = vadd.f32 %v1669, %v1670
      %v1672 = vsel %vm1586, %v1651, 0.0
      %v1673 = vadd.f32 %v1671, %v1672
      %v1674 = vsel %vm1586, %v1652, 0.0
      %v1675 = vadd.f32 %v1673, %v1674
      %v1676 = vsel %vm1586, %v1653, 0.0
      %v1677 = vadd.f32 %v1675, %v1676
      %v1678 = vsel %vm1586, %v1654, 0.0
      %v1679 = vadd.f32 %v1677, %v1678
      %v1680 = vsel %vm1586, %v1655, 0.0
      %v1681 = vadd.f32 %v1679, %v1680
      %v1682 = vsel %vm1586, %v1656, 0.0
      %v1683 = vadd.f32 %v1681, %v1682
      %v1684 = vsel %vm1586, %v1657, 0.0
      %v1685 = vadd.f32 %v1683, %v1684
      %v1686 = vsel %vm1586, %v1658, 0.0
      %v1687 = vadd.f32 %v1685, %v1686
      %v1688 = vsel %vm1586, %v1659, 0.0
      %v1689 = vadd.f32 %v1687, %v1688
      %v1690 = vsel %vm1586, %v1660, 0.0
      %v1691 = vadd.f32 %v1689, %v1690
      %v1692 = vrot.slane %v1691, 4
      %v1693 = vadd.f32 %v1691, %v1692
      %v1694 = vrot.slane %v1693, 2
      %v1695 = vadd.f32 %v1693, %v1694
      %v1696 = vrot.slane %v1695, 1
      %v1697 = vadd.f32 %v1695, %v1696
      %v1698 = vadd.f32 %v1644, %v1697
      %1699 = vst.msk [vmem:[%s286] sm:$0x1] %vm1642, %v1698
      %s1700 = smul.u32 8, %s22
      %p1701 = scmp.lt.s32.totalorder %s21, 1
      %s1702 = scalar_select %p1701, %s21, 1
      %p1703 = scmp.lt.s32.totalorder %s1700, 15
      %s1704 = scalar_select %p1703, %s1700, 15
      %s1705 = smul.addr %s1704, 2
      %s1706 = smul.addr %s1702, 32
      %s1707 = sadd.s32 %s1705, %s1706
      %s1708 = smul.addr %s1707, 8
      %s1709 = scalar_lea.vmem %s3, %s1708
      %p1710 = scmp.lt.s32.totalorder %s21, 1
      %s1711 = scalar_select %p1710, %s21, 1
      %s1712 = scalar_lea.vmem %s4, %s1711
      %p1713 = scmp.lt.s32.totalorder %s21, 1
      %s1714 = scalar_select %p1713, %s21, 1
      %s1715 = scalar_lea.vmem %s5, %s1714
      // Predicated region
      $region37: #{_lambda_.3} parent=31 // pred_check
        %p1716 = pneg %p122
      $region38: #{_lambda_.3} parent=31 // pred_check_branch
        %1718 = sbr.rel (%p1716) target = $region40
      $region39: #{_lambda_.3} parent=31 // pred_region
        %s1719 = smul.u32 8, %s22
      $region40: #{_lambda_.3} parent=31 // pred_fallthru
        _
      // Predicated region
      $region41: #{_lambda_.3} parent=31 // pred_check
        %p1720 = pneg %p148
      $region42: #{_lambda_.3} parent=31 // pred_check_branch
        %1722 = sbr.rel (%p1720) target = $region44
      $region43: #{_lambda_.3} parent=31 // pred_region
        _
      $region44: #{_lambda_.3} parent=31 // pred_fallthru
        _
      // Predicated region
      $region45: #{_lambda_.3} parent=31 // pred_check
        %p1723 = pneg %p174
      $region46: #{_lambda_.3} parent=31 // pred_check_branch
        %1725 = sbr.rel (%p1723) target = $region48
      $region47: #{_lambda_.3} parent=31 // pred_region
        _
      $region48: #{_lambda_.3} parent=31 // pred_fallthru
        _
    $region32: #{_lambda_.3} parent=5 // pred_fallthru
      _
    %p1726 = scmp.le.s32.totalorder 2, %s12
    // Predicated region
    $region49: #{_lambda_.3} parent=5 // pred_check
      %p1727 = pneg %p1726
    $region50: #{_lambda_.3} parent=5 // pred_check_branch
      %1729 = sbr.rel (%p1727) target = $region52
    $region51: #{_lambda_.3} parent=5 // pred_region
      %s1730 = ssub.s32 %s12, 2
      // Predicated region
      $region53: #{_lambda_.3} parent=51 // pred_check
        %p1731 = pneg %p128
      $region54: #{_lambda_.3} parent=51 // pred_check_branch
        %1733 = sbr.rel (%p1731) target = $region56
      $region55: #{_lambda_.3} parent=51 // pred_region
        %s1734 = smul.u32 8, %s24
        %p1735 = scmp.lt.s32.totalorder %s23, 1
        %s1736 = scalar_select %p1735, %s23, 1
        %p1737 = scmp.lt.s32.totalorder %s1734, 15
        %s1738 = scalar_select %p1737, %s1734, 15
        %s1739 = smul.addr %s1738, 2
        %s1740 = smul.addr %s1736, 32
        %s1741 = sadd.s32 %s1739, %s1740
        %s1742 = smul.addr %s1741, 8
        %s1743 = scalar_lea.vmem %s3, %s1742
      $region56: #{_lambda_.3} parent=51 // pred_fallthru
        _
      // Predicated region
      $region57: #{_lambda_.3} parent=51 // pred_check
        %p1744 = pneg %p154
      $region58: #{_lambda_.3} parent=51 // pred_check_branch
        %1746 = sbr.rel (%p1744) target = $region60
      $region59: #{_lambda_.3} parent=51 // pred_region
        %p1747 = scmp.lt.s32.totalorder %s23, 1
        %s1748 = scalar_select %p1747, %s23, 1
        %s1749 = scalar_lea.vmem %s4, %s1748
      $region60: #{_lambda_.3} parent=51 // pred_fallthru
        _
      // Predicated region
      $region61: #{_lambda_.3} parent=51 // pred_check
        %p1750 = pneg %p180
      $region62: #{_lambda_.3} parent=51 // pred_check_branch
        %1752 = sbr.rel (%p1750) target = $region64
      $region63: #{_lambda_.3} parent=51 // pred_region
        %p1753 = scmp.lt.s32.totalorder %s23, 1
        %s1754 = scalar_select %p1753, %s23, 1
        %s1755 = scalar_lea.vmem %s5, %s1754
      $region64: #{_lambda_.3} parent=51 // pred_fallthru
        _
    $region52: #{_lambda_.3} parent=5 // pred_fallthru
      _
  $region6: #{_lambda_.3} parent=0 // loop_footer
    %s16 = sadd.s32 1, %s12
  $region7: #{_lambda_.3} parent=0 // loop_footer_branch
    %11 = sbr.rel target = $region3
  $region8: #{_lambda_.3} parent=0 // loop_exit
    _

// kernel: _lambda_.4
$region0: #{_lambda_.4}
  #allocation0 [shape = 'u32[]', space=smem, size = 0x4, offset = 0x4, fixed_abs, tag = 'smem constant byte address 0x4 - core index']
  #allocation1 [shape = 'u32[144,128]{1,0:T(1,128)}', space=vmem, size = 0x12000, scoped, tag = 'internal scratch']
  #allocation2 [shape = 'f32[18,16,12]{2,1,0:T(8,128)}', space=vmem, size = 0x24000, scoped, tag = 'scratch operand']
  %s0 = inlined_call_operand.vmem [shape: f32[2,16,16,4], index: 0, kind: input, shape index: {}]
  %s1 = inlined_call_operand.vmem [shape: f32[1,4], index: 1, kind: input, shape index: {}]
  %s2 = inlined_call_operand.vmem [shape: f32[1,4], index: 2, kind: input, shape index: {}]
  %s3 = inlined_call_operand.vmem [shape: f32[3,12,4], index: 3, kind: input, shape index: {}]
  %s4 = inlined_call_operand.vmem [shape: f32[2,16,16,4], index: 4, kind: output, shape index: {0}]
  %s5 = inlined_call_operand.vmem [shape: f32[2,1,4], index: 5, kind: output, shape index: {1}]
  %s6 = inlined_call_operand.vmem [shape: f32[2,1,4], index: 6, kind: output, shape index: {2}]
  %7 = xla_tuple %s4, %s5, %s6
  %s8 = sld [smem:[#allocation0]]
  $region69: #{_lambda_.4} parent=0
    _
  %s10 = ssub.s32 1, %s8
  %s11 = scalar_select 0, %s10, %s8
  loop: start=0, step=1, limit=6
  $region2: #{_lambda_.4} parent=0 // loop_pre_header
    _
  $region3: #{_lambda_.4} parent=0 // loop_header
    %s13 = sphi 0, %s17
    %p14 = scmp.ge.s32.totalorder %s13, 6
    %s20 = sphi 0, %s32
    %s21 = sphi 0, %s28
    %s22 = sphi 0, %s20
    %s23 = sphi 0, %s21
    %s24 = sphi 0, %s22
    %s25 = sphi 0, %s23
    %s35 = sphi 0, %s37
    %s38 = sphi 0, %s35
    %s39 = sphi 0, %s38
    %s55 = sphi 0, %s39
    %s59 = sphi 0, %s59
    %s61 = sphi 0, %s59
    %s62 = sphi 0, %s61
    %s76 = sphi 0, %s62
    %s80 = sphi 0, %s80
    %s82 = sphi 0, %s80
    %s83 = sphi 0, %s82
    %s97 = sphi 0, %s83
    %s101 = sphi 0, %s101
    %s103 = sphi 0, %s101
    %s104 = sphi 0, %s103
    %s118 = sphi 0, %s104
    %s126 = sphi 0, %s128
    %s129 = sphi 0, %s126
    %s130 = sphi 0, %s129
    %s146 = sphi 0, %s130
    %s152 = sphi 0, %s154
    %s155 = sphi 0, %s152
    %s156 = sphi 0, %s155
    %s172 = sphi 0, %s156
    %s178 = sphi 0, %s180
    %s181 = sphi 0, %s178
    %s182 = sphi 0, %s181
    %s198 = sphi 0, %s182
  $region4: #{_lambda_.4} parent=0 // loop_header_branch
    %16 = sbr.rel (%p14) target = $region8
  $region5: #{_lambda_.4} parent=0 // loop_body
    %s18 = ssub.s32 %s13, 1
    %s19 = ssub.s32 %s13, 2
    %s26 = sadd.s32 1, %s21
    %p27 = scmp.ge.s32.totalorder %s26, 2
    %s28 = scalar_select %p27, 0, %s26
    %s29 = sadd.s32 1, %s20
    %s30 = scalar_select %p27, %s29, %s20
    %p31 = scmp.ge.s32.totalorder %s30, 2
    %s32 = scalar_select %p31, 0, %s30
    %s33 = ssub.s32 %s20, %s32
    %p34 = scmp.eq.s32.totalorder %s33, 0
    %s36 = sadd.s32 %s35, 1
    %s37 = scalar_select %p34, %s35, %s36
    %p40 = pneg %p34
    %p41 = scmp.eq.s32.totalorder %s13, 3
    %p42 = por %p40, %p41
    %p43 = scmp.ne.s32.totalorder %s35, %s38
    %p44 = scmp.eq.s32.totalorder %s13, 0
    %p45 = por %p43, %p44
    %p46 = scmp.ne.s32.totalorder %s35, %s38
    %p47 = scmp.eq.s32.totalorder %s18, 3
    %p48 = por %p46, %p47
    %p49 = scmp.ne.s32.totalorder %s38, %s39
    %p50 = scmp.eq.s32.totalorder %s18, 0
    %p51 = por %p49, %p50
    %p52 = scmp.ne.s32.totalorder %s38, %s39
    %p53 = scmp.eq.s32.totalorder %s19, 3
    %p54 = por %p52, %p53
    %p56 = scmp.ne.s32.totalorder %s39, %s55
    %p57 = scmp.eq.s32.totalorder %s19, 0
    %p58 = por %p56, %p57
    %s60 = sadd.s32 %s59, 1
    %p63 = scmp.eq.s32.totalorder %s13, 3
    %p64 = scmp.ne.s32.totalorder %s59, %s61
    %p65 = scmp.eq.s32.totalorder %s13, 0
    %p66 = por %p64, %p65
    %p67 = scmp.ne.s32.totalorder %s59, %s61
    %p68 = scmp.eq.s32.totalorder %s18, 3
    %p69 = por %p67, %p68
    %p70 = scmp.ne.s32.totalorder %s61, %s62
    %p71 = scmp.eq.s32.totalorder %s18, 0
    %p72 = por %p70, %p71
    %p73 = scmp.ne.s32.totalorder %s61, %s62
    %p74 = scmp.eq.s32.totalorder %s19, 3
    %p75 = por %p73, %p74
    %p77 = scmp.ne.s32.totalorder %s62, %s76
    %p78 = scmp.eq.s32.totalorder %s19, 0
    %p79 = por %p77, %p78
    %s81 = sadd.s32 %s80, 1
    %p84 = scmp.eq.s32.totalorder %s13, 3
    %p85 = scmp.ne.s32.totalorder %s80, %s82
    %p86 = scmp.eq.s32.totalorder %s13, 0
    %p87 = por %p85, %p86
    %p88 = scmp.ne.s32.totalorder %s80, %s82
    %p89 = scmp.eq.s32.totalorder %s18, 3
    %p90 = por %p88, %p89
    %p91 = scmp.ne.s32.totalorder %s82, %s83
    %p92 = scmp.eq.s32.totalorder %s18, 0
    %p93 = por %p91, %p92
    %p94 = scmp.ne.s32.totalorder %s82, %s83
    %p95 = scmp.eq.s32.totalorder %s19, 3
    %p96 = por %p94, %p95
    %p98 = scmp.ne.s32.totalorder %s83, %s97
    %p99 = scmp.eq.s32.totalorder %s19, 0
    %p100 = por %p98, %p99
    %s102 = sadd.s32 %s101, 1
    %p105 = scmp.eq.s32.totalorder %s13, 3
    %p106 = scmp.ne.s32.totalorder %s101, %s103
    %p107 = scmp.eq.s32.totalorder %s13, 0
    %p108 = por %p106, %p107
    %p109 = scmp.ne.s32.totalorder %s101, %s103
    %p110 = scmp.eq.s32.totalorder %s18, 3
    %p111 = por %p109, %p110
    %p112 = scmp.ne.s32.totalorder %s103, %s104
    %p113 = scmp.eq.s32.totalorder %s18, 0
    %p114 = por %p112, %p113
    %p115 = scmp.ne.s32.totalorder %s103, %s104
    %p116 = scmp.eq.s32.totalorder %s19, 3
    %p117 = por %p115, %p116
    %p119 = scmp.ne.s32.totalorder %s104, %s118
    %p120 = scmp.eq.s32.totalorder %s19, 0
    %p121 = por %p119, %p120
    %s122 = ssub.s32 %s20, %s32
    %s123 = ssub.s32 %s21, %s28
    %s124 = sor.u32 %s122, %s123
    %p125 = scmp.eq.s32.totalorder %s124, 0
    %s127 = sadd.s32 %s126, 1
    %s128 = scalar_select %p125, %s126, %s127
    %p131 = pneg %p125
    %p132 = scmp.eq.s32.totalorder %s13, 3
    %p133 = por %p131, %p132
    %p134 = scmp.ne.s32.totalorder %s126, %s129
    %p135 = scmp.eq.s32.totalorder %s13, 0
    %p136 = por %p134, %p135
    %p137 = scmp.ne.s32.totalorder %s126, %s129
    %p138 = scmp.eq.s32.totalorder %s18, 3
    %p139 = por %p137, %p138
    %p140 = scmp.ne.s32.totalorder %s129, %s130
    %p141 = scmp.eq.s32.totalorder %s18, 0
    %p142 = por %p140, %p141
    %p143 = scmp.ne.s32.totalorder %s129, %s130
    %p144 = scmp.eq.s32.totalorder %s19, 3
    %p145 = por %p143, %p144
    %p147 = scmp.ne.s32.totalorder %s130, %s146
    %p148 = scmp.eq.s32.totalorder %s19, 0
    %p149 = por %p147, %p148
    %s150 = ssub.s32 %s20, %s32
    %p151 = scmp.eq.s32.totalorder %s150, 0
    %s153 = sadd.s32 %s152, 1
    %s154 = scalar_select %p151, %s152, %s153
    %p157 = pneg %p151
    %p158 = scmp.eq.s32.totalorder %s13, 3
    %p159 = por %p157, %p158
    %p160 = scmp.ne.s32.totalorder %s152, %s155
    %p161 = scmp.eq.s32.totalorder %s13, 0
    %p162 = por %p160, %p161
    %p163 = scmp.ne.s32.totalorder %s152, %s155
    %p164 = scmp.eq.s32.totalorder %s18, 3
    %p165 = por %p163, %p164
    %p166 = scmp.ne.s32.totalorder %s155, %s156
    %p167 = scmp.eq.s32.totalorder %s18, 0
    %p168 = por %p166, %p167
    %p169 = scmp.ne.s32.totalorder %s155, %s156
    %p170 = scmp.eq.s32.totalorder %s19, 3
    %p171 = por %p169, %p170
    %p173 = scmp.ne.s32.totalorder %s156, %s172
    %p174 = scmp.eq.s32.totalorder %s19, 0
    %p175 = por %p173, %p174
    %s176 = ssub.s32 %s20, %s32
    %p177 = scmp.eq.s32.totalorder %s176, 0
    %s179 = sadd.s32 %s178, 1
    %s180 = scalar_select %p177, %s178, %s179
    %p183 = pneg %p177
    %p184 = scmp.eq.s32.totalorder %s13, 3
    %p185 = por %p183, %p184
    %p186 = scmp.ne.s32.totalorder %s178, %s181
    %p187 = scmp.eq.s32.totalorder %s13, 0
    %p188 = por %p186, %p187
    %p189 = scmp.ne.s32.totalorder %s178, %s181
    %p190 = scmp.eq.s32.totalorder %s18, 3
    %p191 = por %p189, %p190
    %p192 = scmp.ne.s32.totalorder %s181, %s182
    %p193 = scmp.eq.s32.totalorder %s18, 0
    %p194 = por %p192, %p193
    %p195 = scmp.ne.s32.totalorder %s181, %s182
    %p196 = scmp.eq.s32.totalorder %s19, 3
    %p197 = por %p195, %p196
    %p199 = scmp.ne.s32.totalorder %s182, %s198
    %p200 = scmp.eq.s32.totalorder %s19, 0
    %p201 = por %p199, %p200
    %p202 = scmp.le.s32.totalorder 1, %s13
    %p203 = scmp.lt.s32.totalorder %s13, 5
    %p204 = pnand %p202, %p203
    %p205 = pneg %p204
    // Predicated region
    $region9: #{_lambda_.4} parent=5 // pred_check
      _
    $region10: #{_lambda_.4} parent=5 // pred_check_branch
      %207 = sbr.rel (%p204) target = $region12
    $region11: #{_lambda_.4} parent=5 // pred_region
      %s208 = ssub.s32 %s13, 1
      // Predicated region
      $region13: #{_lambda_.4} parent=11 // pred_check
        %p209 = pneg %p72
      $region14: #{_lambda_.4} parent=11 // pred_check_branch
        %211 = sbr.rel (%p209) target = $region16
      $region15: #{_lambda_.4} parent=11 // pred_region
        _
      $region16: #{_lambda_.4} parent=11 // pred_fallthru
        _
      // Predicated region
      $region17: #{_lambda_.4} parent=11 // pred_check
        %p212 = pneg %p93
      $region18: #{_lambda_.4} parent=11 // pred_check_branch
        %214 = sbr.rel (%p212) target = $region20
      $region19: #{_lambda_.4} parent=11 // pred_region
        _
      $region20: #{_lambda_.4} parent=11 // pred_fallthru
        _
      // Predicated region
      $region21: #{_lambda_.4} parent=11 // pred_check
        %p215 = pneg %p114
      $region22: #{_lambda_.4} parent=11 // pred_check_branch
        %217 = sbr.rel (%p215) target = $region24
      $region23: #{_lambda_.4} parent=11 // pred_region
        _
      $region24: #{_lambda_.4} parent=11 // pred_fallthru
        _
    $region12: #{_lambda_.4} parent=5 // pred_fallthru
      _
    %p218 = scmp.lt.s32.totalorder %s13, 4
    // Predicated region
    $region25: #{_lambda_.4} parent=5 // pred_check
      %p219 = pneg %p218
    $region26: #{_lambda_.4} parent=5 // pred_check_branch
      %221 = sbr.rel (%p219) target = $region28
    $region27: #{_lambda_.4} parent=5 // pred_region
      // Predicated region
      $region29: #{_lambda_.4} parent=27 // pred_check
        %p222 = pneg %p45
      $region30: #{_lambda_.4} parent=27 // pred_check_branch
        %224 = sbr.rel (%p222) target = $region32
      $region31: #{_lambda_.4} parent=27 // pred_region
        %p225 = scmp.lt.s32.totalorder %s20, 1
        %s226 = scalar_select %p225, %s20, 1
        %s227 = smul.addr %s226, 32
        %s228 = smul.addr %s227, 8
        %s229 = scalar_lea.vmem %s0, %s228
      $region32: #{_lambda_.4} parent=27 // pred_fallthru
        _
    $region28: #{_lambda_.4} parent=5 // pred_fallthru
      _
    %p230 = scmp.le.s32.totalorder 1, %s13
    %p231 = scmp.lt.s32.totalorder %s13, 5
    %p232 = pnand %p230, %p231
    %p233 = pneg %p232
    // Predicated region
    $region33: #{_lambda_.4} parent=5 // pred_check
      _
    $region34: #{_lambda_.4} parent=5 // pred_check_branch
      %235 = sbr.rel (%p232) target = $region36
    $region35: #{_lambda_.4} parent=5 // pred_region
      %s236 = ssub.s32 %s13, 1
      %p237 = scmp.lt.s32.totalorder %s22, 1
      %s238 = scalar_select %p237, %s22, 1
      %s239 = smul.addr %s238, 32
      %s240 = smul.addr %s239, 8
      %s241 = scalar_lea.vmem %s0, %s240
      %p242 = pneg %p51
      %p243 = pneg %p48
      %p244 = pneg %p72
      %p245 = pneg %p69
      %p246 = pneg %p93
      %p247 = pneg %p90
      %p248 = pneg %p114
      %p249 = pneg %p111
      %p250 = pneg %p142
      %p251 = pneg %p139
      %s252 = smul.u32 8, %s23
      %p253 = scmp.lt.s32.totalorder %s22, 1
      %s254 = scalar_select %p253, %s22, 1
      %p255 = scmp.lt.s32.totalorder %s252, 15
      %s256 = scalar_select %p255, %s252, 15
      %s257 = smul.addr %s256, 2
      %s258 = smul.addr %s254, 32
      %s259 = sadd.s32 %s257, %s258
      %s260 = smul.addr %s259, 8
      %s261 = scalar_lea.vmem %s4, %s260
      %p262 = pneg %p168
      %p263 = pneg %p165
      %p264 = scmp.lt.s32.totalorder %s22, 1
      %s265 = scalar_select %p264, %s22, 1
      %s266 = scalar_lea.vmem %s5, %s265
      %p267 = pneg %p194
      %p268 = pneg %p191
      %p269 = scmp.lt.s32.totalorder %s22, 1
      %s270 = scalar_select %p269, %s22, 1
      %s271 = scalar_lea.vmem %s6, %s270
      %p272 = scmp.lt.s32.totalorder %s22, 1
      %s273 = scalar_select %p272, %s22, 1
      %s274 = smul.addr %s273, 32
      %s275 = smul.addr %s274, 8
      %s276 = scalar_lea.vmem %s0, %s275
      %s277 = smul.u32 8, %s23
      %p278 = scmp.lt.s32.totalorder %s22, 1
      %s279 = scalar_select %p278, %s22, 1
      %p280 = scmp.lt.s32.totalorder %s277, 15
      %s281 = scalar_select %p280, %s277, 15
      %s282 = smul.addr %s281, 2
      %s283 = smul.addr %s279, 32
      %s284 = sadd.s32 %s282, %s283
      %s285 = smul.addr %s284, 8
      %s286 = scalar_lea.vmem %s4, %s285
      %s287 = smul.u32 8, %s23
      %p288 = scmp.lt.s32.totalorder %s22, 1
      %s289 = scalar_select %p288, %s22, 1
      %s290 = scalar_lea.vmem %s5, %s289
      %p291 = scmp.lt.s32.totalorder %s22, 1
      %s292 = scalar_select %p291, %s22, 1
      %s293 = scalar_lea.vmem %s6, %s292
      %p294 = scmp.eq.s32.totalorder %s23, 0
      // Predicated region
      $region37: #{_lambda_.4} parent=35 // pred_check
        %p295 = pneg %p294
      $region38: #{_lambda_.4} parent=35 // pred_check_branch
        %297 = sbr.rel (%p295) target = $region40
      $region39: #{_lambda_.4} parent=35 // pred_region
        %v298 = vld [vmem:[%s276] sm:$0xff]
        %v299 = vld [vmem:[%s276 + $0x8] sm:$0xff]
        %v300 = vld [vmem:[%s276 + $0x10] sm:$0xff]
        %v301 = vld [vmem:[%s276 + $0x18] sm:$0xff]
        %v302 = vld [vmem:[%s276 + $0x20] sm:$0xff]
        %v303 = vld [vmem:[%s276 + $0x28] sm:$0xff]
        %v304 = vld [vmem:[%s276 + $0x30] sm:$0xff]
        %v305 = vld [vmem:[%s276 + $0x38] sm:$0xff]
        %v306 = vld [vmem:[%s276 + $0x40] sm:$0xff]
        %v307 = vld [vmem:[%s276 + $0x48] sm:$0xff]
        %v308 = vld [vmem:[%s276 + $0x50] sm:$0xff]
        %v309 = vld [vmem:[%s276 + $0x58] sm:$0xff]
        %v310 = vld [vmem:[%s276 + $0x60] sm:$0xff]
        %v311 = vld [vmem:[%s276 + $0x68] sm:$0xff]
        %v312 = vld [vmem:[%s276 + $0x70] sm:$0xff]
        %v313 = vld [vmem:[%s276 + $0x78] sm:$0xff]
        %v314 = vld [vmem:[%s276 + $0x80] sm:$0xff]
        %v315 = vld [vmem:[%s276 + $0x88] sm:$0xff]
        %v316 = vld [vmem:[%s276 + $0x90] sm:$0xff]
        %v317 = vld [vmem:[%s276 + $0x98] sm:$0xff]
        %v318 = vld [vmem:[%s276 + $0xa0] sm:$0xff]
        %v319 = vld [vmem:[%s276 + $0xa8] sm:$0xff]
        %v320 = vld [vmem:[%s276 + $0xb0] sm:$0xff]
        %v321 = vld [vmem:[%s276 + $0xb8] sm:$0xff]
        %v322 = vld [vmem:[%s276 + $0xc0] sm:$0xff]
        %v323 = vld [vmem:[%s276 + $0xc8] sm:$0xff]
        %v324 = vld [vmem:[%s276 + $0xd0] sm:$0xff]
        %v325 = vld [vmem:[%s276 + $0xd8] sm:$0xff]
        %v326 = vld [vmem:[%s276 + $0xe0] sm:$0xff]
        %v327 = vld [vmem:[%s276 + $0xe8] sm:$0xff]
        %v328 = vld [vmem:[%s276 + $0xf0] sm:$0xff]
        %v329 = vld [vmem:[%s276 + $0xf8] sm:$0xff]
        %v330 = vld [vmem:[%s1] sm:$0x1]
        %v331 = vld [vmem:[%s2] sm:$0x1]
        %v333 = vlaneseq
        %v334 = vshrl.u32 %v333, 7
        %v335 = vsub.s32 0, %v334
        %v336 = vrot.slane %v330, %v335
        %v338 = vmul.f32 %v298, %v336
        %v339 = vmul.f32 %v299, %v336
        %v340 = vmul.f32 %v300, %v336
        %v341 = vmul.f32 %v301, %v336
        %v342 = vmul.f32 %v302, %v336
        %v343 = vmul.f32 %v303, %v336
        %v344 = vmul.f32 %v304, %v336
        %v345 = vmul.f32 %v305, %v336
        %v346 = vmul.f32 %v306, %v336
        %v347 = vmul.f32 %v307, %v336
        %v348 = vmul.f32 %v308, %v336
        %v349 = vmul.f32 %v309, %v336
        %v350 = vmul.f32 %v310, %v336
        %v351 = vmul.f32 %v311, %v336
        %v352 = vmul.f32 %v312, %v336
        %v353 = vmul.f32 %v313, %v336
        %v354 = vmul.f32 %v314, %v336
        %v355 = vmul.f32 %v315, %v336
        %v356 = vmul.f32 %v316, %v336
        %v357 = vmul.f32 %v317, %v336
        %v358 = vmul.f32 %v318, %v336
        %v359 = vmul.f32 %v319, %v336
        %v360 = vmul.f32 %v320, %v336
        %v361 = vmul.f32 %v321, %v336
        %v362 = vmul.f32 %v322, %v336
        %v363 = vmul.f32 %v323, %v336
        %v364 = vmul.f32 %v324, %v336
        %v365 = vmul.f32 %v325, %v336
        %v366 = vmul.f32 %v326, %v336
        %v367 = vmul.f32 %v327, %v336
        %v368 = vmul.f32 %v328, %v336
        %v369 = vmul.f32 %v329, %v336
        %v371 = vlaneseq
        %v372 = vshrl.u32 %v371, 7
        %v373 = vsub.s32 0, %v372
        %v374 = vrot.slane %v331, %v373
        %v376 = vadd.f32 %v338, %v374
        %v377 = vadd.f32 %v339, %v374
        %v378 = vadd.f32 %v340, %v374
        %v379 = vadd.f32 %v341, %v374
        %v380 = vadd.f32 %v342, %v374
        %v381 = vadd.f32 %v343, %v374
        %v382 = vadd.f32 %v344, %v374
        %v383 = vadd.f32 %v345, %v374
        %v384 = vadd.f32 %v346, %v374
        %v385 = vadd.f32 %v347, %v374
        %v386 = vadd.f32 %v348, %v374
        %v387 = vadd.f32 %v349, %v374
        %v388 = vadd.f32 %v350, %v374
        %v389 = vadd.f32 %v351, %v374
        %v390 = vadd.f32 %v352, %v374
        %v391 = vadd.f32 %v353, %v374
        %v392 = vadd.f32 %v354, %v374
        %v393 = vadd.f32 %v355, %v374
        %v394 = vadd.f32 %v356, %v374
        %v395 = vadd.f32 %v357, %v374
        %v396 = vadd.f32 %v358, %v374
        %v397 = vadd.f32 %v359, %v374
        %v398 = vadd.f32 %v360, %v374
        %v399 = vadd.f32 %v361, %v374
        %v400 = vadd.f32 %v362, %v374
        %v401 = vadd.f32 %v363, %v374
        %v402 = vadd.f32 %v364, %v374
        %v403 = vadd.f32 %v365, %v374
        %v404 = vadd.f32 %v366, %v374
        %v405 = vadd.f32 %v367, %v374
        %v406 = vadd.f32 %v368, %v374
        %v407 = vadd.f32 %v369, %v374
        %v408 = vmax.f32 %v376, 0.0
        %v409 = vmax.f32 %v377, 0.0
        %v410 = vmax.f32 %v378, 0.0
        %v411 = vmax.f32 %v379, 0.0
        %v412 = vmax.f32 %v380, 0.0
        %v413 = vmax.f32 %v381, 0.0
        %v414 = vmax.f32 %v382, 0.0
        %v415 = vmax.f32 %v383, 0.0
        %v416 = vmax.f32 %v384, 0.0
        %v417 = vmax.f32 %v385, 0.0
        %v418 = vmax.f32 %v386, 0.0
        %v419 = vmax.f32 %v387, 0.0
        %v420 = vmax.f32 %v388, 0.0
        %v421 = vmax.f32 %v389, 0.0
        %v422 = vmax.f32 %v390, 0.0
        %v423 = vmax.f32 %v391, 0.0
        %v424 = vmax.f32 %v392, 0.0
        %v425 = vmax.f32 %v393, 0.0
        %v426 = vmax.f32 %v394, 0.0
        %v427 = vmax.f32 %v395, 0.0
        %v428 = vmax.f32 %v396, 0.0
        %v429 = vmax.f32 %v397, 0.0
        %v430 = vmax.f32 %v398, 0.0
        %v431 = vmax.f32 %v399, 0.0
        %v432 = vmax.f32 %v400, 0.0
        %v433 = vmax.f32 %v401, 0.0
        %v434 = vmax.f32 %v402, 0.0
        %v435 = vmax.f32 %v403, 0.0
        %v436 = vmax.f32 %v404, 0.0
        %v437 = vmax.f32 %v405, 0.0
        %v438 = vmax.f32 %v406, 0.0
        %v439 = vmax.f32 %v407, 0.0
        %vm472 = vcmask 1040384
        %v473 = vrot.slane %v408, 7
        %v474 = vrot.slane %v409, 7
        %v475 = vsel %vm472, %v473, %v474
        %v476 = vrot.slane %v410, 7
        %v477 = vrot.slane %v411, 7
        %v478 = vsel %vm472, %v476, %v477
        %v479 = vrot.slane %v412, 7
        %v480 = vrot.slane %v413, 7
        %v481 = vsel %vm472, %v479, %v480
        %v482 = vrot.slane %v414, 7
        %v483 = vrot.slane %v415, 7
        %v484 = vsel %vm472, %v482, %v483
        %v485 = vrot.slane %v416, 7
        %v486 = vrot.slane %v417, 7
        %v487 = vsel %vm472, %v485, %v486
        %v488 = vrot.slane %v418, 7
        %v489 = vrot.slane %v419, 7
        %v490 = vsel %vm472, %v488, %v489
        %v491 = vrot.slane %v420, 7
        %v492 = vrot.slane %v421, 7
        %v493 = vsel %vm472, %v491, %v492
        %v494 = vrot.slane %v422, 7
        %v495 = vrot.slane %v423, 7
        %v496 = vsel %vm472, %v494, %v495
        %v497 = vrot.slane %v424, 7
        %v498 = vrot.slane %v425, 7
        %v499 = vsel %vm472, %v497, %v498
        %v500 = vrot.slane %v426, 7
        %v501 = vrot.slane %v427, 7
        %v502 = vsel %vm472, %v500, %v501
        %v503 = vrot.slane %v428, 7
        %v504 = vrot.slane %v429, 7
        %v505 = vsel %vm472, %v503, %v504
        %v506 = vrot.slane %v430, 7
        %v507 = vrot.slane %v431, 7
        %v508 = vsel %vm472, %v506, %v507
        %v509 = vrot.slane %v432, 7
        %v510 = vrot.slane %v433, 7
        %v511 = vsel %vm472, %v509, %v510
        %v512 = vrot.slane %v434, 7
        %v513 = vrot.slane %v435, 7
        %v514 = vsel %vm472, %v512, %v513
        %v515 = vrot.slane %v436, 7
        %v516 = vrot.slane %v437, 7
        %v517 = vsel %vm472, %v515, %v516
        %v518 = vrot.slane %v438, 7
        %v519 = vrot.slane %v439, 7
        %v520 = vsel %vm472, %v518, %v519
        %v553 = vsel %vm472, 0.0, %v473
        %v554 = vsel %vm472, 0.0, %v476
        %v555 = vsel %vm472, 0.0, %v479
        %v556 = vsel %vm472, 0.0, %v482
        %v557 = vsel %vm472, 0.0, %v485
        %v558 = vsel %vm472, 0.0, %v488
        %v559 = vsel %vm472, 0.0, %v491
        %v560 = vsel %vm472, 0.0, %v494
        %v561 = vsel %vm472, 0.0, %v497
        %v562 = vsel %vm472, 0.0, %v500
        %v563 = vsel %vm472, 0.0, %v503
        %v564 = vsel %vm472, 0.0, %v506
        %v565 = vsel %vm472, 0.0, %v509
        %v566 = vsel %vm472, 0.0, %v512
        %v567 = vsel %vm472, 0.0, %v515
        %v568 = vsel %vm472, 0.0, %v518
        %vm569 = vcmask 1046528
        %v570 = vrot.slane %v408, 1
        %v571 = vrot.slane %v409, 1
        %v572 = vsel %vm569, %v570, %v571
        %v573 = vrot.slane %v410, 1
        %v574 = vrot.slane %v411, 1
        %v575 = vsel %vm569, %v573, %v574
        %v576 = vrot.slane %v412, 1
        %v577 = vrot.slane %v413, 1
        %v578 = vsel %vm569, %v576, %v577
        %v579 = vrot.slane %v414, 1
        %v580 = vrot.slane %v415, 1
        %v581 = vsel %vm569, %v579, %v580
        %v582 = vrot.slane %v416, 1
        %v583 = vrot.slane %v417, 1
        %v584 = vsel %vm569, %v582, %v583
        %v585 = vrot.slane %v418, 1
        %v586 = vrot.slane %v419, 1
        %v587 = vsel %vm569, %v585, %v586
        %v588 = vrot.slane %v420, 1
        %v589 = vrot.slane %v421, 1
        %v590 = vsel %vm569, %v588, %v589
        %v591 = vrot.slane %v422, 1
        %v592 = vrot.slane %v423, 1
        %v593 = vsel %vm569, %v591, %v592
        %v594 = vrot.slane %v424, 1
        %v595 = vrot.slane %v425, 1
        %v596 = vsel %vm569, %v594, %v595
        %v597 = vrot.slane %v426, 1
        %v598 = vrot.slane %v427, 1
        %v599 = vsel %vm569, %v597, %v598
        %v600 = vrot.slane %v428, 1
        %v601 = vrot.slane %v429, 1
        %v602 = vsel %vm569, %v600, %v601
        %v603 = vrot.slane %v430, 1
        %v604 = vrot.slane %v431, 1
        %v605 = vsel %vm569, %v603, %v604
        %v606 = vrot.slane %v432, 1
        %v607 = vrot.slane %v433, 1
        %v608 = vsel %vm569, %v606, %v607
        %v609 = vrot.slane %v434, 1
        %v610 = vrot.slane %v435, 1
        %v611 = vsel %vm569, %v609, %v610
        %v612 = vrot.slane %v436, 1
        %v613 = vrot.slane %v437, 1
        %v614 = vsel %vm569, %v612, %v613
        %v615 = vrot.slane %v438, 1
        %v616 = vrot.slane %v439, 1
        %v617 = vsel %vm569, %v615, %v616
        %v634 = vsel %vm569, %v571, 0.0
        %v635 = vsel %vm569, %v574, 0.0
        %v636 = vsel %vm569, %v577, 0.0
        %v637 = vsel %vm569, %v580, 0.0
        %v638 = vsel %vm569, %v583, 0.0
        %v639 = vsel %vm569, %v586, 0.0
        %v640 = vsel %vm569, %v589, 0.0
        %v641 = vsel %vm569, %v592, 0.0
        %v642 = vsel %vm569, %v595, 0.0
        %v643 = vsel %vm569, %v598, 0.0
        %v644 = vsel %vm569, %v601, 0.0
        %v645 = vsel %vm569, %v604, 0.0
        %v646 = vsel %vm569, %v607, 0.0
        %v647 = vsel %vm569, %v610, 0.0
        %v648 = vsel %vm569, %v613, 0.0
        %v649 = vsel %vm569, %v616, 0.0
        %650 = vrot.lane.b32.xlu0 %v408, 4
        %v651 = vpop.permute.xlu0 %650
        %652 = vrot.lane.b32.xlu0 %v409, 4
        %v653 = vpop.permute.xlu0 %652
        %654 = vrot.lane.b32.xlu0 %v410, 4
        %v655 = vpop.permute.xlu0 %654
        %656 = vrot.lane.b32.xlu0 %v411, 4
        %v657 = vpop.permute.xlu0 %656
        %658 = vrot.lane.b32.xlu0 %v412, 4
        %v659 = vpop.permute.xlu0 %658
        %660 = vrot.lane.b32.xlu0 %v413, 4
        %v661 = vpop.permute.xlu0 %660
        %662 = vrot.lane.b32.xlu0 %v414, 4
        %v663 = vpop.permute.xlu0 %662
        %664 = vrot.lane.b32.xlu0 %v415, 4
        %v665 = vpop.permute.xlu0 %664
        %666 = vrot.lane.b32.xlu0 %v416, 4
        %v667 = vpop.permute.xlu0 %666
        %668 = vrot.lane.b32.xlu0 %v417, 4
        %v669 = vpop.permute.xlu0 %668
        %670 = vrot.lane.b32.xlu0 %v418, 4
        %v671 = vpop.permute.xlu0 %670
        %672 = vrot.lane.b32.xlu0 %v419, 4
        %v673 = vpop.permute.xlu0 %672
        %674 = vrot.lane.b32.xlu0 %v420, 4
        %v675 = vpop.permute.xlu0 %674
        %676 = vrot.lane.b32.xlu0 %v421, 4
        %v677 = vpop.permute.xlu0 %676
        %678 = vrot.lane.b32.xlu0 %v422, 4
        %v679 = vpop.permute.xlu0 %678
        %680 = vrot.lane.b32.xlu0 %v423, 4
        %v681 = vpop.permute.xlu0 %680
        %682 = vrot.lane.b32.xlu0 %v424, 4
        %v683 = vpop.permute.xlu0 %682
        %684 = vrot.lane.b32.xlu0 %v425, 4
        %v685 = vpop.permute.xlu0 %684
        %686 = vrot.lane.b32.xlu0 %v426, 4
        %v687 = vpop.permute.xlu0 %686
        %688 = vrot.lane.b32.xlu0 %v427, 4
        %v689 = vpop.permute.xlu0 %688
        %690 = vrot.lane.b32.xlu0 %v428, 4
        %v691 = vpop.permute.xlu0 %690
        %692 = vrot.lane.b32.xlu0 %v429, 4
        %v693 = vpop.permute.xlu0 %692
        %694 = vrot.lane.b32.xlu0 %v430, 4
        %v695 = vpop.permute.xlu0 %694
        %696 = vrot.lane.b32.xlu0 %v431, 4
        %v697 = vpop.permute.xlu0 %696
        %698 = vrot.lane.b32.xlu0 %v432, 4
        %v699 = vpop.permute.xlu0 %698
        %700 = vrot.lane.b32.xlu0 %v433, 4
        %v701 = vpop.permute.xlu0 %700
        %702 = vrot.lane.b32.xlu0 %v434, 4
        %v703 = vpop.permute.xlu0 %702
        %704 = vrot.lane.b32.xlu0 %v435, 4
        %v705 = vpop.permute.xlu0 %704
        %706 = vrot.lane.b32.xlu0 %v436, 4
        %v707 = vpop.permute.xlu0 %706
        %708 = vrot.lane.b32.xlu0 %v437, 4
        %v709 = vpop.permute.xlu0 %708
        %710 = vrot.lane.b32.xlu0 %v438, 4
        %v711 = vpop.permute.xlu0 %710
        %712 = vrot.lane.b32.xlu0 %v439, 4
        %v713 = vpop.permute.xlu0 %712
        %762 = vrot.lane.b32.xlu0 %v572, 8
        %v763 = vpop.permute.xlu0 %762
        %764 = vrot.lane.b32.xlu0 %v634, 8
        %v765 = vpop.permute.xlu0 %764
        %766 = vrot.lane.b32.xlu0 %v575, 8
        %v767 = vpop.permute.xlu0 %766
        %768 = vrot.lane.b32.xlu0 %v635, 8
        %v769 = vpop.permute.xlu0 %768
        %770 = vrot.lane.b32.xlu0 %v578, 8
        %v771 = vpop.permute.xlu0 %770
        %772 = vrot.lane.b32.xlu0 %v636, 8
        %v773 = vpop.permute.xlu0 %772
        %774 = vrot.lane.b32.xlu0 %v581, 8
        %v775 = vpop.permute.xlu0 %774
        %776 = vrot.lane.b32.xlu0 %v637, 8
        %v777 = vpop.permute.xlu0 %776
        %778 = vrot.lane.b32.xlu0 %v584, 8
        %v779 = vpop.permute.xlu0 %778
        %780 = vrot.lane.b32.xlu0 %v638, 8
        %v781 = vpop.permute.xlu0 %780
        %782 = vrot.lane.b32.xlu0 %v587, 8
        %v783 = vpop.permute.xlu0 %782
        %784 = vrot.lane.b32.xlu0 %v639, 8
        %v785 = vpop.permute.xlu0 %784
        %786 = vrot.lane.b32.xlu0 %v590, 8
        %v787 = vpop.permute.xlu0 %786
        %788 = vrot.lane.b32.xlu0 %v640, 8
        %v789 = vpop.permute.xlu0 %788
        %790 = vrot.lane.b32.xlu0 %v593, 8
        %v791 = vpop.permute.xlu0 %790
        %792 = vrot.lane.b32.xlu0 %v641, 8
        %v793 = vpop.permute.xlu0 %792
        %794 = vrot.lane.b32.xlu0 %v596, 8
        %v795 = vpop.permute.xlu0 %794
        %796 = vrot.lane.b32.xlu0 %v642, 8
        %v797 = vpop.permute.xlu0 %796
        %798 = vrot.lane.b32.xlu0 %v599, 8
        %v799 = vpop.permute.xlu0 %798
        %800 = vrot.lane.b32.xlu0 %v643, 8
        %v801 = vpop.permute.xlu0 %800
        %802 = vrot.lane.b32.xlu0 %v602, 8
        %v803 = vpop.permute.xlu0 %802
        %804 = vrot.lane.b32.xlu0 %v644, 8
        %v805 = vpop.permute.xlu0 %804
        %806 = vrot.lane.b32.xlu0 %v605, 8
        %v807 = vpop.permute.xlu0 %806
        %808 = vrot.lane.b32.xlu0 %v645, 8
        %v809 = vpop.permute.xlu0 %808
        %810 = vrot.lane.b32.xlu0 %v608, 8
        %v811 = vpop.permute.xlu0 %810
        %812 = vrot.lane.b32.xlu0 %v646, 8
        %v813 = vpop.permute.xlu0 %812
        %814 = vrot.lane.b32.xlu0 %v611, 8
        %v815 = vpop.permute.xlu0 %814
        %816 = vrot.lane.b32.xlu0 %v647, 8
        %v817 = vpop.permute.xlu0 %816
        %818 = vrot.lane.b32.xlu0 %v614, 8
        %v819 = vpop.permute.xlu0 %818
        %820 = vrot.lane.b32.xlu0 %v648, 8
        %v821 = vpop.permute.xlu0 %820
        %822 = vrot.lane.b32.xlu0 %v617, 8
        %v823 = vpop.permute.xlu0 %822
        %824 = vrot.lane.b32.xlu0 %v649, 8
        %v825 = vpop.permute.xlu0 %824
        %vm858 = vcmask 31744
        %v859 = vsel %vm858, %v553, %v651
        %v860 = vsel %vm858, %v475, %v653
        %v861 = vsel %vm858, %v554, %v655
        %v862 = vsel %vm858, %v478, %v657
        %v863 = vsel %vm858, %v555, %v659
        %v864 = vsel %vm858, %v481, %v661
        %v865 = vsel %vm858, %v556, %v663
        %v866 = vsel %vm858, %v484, %v665
        %v867 = vsel %vm858, %v557, %v667
        %v868 = vsel %vm858, %v487, %v669
        %v869 = vsel %vm858, %v558, %v671
        %v870 = vsel %vm858, %v490, %v673
        %v871 = vsel %vm858, %v559, %v675
        %v872 = vsel %vm858, %v493, %v677
        %v873 = vsel %vm858, %v560, %v679
        %v874 = vsel %vm858, %v496, %v681
        %v875 = vsel %vm858, %v561, %v683
        %v876 = vsel %vm858, %v499, %v685
        %v877 = vsel %vm858, %v562, %v687
        %v878 = vsel %vm858, %v502, %v689
        %v879 = vsel %vm858, %v563, %v691
        %v880 = vsel %vm858, %v505, %v693
        %v881 = vsel %vm858, %v564, %v695
        %v882 = vsel %vm858, %v508, %v697
        %v883 = vsel %vm858, %v565, %v699
        %v884 = vsel %vm858, %v511, %v701
        %v885 = vsel %vm858, %v566, %v703
        %v886 = vsel %vm858, %v514, %v705
        %v887 = vsel %vm858, %v567, %v707
        %v888 = vsel %vm858, %v517, %v709
        %v889 = vsel %vm858, %v568, %v711
        %v890 = vsel %vm858, %v520, %v713
        %vm891 = vcmask 64512
        %v892 = vsel %vm891, %v859, %v763
        %v893 = vsel %vm891, %v860, %v765
        %v894 = vsel %vm891, %v861, %v767
        %v895 = vsel %vm891, %v862, %v769
        %v896 = vsel %vm891, %v863, %v771
        %v897 = vsel %vm891, %v864, %v773
        %v898 = vsel %vm891, %v865, %v775
        %v899 = vsel %vm891, %v866, %v777
        %v900 = vsel %vm891, %v867, %v779
        %v901 = vsel %vm891, %v868, %v781
        %v902 = vsel %vm891, %v869, %v783
        %v903 = vsel %vm891, %v870, %v785
        %v904 = vsel %vm891, %v871, %v787
        %v905 = vsel %vm891, %v872, %v789
        %v906 = vsel %vm891, %v873, %v791
        %v907 = vsel %vm891, %v874, %v793
        %v908 = vsel %vm891, %v875, %v795
        %v909 = vsel %vm891, %v876, %v797
        %v910 = vsel %vm891, %v877, %v799
        %v911 = vsel %vm891, %v878, %v801
        %v912 = vsel %vm891, %v879, %v803
        %v913 = vsel %vm891, %v880, %v805
        %v914 = vsel %vm891, %v881, %v807
        %v915 = vsel %vm891, %v882, %v809
        %v916 = vsel %vm891, %v883, %v811
        %v917 = vsel %vm891, %v884, %v813
        %v918 = vsel %vm891, %v885, %v815
        %v919 = vsel %vm891, %v886, %v817
        %v920 = vsel %vm891, %v887, %v819
        %v921 = vsel %vm891, %v888, %v821
        %v922 = vsel %vm891, %v889, %v823
        %v923 = vsel %vm891, %v890, %v825
        %vm924 = vcmask 97280
        %925 = vst.msk [vmem:[#allocation2] sm:$0xff] %vm924, 0.0
        %926 = vst.msk [vmem:[#allocation2 + $0x8] sm:$0xff] %vm924, 0.0
        %927 = vst.msk [vmem:[#allocation2 + $0x10] sm:$0xff] %vm924, %v892
        %928 = vst.msk [vmem:[#allocation2 + $0x18] sm:$0xff] %vm924, %v893
        %929 = vst.msk [vmem:[#allocation2 + $0x20] sm:$0xff] %vm924, %v894
        %930 = vst.msk [vmem:[#allocation2 + $0x28] sm:$0xff] %vm924, %v895
        %931 = vst.msk [vmem:[#allocation2 + $0x30] sm:$0xff] %vm924, %v896
        %932 = vst.msk [vmem:[#allocation2 + $0x38] sm:$0xff] %vm924, %v897
        %933 = vst.msk [vmem:[#allocation2 + $0x40] sm:$0xff] %vm924, %v898
        %934 = vst.msk [vmem:[#allocation2 + $0x48] sm:$0xff] %vm924, %v899
        %935 = vst.msk [vmem:[#allocation2 + $0x50] sm:$0xff] %vm924, %v900
        %936 = vst.msk [vmem:[#allocation2 + $0x58] sm:$0xff] %vm924, %v901
        %937 = vst.msk [vmem:[#allocation2 + $0x60] sm:$0xff] %vm924, %v902
        %938 = vst.msk [vmem:[#allocation2 + $0x68] sm:$0xff] %vm924, %v903
        %939 = vst.msk [vmem:[#allocation2 + $0x70] sm:$0xff] %vm924, %v904
        %940 = vst.msk [vmem:[#allocation2 + $0x78] sm:$0xff] %vm924, %v905
        %941 = vst.msk [vmem:[#allocation2 + $0x80] sm:$0xff] %vm924, %v906
        %942 = vst.msk [vmem:[#allocation2 + $0x88] sm:$0xff] %vm924, %v907
        %943 = vst.msk [vmem:[#allocation2 + $0x90] sm:$0xff] %vm924, %v908
        %944 = vst.msk [vmem:[#allocation2 + $0x98] sm:$0xff] %vm924, %v909
        %945 = vst.msk [vmem:[#allocation2 + $0xa0] sm:$0xff] %vm924, %v910
        %946 = vst.msk [vmem:[#allocation2 + $0xa8] sm:$0xff] %vm924, %v911
        %947 = vst.msk [vmem:[#allocation2 + $0xb0] sm:$0xff] %vm924, %v912
        %948 = vst.msk [vmem:[#allocation2 + $0xb8] sm:$0xff] %vm924, %v913
        %949 = vst.msk [vmem:[#allocation2 + $0xc0] sm:$0xff] %vm924, %v914
        %950 = vst.msk [vmem:[#allocation2 + $0xc8] sm:$0xff] %vm924, %v915
        %951 = vst.msk [vmem:[#allocation2 + $0xd0] sm:$0xff] %vm924, %v916
        %952 = vst.msk [vmem:[#allocation2 + $0xd8] sm:$0xff] %vm924, %v917
        %953 = vst.msk [vmem:[#allocation2 + $0xe0] sm:$0xff] %vm924, %v918
        %954 = vst.msk [vmem:[#allocation2 + $0xe8] sm:$0xff] %vm924, %v919
        %955 = vst.msk [vmem:[#allocation2 + $0xf0] sm:$0xff] %vm924, %v920
        %956 = vst.msk [vmem:[#allocation2 + $0xf8] sm:$0xff] %vm924, %v921
        %957 = vst.msk [vmem:[#allocation2 + $0x100] sm:$0xff] %vm924, %v922
        %958 = vst.msk [vmem:[#allocation2 + $0x108] sm:$0xff] %vm924, %v923
        %959 = vst.msk [vmem:[#allocation2 + $0x110] sm:$0xff] %vm924, 0.0
        %960 = vst.msk [vmem:[#allocation2 + $0x118] sm:$0xff] %vm924, 0.0
        %vm961 = vcmask 24576
        %962 = vst.msk [vmem:[%s290] sm:$0x1] %vm961, 0.0
        %963 = vst.msk [vmem:[%s293] sm:$0x1] %vm961, 0.0
      $region40: #{_lambda_.4} parent=35 // pred_fallthru
        _
      %s964 = smul.u32 %s23, 8
      %s965 = smul.u32 %s964, 16
      %s966 = scalar_lea.vmem [#allocation2], %s965
      %v967 = vld [vmem:[%s966] sm:$0xff]
      %v968 = vld [vmem:[%s966 + $0x8] sm:$0xff]
      %v969 = vld [vmem:[%s966 + $0x10] sm:$0xff]
      %v970 = vld [vmem:[%s966 + $0x18] sm:$0xff]
      %v971 = vld [vmem:[%s966 + $0x20] sm:$0xff]
      %v972 = vld [vmem:[%s966 + $0x28] sm:$0xff]
      %v973 = vld [vmem:[%s966 + $0x30] sm:$0xff]
      %v974 = vld [vmem:[%s966 + $0x38] sm:$0xff]
      %v975 = vld [vmem:[%s966 + $0x40] sm:$0xff]
      %v976 = vld [vmem:[%s966 + $0x48] sm:$0xff]
      %v977 = vld [vmem:[%s966 + $0x50] sm:$0xff]
      %v978 = vld [vmem:[%s966 + $0x58] sm:$0xff]
      %v979 = vld [vmem:[%s966 + $0x60] sm:$0xff]
      %v980 = vld [vmem:[%s966 + $0x68] sm:$0xff]
      %v981 = vld [vmem:[%s966 + $0x70] sm:$0xff]
      %v982 = vld [vmem:[%s966 + $0x78] sm:$0xff]
      %v983 = vld [vmem:[%s966 + $0x80] sm:$0xff]
      %v984 = vld [vmem:[%s966 + $0x88] sm:$0xff]
      %v985 = vld [vmem:[%s966 + $0x90] sm:$0xff]
      %v986 = vld [vmem:[%s966 + $0x98] sm:$0xff]
      %v987 = vld [vmem:[%s3] sm:$0xff]
      %v988 = vld [vmem:[%s3 + $0x8] sm:$0xf]
      %s989 = scalar_lea.vmem %s3, 16
      %v990 = vld [vmem:[%s989] sm:$0xff]
      %v991 = vld [vmem:[%s989 + $0x8] sm:$0xf]
      %vm992 = vcmask 97280
      %v994 = vsel %vm992, %v969, 0
      %v997 = vsel %vm992, %v970, 0
      %v1000 = vsel %vm992, %v971, 0
      %v1003 = vsel %vm992, %v972, 0
      %v1006 = vsel %vm992, %v973, 0
      %v1009 = vsel %vm992, %v974, 0
      %v1012 = vsel %vm992, %v975, 0
      %v1015 = vsel %vm992, %v976, 0
      %v1018 = vsel %vm992, %v977, 0
      %v1021 = vsel %vm992, %v978, 0
      %v1024 = vsel %vm992, %v979, 0
      %v1027 = vsel %vm992, %v980, 0
      %v1030 = vsel %vm992, %v981, 0
      %v1033 = vsel %vm992, %v982, 0
      %v1036 = vsel %vm992, %v983, 0
      %v1039 = vsel %vm992, %v984, 0
      %vm1041 = vcmask 1043456
      %v1043 = vsel %vm1041, %v991, 0
      %1045 = vmatprep.subr.mxu0 0.0
      %1046 = vmatpush1.msra.mxu0 %v990
      %1047 = vmatprep.subr.mxu0 0.0
      %1048 = vmatpush1.msra.mxu0 %v1043
      %1049 = vmatprep.subr.mxu0 0.0
      %1050 = vmatpush1.msra.mxu0 0.0
      %1051 = vmatprep.subr.mxu0 0.0
      %1052 = vmatpush1.msra.mxu0 0.0
      %1053 = vmatprep.subr.mxu0 0.0
      %1054 = vmatpush1.msra.mxu0 0.0
      %1055 = vmatprep.subr.mxu0 0.0
      %1056 = vmatpush1.msra.mxu0 0.0
      %1057 = vmatprep.subr.mxu0 0.0
      %1058 = vmatpush1.msra.mxu0 0.0
      %1059 = vmatprep.subr.mxu0 0.0
      %1060 = vmatpush1.msra.mxu0 0.0
      %1061 = vmatprep.subr.mxu0 0.0
      %1062 = vmatpush1.msra.mxu0 0.0
      %1063 = vmatprep.subr.mxu0 0.0
      %1064 = vmatpush1.msra.mxu0 0.0
      %1065 = vmatprep.subr.mxu0 0.0
      %1066 = vmatpush1.msra.mxu0 0.0
      %1067 = vmatprep.subr.mxu0 0.0
      %1068 = vmatpush1.msra.mxu0 0.0
      %1069 = vmatprep.subr.mxu0 0.0
      %1070 = vmatpush1.msra.mxu0 0.0
      %1071 = vmatprep.subr.mxu0 0.0
      %1072 = vmatpush1.msra.mxu0 0.0
      %1073 = vmatprep.subr.mxu0 0.0
      %1074 = vmatpush1.msra.mxu0 0.0
      %1075 = vmatprep.subr.mxu0 0.0
      %1076 = vmatpush1.msra.mxu0 0.0
      %1077 = vmatprep.subr.mxu0 0.0
      %1078 = vmatpush1.msra.mxu0 0.0
      %1079 = vmatprep.subr.mxu0 0.0
      %1080 = vmatpush1.msra.mxu0 0.0
      %1081 = vmatprep.subr.mxu0 0.0
      %1082 = vmatpush1.msra.mxu0 0.0
      %1083 = vmatprep.subr.mxu0 0.0
      %1084 = vmatpush1.msra.mxu0 0.0
      %1085 = vmatprep.subr.mxu0 0.0
      %1086 = vmatpush1.msra.mxu0 0.0
      %1087 = vmatprep.subr.mxu0 0.0
      %1088 = vmatpush1.msra.mxu0 0.0
      %1089 = vmatprep.subr.mxu0 0.0
      %1090 = vmatpush1.msra.mxu0 0.0
      %1091 = vmatprep.subr.mxu0 0.0
      %1092 = vmatpush1.msra.mxu0 0.0
      %1093 = vmatprep.subr.mxu0 0.0
      %1094 = vmatpush1.msra.mxu0 0.0
      %1095 = vmatprep.subr.mxu0 0.0
      %1096 = vmatpush1.msra.mxu0 0.0
      %1097 = vmatprep.subr.mxu0 0.0
      %1098 = vmatpush1.msra.mxu0 0.0
      %1099 = vmatprep.subr.mxu0 0.0
      %1100 = vmatpush1.msra.mxu0 0.0
      %1101 = vmatprep.subr.mxu0 0.0
      %1102 = vmatpush1.msra.mxu0 0.0
      %1103 = vmatprep.subr.mxu0 0.0
      %1104 = vmatpush1.msra.mxu0 0.0
      %1105 = vmatprep.subr.mxu0 0.0
      %1106 = vmatpush1.msra.mxu0 0.0
      %1107 = vmatprep.subr.mxu0 0.0
      %1108 = vmatpush1.msra.mxu0 0.0
      %1109 = vmatprep.mubr.f32.mxu0 0.0
      %1110 = vmatmul.mubr.f32.gmra.mrb[0].mxu0 %v994
      %v1111 = vpop.f32.mrb[0].mxu0
      %v1112 = vadd.f32 0.0, %v1111
      %v1113 = vpop.f32.mrb[0].mxu0
      %1114 = vmatprep.mubr.f32.mxu0 0.0
      %1115 = vmatmul.mubr.f32.gmra.mrb[0].mxu0 %v997
      %v1116 = vpop.f32.mrb[0].mxu0
      %v1117 = vadd.f32 0.0, %v1116
      %v1118 = vpop.f32.mrb[0].mxu0
      %1119 = vmatprep.mubr.f32.mxu0 0.0
      %1120 = vmatmul.mubr.f32.gmra.mrb[0].mxu0 %v1000
      %v1121 = vpop.f32.mrb[0].mxu0
      %v1122 = vadd.f32 0.0, %v1121
      %v1123 = vpop.f32.mrb[0].mxu0
      %1124 = vmatprep.mubr.f32.mxu0 0.0
      %1125 = vmatmul.mubr.f32.gmra.mrb[0].mxu0 %v1003
      %v1126 = vpop.f32.mrb[0].mxu0
      %v1127 = vadd.f32 0.0, %v1126
      %v1128 = vpop.f32.mrb[0].mxu0
      %1129 = vmatprep.mubr.f32.mxu0 0.0
      %1130 = vmatmul.mubr.f32.gmra.mrb[0].mxu0 %v1006
      %v1131 = vpop.f32.mrb[0].mxu0
      %v1132 = vadd.f32 0.0, %v1131
      %v1133 = vpop.f32.mrb[0].mxu0
      %1134 = vmatprep.mubr.f32.mxu0 0.0
      %1135 = vmatmul.mubr.f32.gmra.mrb[0].mxu0 %v1009
      %v1136 = vpop.f32.mrb[0].mxu0
      %v1137 = vadd.f32 0.0, %v1136
      %v1138 = vpop.f32.mrb[0].mxu0
      %1139 = vmatprep.mubr.f32.mxu0 0.0
      %1140 = vmatmul.mubr.f32.gmra.mrb[0].mxu0 %v1012
      %v1141 = vpop.f32.mrb[0].mxu0
      %v1142 = vadd.f32 0.0, %v1141
      %v1143 = vpop.f32.mrb[0].mxu0
      %1144 = vmatprep.mubr.f32.mxu0 0.0
      %1145 = vmatmul.mubr.f32.gmra.mrb[0].mxu0 %v1015
      %v1146 = vpop.f32.mrb[0].mxu0
      %v1147 = vadd.f32 0.0, %v1146
      %v1148 = vpop.f32.mrb[0].mxu0
      %1149 = vmatprep.mubr.f32.mxu0 0.0
      %1150 = vmatmul.mubr.f32.gmra.mrb[0].mxu0 %v1018
      %v1151 = vpop.f32.mrb[0].mxu0
      %v1152 = vadd.f32 0.0, %v1151
      %v1153 = vpop.f32.mrb[0].mxu0
      %1154 = vmatprep.mubr.f32.mxu0 0.0
      %1155 = vmatmul.mubr.f32.gmra.mrb[0].mxu0 %v1021
      %v1156 = vpop.f32.mrb[0].mxu0
      %v1157 = vadd.f32 0.0, %v1156
      %v1158 = vpop.f32.mrb[0].mxu0
      %1159 = vmatprep.mubr.f32.mxu0 0.0
      %1160 = vmatmul.mubr.f32.gmra.mrb[0].mxu0 %v1024
      %v1161 = vpop.f32.mrb[0].mxu0
      %v1162 = vadd.f32 0.0, %v1161
      %v1163 = vpop.f32.mrb[0].mxu0
      %1164 = vmatprep.mubr.f32.mxu0 0.0
      %1165 = vmatmul.mubr.f32.gmra.mrb[0].mxu0 %v1027
      %v1166 = vpop.f32.mrb[0].mxu0
      %v1167 = vadd.f32 0.0, %v1166
      %v1168 = vpop.f32.mrb[0].mxu0
      %1169 = vmatprep.mubr.f32.mxu0 0.0
      %1170 = vmatmul.mubr.f32.gmra.mrb[0].mxu0 %v1030
      %v1171 = vpop.f32.mrb[0].mxu0
      %v1172 = vadd.f32 0.0, %v1171
      %v1173 = vpop.f32.mrb[0].mxu0
      %1174 = vmatprep.mubr.f32.mxu0 0.0
      %1175 = vmatmul.mubr.f32.gmra.mrb[0].mxu0 %v1033
      %v1176 = vpop.f32.mrb[0].mxu0
      %v1177 = vadd.f32 0.0, %v1176
      %v1178 = vpop.f32.mrb[0].mxu0
      %1179 = vmatprep.mubr.f32.mxu0 0.0
      %1180 = vmatmul.mubr.f32.gmra.mrb[0].mxu0 %v1036
      %v1181 = vpop.f32.mrb[0].mxu0
      %v1182 = vadd.f32 0.0, %v1181
      %v1183 = vpop.f32.mrb[0].mxu0
      %1184 = vmatprep.mubr.f32.mxu0 0.0
      %1185 = vmatmul.mubr.f32.gmra.mrb[0].mxu0 %v1039
      %v1186 = vpop.f32.mrb[0].mxu0
      %v1187 = vadd.f32 0.0, %v1186
      %v1188 = vpop.f32.mrb[0].mxu0
      %1189 = vdwg.mxu0
      %v1191 = vsel %vm992, %v967, 0
      %v1194 = vsel %vm992, %v968, 0
      %v1197 = vsel %vm1041, %v988, 0
      %1199 = vmatprep.subr.mxu0 0.0
      %1200 = vmatpush1.msra.mxu0 %v987
      %1201 = vmatprep.subr.mxu0 0.0
      %1202 = vmatpush1.msra.mxu0 %v1197
      %1203 = vmatprep.subr.mxu0 0.0
      %1204 = vmatpush1.msra.mxu0 0.0
      %1205 = vmatprep.subr.mxu0 0.0
      %1206 = vmatpush1.msra.mxu0 0.0
      %1207 = vmatprep.subr.mxu0 0.0
      %1208 = vmatpush1.msra.mxu0 0.0
      %1209 = vmatprep.subr.mxu0 0.0
      %1210 = vmatpush1.msra.mxu0 0.0
      %1211 = vmatprep.subr.mxu0 0.0
      %1212 = vmatpush1.msra.mxu0 0.0
      %1213 = vmatprep.subr.mxu0 0.0
      %1214 = vmatpush1.msra.mxu0 0.0
      %1215 = vmatprep.subr.mxu0 0.0
      %1216 = vmatpush1.msra.mxu0 0.0
      %1217 = vmatprep.subr.mxu0 0.0
      %1218 = vmatpush1.msra.mxu0 0.0
      %1219 = vmatprep.subr.mxu0 0.0
      %1220 = vmatpush1.msra.mxu0 0.0
      %1221 = vmatprep.subr.mxu0 0.0
      %1222 = vmatpush1.msra.mxu0 0.0
      %1223 = vmatprep.subr.mxu0 0.0
      %1224 = vmatpush1.msra.mxu0 0.0
      %1225 = vmatprep.subr.mxu0 0.0
      %1226 = vmatpush1.msra.mxu0 0.0
      %1227 = vmatprep.subr.mxu0 0.0
      %1228 = vmatpush1.msra.mxu0 0.0
      %1229 = vmatprep.subr.mxu0 0.0
      %1230 = vmatpush1.msra.mxu0 0.0
      %1231 = vmatprep.subr.mxu0 0.0
      %1232 = vmatpush1.msra.mxu0 0.0
      %1233 = vmatprep.subr.mxu0 0.0
      %1234 = vmatpush1.msra.mxu0 0.0
      %1235 = vmatprep.subr.mxu0 0.0
      %1236 = vmatpush1.msra.mxu0 0.0
      %1237 = vmatprep.subr.mxu0 0.0
      %1238 = vmatpush1.msra.mxu0 0.0
      %1239 = vmatprep.subr.mxu0 0.0
      %1240 = vmatpush1.msra.mxu0 0.0
      %1241 = vmatprep.subr.mxu0 0.0
      %1242 = vmatpush1.msra.mxu0 0.0
      %1243 = vmatprep.subr.mxu0 0.0
      %1244 = vmatpush1.msra.mxu0 0.0
      %1245 = vmatprep.subr.mxu0 0.0
      %1246 = vmatpush1.msra.mxu0 0.0
      %1247 = vmatprep.subr.mxu0 0.0
      %1248 = vmatpush1.msra.mxu0 0.0
      %1249 = vmatprep.subr.mxu0 0.0
      %1250 = vmatpush1.msra.mxu0 0.0
      %1251 = vmatprep.subr.mxu0 0.0
      %1252 = vmatpush1.msra.mxu0 0.0
      %1253 = vmatprep.subr.mxu0 0.0
      %1254 = vmatpush1.msra.mxu0 0.0
      %1255 = vmatprep.subr.mxu0 0.0
      %1256 = vmatpush1.msra.mxu0 0.0
      %1257 = vmatprep.subr.mxu0 0.0
      %1258 = vmatpush1.msra.mxu0 0.0
      %1259 = vmatprep.subr.mxu0 0.0
      %1260 = vmatpush1.msra.mxu0 0.0
      %1261 = vmatprep.subr.mxu0 0.0
      %1262 = vmatpush1.msra.mxu0 0.0
      %1263 = vmatprep.mubr.f32.mxu0 0.0
      %1264 = vmatmul.mubr.f32.gmra.mrb[0].mxu0 %v1191
      %v1265 = vpop.f32.mrb[0].mxu0
      %v1266 = vadd.f32 %v1112, %v1265
      %v1267 = vpop.f32.mrb[0].mxu0
      %1268 = vmatprep.mubr.f32.mxu0 0.0
      %1269 = vmatmul.mubr.f32.gmra.mrb[0].mxu0 %v1194
      %v1270 = vpop.f32.mrb[0].mxu0
      %v1271 = vadd.f32 %v1117, %v1270
      %v1272 = vpop.f32.mrb[0].mxu0
      %1273 = vmatprep.mubr.f32.mxu0 0.0
      %1274 = vmatmul.mubr.f32.gmra.mrb[0].mxu0 %v994
      %v1275 = vpop.f32.mrb[0].mxu0
      %v1276 = vadd.f32 %v1122, %v1275
      %v1277 = vpop.f32.mrb[0].mxu0
      %1278 = vmatprep.mubr.f32.mxu0 0.0
      %1279 = vmatmul.mubr.f32.gmra.mrb[0].mxu0 %v997
      %v1280 = vpop.f32.mrb[0].mxu0
      %v1281 = vadd.f32 %v1127, %v1280
      %v1282 = vpop.f32.mrb[0].mxu0
      %1283 = vmatprep.mubr.f32.mxu0 0.0
      %1284 = vmatmul.mubr.f32.gmra.mrb[0].mxu0 %v1000
      %v1285 = vpop.f32.mrb[0].mxu0
      %v1286 = vadd.f32 %v1132, %v1285
      %v1287 = vpop.f32.mrb[0].mxu0
      %1288 = vmatprep.mubr.f32.mxu0 0.0
      %1289 = vmatmul.mubr.f32.gmra.mrb[0].mxu0 %v1003
      %v1290 = vpop.f32.mrb[0].mxu0
      %v1291 = vadd.f32 %v1137, %v1290
      %v1292 = vpop.f32.mrb[0].mxu0
      %1293 = vmatprep.mubr.f32.mxu0 0.0
      %1294 = vmatmul.mubr.f32.gmra.mrb[0].mxu0 %v1006
      %v1295 = vpop.f32.mrb[0].mxu0
      %v1296 = vadd.f32 %v1142, %v1295
      %v1297 = vpop.f32.mrb[0].mxu0
      %1298 = vmatprep.mubr.f32.mxu0 0.0
      %1299 = vmatmul.mubr.f32.gmra.mrb[0].mxu0 %v1009
      %v1300 = vpop.f32.mrb[0].mxu0
      %v1301 = vadd.f32 %v1147, %v1300
      %v1302 = vpop.f32.mrb[0].mxu0
      %1303 = vmatprep.mubr.f32.mxu0 0.0
      %1304 = vmatmul.mubr.f32.gmra.mrb[0].mxu0 %v1012
      %v1305 = vpop.f32.mrb[0].mxu0
      %v1306 = vadd.f32 %v1152, %v1305
      %v1307 = vpop.f32.mrb[0].mxu0
      %1308 = vmatprep.mubr.f32.mxu0 0.0
      %1309 = vmatmul.mubr.f32.gmra.mrb[0].mxu0 %v1015
      %v1310 = vpop.f32.mrb[0].mxu0
      %v1311 = vadd.f32 %v1157, %v1310
      %v1312 = vpop.f32.mrb[0].mxu0
      %1313 = vmatprep.mubr.f32.mxu0 0.0
      %1314 = vmatmul.mubr.f32.gmra.mrb[0].mxu0 %v1018
      %v1315 = vpop.f32.mrb[0].mxu0
      %v1316 = vadd.f32 %v1162, %v1315
      %v1317 = vpop.f32.mrb[0].mxu0
      %1318 = vmatprep.mubr.f32.mxu0 0.0
      %1319 = vmatmul.mubr.f32.gmra.mrb[0].mxu0 %v1021
      %v1320 = vpop.f32.mrb[0].mxu0
      %v1321 = vadd.f32 %v1167, %v1320
      %v1322 = vpop.f32.mrb[0].mxu0
      %1323 = vmatprep.mubr.f32.mxu0 0.0
      %1324 = vmatmul.mubr.f32.gmra.mrb[0].mxu0 %v1024
      %v1325 = vpop.f32.mrb[0].mxu0
      %v1326 = vadd.f32 %v1172, %v1325
      %v1327 = vpop.f32.mrb[0].mxu0
      %1328 = vmatprep.mubr.f32.mxu0 0.0
      %1329 = vmatmul.mubr.f32.gmra.mrb[0].mxu0 %v1027
      %v1330 = vpop.f32.mrb[0].mxu0
      %v1331 = vadd.f32 %v1177, %v1330
      %v1332 = vpop.f32.mrb[0].mxu0
      %1333 = vmatprep.mubr.f32.mxu0 0.0
      %1334 = vmatmul.mubr.f32.gmra.mrb[0].mxu0 %v1030
      %v1335 = vpop.f32.mrb[0].mxu0
      %v1336 = vadd.f32 %v1182, %v1335
      %v1337 = vpop.f32.mrb[0].mxu0
      %1338 = vmatprep.mubr.f32.mxu0 0.0
      %1339 = vmatmul.mubr.f32.gmra.mrb[0].mxu0 %v1033
      %v1340 = vpop.f32.mrb[0].mxu0
      %v1341 = vadd.f32 %v1187, %v1340
      %v1342 = vpop.f32.mrb[0].mxu0
      %1343 = vdwg.mxu0
      %s1344 = scalar_lea.vmem %s3, 32
      %v1345 = vld [vmem:[%s1344] sm:$0xff]
      %v1346 = vld [vmem:[%s1344 + $0x8] sm:$0xf]
      %v1348 = vsel %vm992, %v985, 0
      %v1351 = vsel %vm992, %v986, 0
      %v1354 = vsel %vm1041, %v1346, 0
      %1356 = vmatprep.subr.mxu0 0.0
      %1357 = vmatpush1.msra.mxu0 %v1345
      %1358 = vmatprep.subr.mxu0 0.0
      %1359 = vmatpush1.msra.mxu0 %v1354
      %1360 = vmatprep.subr.mxu0 0.0
      %1361 = vmatpush1.msra.mxu0 0.0
      %1362 = vmatprep.subr.mxu0 0.0
      %1363 = vmatpush1.msra.mxu0 0.0
      %1364 = vmatprep.subr.mxu0 0.0
      %1365 = vmatpush1.msra.mxu0 0.0
      %1366 = vmatprep.subr.mxu0 0.0
      %1367 = vmatpush1.msra.mxu0 0.0
      %1368 = vmatprep.subr.mxu0 0.0
      %1369 = vmatpush1.msra.mxu0 0.0
      %1370 = vmatprep.subr.mxu0 0.0
      %1371 = vmatpush1.msra.mxu0 0.0
      %1372 = vmatprep.subr.mxu0 0.0
      %1373 = vmatpush1.msra.mxu0 0.0
      %1374 = vmatprep.subr.mxu0 0.0
      %1375 = vmatpush1.msra.mxu0 0.0
      %1376 = vmatprep.subr.mxu0 0.0
      %1377 = vmatpush1.msra.mxu0 0.0
      %1378 = vmatprep.subr.mxu0 0.0
      %1379 = vmatpush1.msra.mxu0 0.0
      %1380 = vmatprep.subr.mxu0 0.0
      %1381 = vmatpush1.msra.mxu0 0.0
      %1382 = vmatprep.subr.mxu0 0.0
      %1383 = vmatpush1.msra.mxu0 0.0
      %1384 = vmatprep.subr.mxu0 0.0
      %1385 = vmatpush1.msra.mxu0 0.0
      %1386 = vmatprep.subr.mxu0 0.0
      %1387 = vmatpush1.msra.mxu0 0.0
      %1388 = vmatprep.subr.mxu0 0.0
      %1389 = vmatpush1.msra.mxu0 0.0
      %1390 = vmatprep.subr.mxu0 0.0
      %1391 = vmatpush1.msra.mxu0 0.0
      %1392 = vmatprep.subr.mxu0 0.0
      %1393 = vmatpush1.msra.mxu0 0.0
      %1394 = vmatprep.subr.mxu0 0.0
      %1395 = vmatpush1.msra.mxu0 0.0
      %1396 = vmatprep.subr.mxu0 0.0
      %1397 = vmatpush1.msra.mxu0 0.0
      %1398 = vmatprep.subr.mxu0 0.0
      %1399 = vmatpush1.msra.mxu0 0.0
      %1400 = vmatprep.subr.mxu0 0.0
      %1401 = vmatpush1.msra.mxu0 0.0
      %1402 = vmatprep.subr.mxu0 0.0
      %1403 = vmatpush1.msra.mxu0 0.0
      %1404 = vmatprep.subr.mxu0 0.0
      %1405 = vmatpush1.msra.mxu0 0.0
      %1406 = vmatprep.subr.mxu0 0.0
      %1407 = vmatpush1.msra.mxu0 0.0
      %1408 = vmatprep.subr.mxu0 0.0
      %1409 = vmatpush1.msra.mxu0 0.0
      %1410 = vmatprep.subr.mxu0 0.0
      %1411 = vmatpush1.msra.mxu0 0.0
      %1412 = vmatprep.subr.mxu0 0.0
      %1413 = vmatpush1.msra.mxu0 0.0
      %1414 = vmatprep.subr.mxu0 0.0
      %1415 = vmatpush1.msra.mxu0 0.0
      %1416 = vmatprep.subr.mxu0 0.0
      %1417 = vmatpush1.msra.mxu0 0.0
      %1418 = vmatprep.subr.mxu0 0.0
      %1419 = vmatpush1.msra.mxu0 0.0
      %1420 = vmatprep.mubr.f32.mxu0 0.0
      %1421 = vmatmul.mubr.f32.gmra.mrb[0].mxu0 %v1000
      %v1422 = vpop.f32.mrb[0].mxu0
      %v1423 = vadd.f32 0.0, %v1422
      %v1424 = vpop.f32.mrb[0].mxu0
      %1425 = vmatprep.mubr.f32.mxu0 0.0
      %1426 = vmatmul.mubr.f32.gmra.mrb[0].mxu0 %v1003
      %v1427 = vpop.f32.mrb[0].mxu0
      %v1428 = vadd.f32 0.0, %v1427
      %v1429 = vpop.f32.mrb[0].mxu0
      %1430 = vmatprep.mubr.f32.mxu0 0.0
      %1431 = vmatmul.mubr.f32.gmra.mrb[0].mxu0 %v1006
      %v1432 = vpop.f32.mrb[0].mxu0
      %v1433 = vadd.f32 0.0, %v1432
      %v1434 = vpop.f32.mrb[0].mxu0
      %1435 = vmatprep.mubr.f32.mxu0 0.0
      %1436 = vmatmul.mubr.f32.gmra.mrb[0].mxu0 %v1009
      %v1437 = vpop.f32.mrb[0].mxu0
      %v1438 = vadd.f32 0.0, %v1437
      %v1439 = vpop.f32.mrb[0].mxu0
      %1440 = vmatprep.mubr.f32.mxu0 0.0
      %1441 = vmatmul.mubr.f32.gmra.mrb[0].mxu0 %v1012
      %v1442 = vpop.f32.mrb[0].mxu0
      %v1443 = vadd.f32 0.0, %v1442
      %v1444 = vpop.f32.mrb[0].mxu0
      %1445 = vmatprep.mubr.f32.mxu0 0.0
      %1446 = vmatmul.mubr.f32.gmra.mrb[0].mxu0 %v1015
      %v1447 = vpop.f32.mrb[0].mxu0
      %v1448 = vadd.f32 0.0, %v1447
      %v1449 = vpop.f32.mrb[0].mxu0
      %1450 = vmatprep.mubr.f32.mxu0 0.0
      %1451 = vmatmul.mubr.f32.gmra.mrb[0].mxu0 %v1018
      %v1452 = vpop.f32.mrb[0].mxu0
      %v1453 = vadd.f32 0.0, %v1452
      %v1454 = vpop.f32.mrb[0].mxu0
      %1455 = vmatprep.mubr.f32.mxu0 0.0
      %1456 = vmatmul.mubr.f32.gmra.mrb[0].mxu0 %v1021
      %v1457 = vpop.f32.mrb[0].mxu0
      %v1458 = vadd.f32 0.0, %v1457
      %v1459 = vpop.f32.mrb[0].mxu0
      %1460 = vmatprep.mubr.f32.mxu0 0.0
      %1461 = vmatmul.mubr.f32.gmra.mrb[0].mxu0 %v1024
      %v1462 = vpop.f32.mrb[0].mxu0
      %v1463 = vadd.f32 0.0, %v1462
      %v1464 = vpop.f32.mrb[0].mxu0
      %1465 = vmatprep.mubr.f32.mxu0 0.0
      %1466 = vmatmul.mubr.f32.gmra.mrb[0].mxu0 %v1027
      %v1467 = vpop.f32.mrb[0].mxu0
      %v1468 = vadd.f32 0.0, %v1467
      %v1469 = vpop.f32.mrb[0].mxu0
      %1470 = vmatprep.mubr.f32.mxu0 0.0
      %1471 = vmatmul.mubr.f32.gmra.mrb[0].mxu0 %v1030
      %v1472 = vpop.f32.mrb[0].mxu0
      %v1473 = vadd.f32 0.0, %v1472
      %v1474 = vpop.f32.mrb[0].mxu0
      %1475 = vmatprep.mubr.f32.mxu0 0.0
      %1476 = vmatmul.mubr.f32.gmra.mrb[0].mxu0 %v1033
      %v1477 = vpop.f32.mrb[0].mxu0
      %v1478 = vadd.f32 0.0, %v1477
      %v1479 = vpop.f32.mrb[0].mxu0
      %1480 = vmatprep.mubr.f32.mxu0 0.0
      %1481 = vmatmul.mubr.f32.gmra.mrb[0].mxu0 %v1036
      %v1482 = vpop.f32.mrb[0].mxu0
      %v1483 = vadd.f32 0.0, %v1482
      %v1484 = vpop.f32.mrb[0].mxu0
      %1485 = vmatprep.mubr.f32.mxu0 0.0
      %1486 = vmatmul.mubr.f32.gmra.mrb[0].mxu0 %v1039
      %v1487 = vpop.f32.mrb[0].mxu0
      %v1488 = vadd.f32 0.0, %v1487
      %v1489 = vpop.f32.mrb[0].mxu0
      %1490 = vmatprep.mubr.f32.mxu0 0.0
      %1491 = vmatmul.mubr.f32.gmra.mrb[0].mxu0 %v1348
      %v1492 = vpop.f32.mrb[0].mxu0
      %v1493 = vadd.f32 0.0, %v1492
      %v1494 = vpop.f32.mrb[0].mxu0
      %1495 = vmatprep.mubr.f32.mxu0 0.0
      %1496 = vmatmul.mubr.f32.gmra.mrb[0].mxu0 %v1351
      %v1497 = vpop.f32.mrb[0].mxu0
      %v1498 = vadd.f32 0.0, %v1497
      %v1499 = vpop.f32.mrb[0].mxu0
      %1500 = vdwg.mxu0
      %v1501 = vadd.f32 %v1266, %v1423
      %v1502 = vadd.f32 %v1271, %v1428
      %v1503 = vadd.f32 %v1276, %v1433
      %v1504 = vadd.f32 %v1281, %v1438
      %v1505 = vadd.f32 %v1286, %v1443
      %v1506 = vadd.f32 %v1291, %v1448
      %v1507 = vadd.f32 %v1296, %v1453
      %v1508 = vadd.f32 %v1301, %v1458
      %v1509 = vadd.f32 %v1306, %v1463
      %v1510 = vadd.f32 %v1311, %v1468
      %v1511 = vadd.f32 %v1316, %v1473
      %v1512 = vadd.f32 %v1321, %v1478
      %v1513 = vadd.f32 %v1326, %v1483
      %v1514 = vadd.f32 %v1331, %v1488
      %v1515 = vadd.f32 %v1336, %v1493
      %v1516 = vadd.f32 %v1341, %v1498
      %vm1517 = vcmask 31744
      %1518 = vst.msk [vmem:[%s286] sm:$0xff] %vm1517, %v1501
      %1519 = vst.msk [vmem:[%s286 + $0x8] sm:$0xff] %vm1517, %v1502
      %1520 = vst.msk [vmem:[%s286 + $0x10] sm:$0xff] %vm1517, %v1503
      %1521 = vst.msk [vmem:[%s286 + $0x18] sm:$0xff] %vm1517, %v1504
      %1522 = vst.msk [vmem:[%s286 + $0x20] sm:$0xff] %vm1517, %v1505
      %1523 = vst.msk [vmem:[%s286 + $0x28] sm:$0xff] %vm1517, %v1506
      %1524 = vst.msk [vmem:[%s286 + $0x30] sm:$0xff] %vm1517, %v1507
      %1525 = vst.msk [vmem:[%s286 + $0x38] sm:$0xff] %vm1517, %v1508
      %1526 = vst.msk [vmem:[%s286 + $0x40] sm:$0xff] %vm1517, %v1509
      %1527 = vst.msk [vmem:[%s286 + $0x48] sm:$0xff] %vm1517, %v1510
      %1528 = vst.msk [vmem:[%s286 + $0x50] sm:$0xff] %vm1517, %v1511
      %1529 = vst.msk [vmem:[%s286 + $0x58] sm:$0xff] %vm1517, %v1512
      %1530 = vst.msk [vmem:[%s286 + $0x60] sm:$0xff] %vm1517, %v1513
      %1531 = vst.msk [vmem:[%s286 + $0x68] sm:$0xff] %vm1517, %v1514
      %1532 = vst.msk [vmem:[%s286 + $0x70] sm:$0xff] %vm1517, %v1515
      %1533 = vst.msk [vmem:[%s286 + $0x78] sm:$0xff] %vm1517, %v1516
      %v1534 = vld [vmem:[%s290] sm:$0x1]
      %v1535 = vsel %vm1517, %v1501, 0.0
      %v1536 = vsel %vm1517, %v1502, 0.0
      %v1537 = vadd.f32 %v1535, %v1536
      %v1538 = vsel %vm1517, %v1503, 0.0
      %v1539 = vadd.f32 %v1537, %v1538
      %v1540 = vsel %vm1517, %v1504, 0.0
      %v1541 = vadd.f32 %v1539, %v1540
      %v1542 = vsel %vm1517, %v1505, 0.0
      %v1543 = vadd.f32 %v1541, %v1542
      %v1544 = vsel %vm1517, %v1506, 0.0
      %v1545 = vadd.f32 %v1543, %v1544
      %v1546 = vsel %vm1517, %v1507, 0.0
      %v1547 = vadd.f32 %v1545, %v1546
      %v1548 = vsel %vm1517, %v1508, 0.0
      %v1549 = vadd.f32 %v1547, %v1548
      %v1550 = vsel %vm1517, %v1509, 0.0
      %v1551 = vadd.f32 %v1549, %v1550
      %v1552 = vsel %vm1517, %v1510, 0.0
      %v1553 = vadd.f32 %v1551, %v1552
      %v1554 = vsel %vm1517, %v1511, 0.0
      %v1555 = vadd.f32 %v1553, %v1554
      %v1556 = vsel %vm1517, %v1512, 0.0
      %v1557 = vadd.f32 %v1555, %v1556
      %v1558 = vsel %vm1517, %v1513, 0.0
      %v1559 = vadd.f32 %v1557, %v1558
      %v1560 = vsel %vm1517, %v1514, 0.0
      %v1561 = vadd.f32 %v1559, %v1560
      %v1562 = vsel %vm1517, %v1515, 0.0
      %v1563 = vadd.f32 %v1561, %v1562
      %v1564 = vsel %vm1517, %v1516, 0.0
      %v1565 = vadd.f32 %v1563, %v1564
      %v1566 = vrot.slane %v1565, 4
      %v1567 = vadd.f32 %v1565, %v1566
      %v1568 = vrot.slane %v1567, 2
      %v1569 = vadd.f32 %v1567, %v1568
      %v1570 = vrot.slane %v1569, 1
      %v1571 = vadd.f32 %v1569, %v1570
      %v1572 = vadd.f32 %v1534, %v1571
      %vm1573 = vcmask 24576
      %1574 = vst.msk [vmem:[%s290] sm:$0x1] %vm1573, %v1572
      %v1575 = vld [vmem:[%s293] sm:$0x1]
      %v1576 = vmul.f32 %v1501, %v1501
      %v1577 = vmul.f32 %v1502, %v1502
      %v1578 = vmul.f32 %v1503, %v1503
      %v1579 = vmul.f32 %v1504, %v1504
      %v1580 = vmul.f32 %v1505, %v1505
      %v1581 = vmul.f32 %v1506, %v1506
      %v1582 = vmul.f32 %v1507, %v1507
      %v1583 = vmul.f32 %v1508, %v1508
      %v1584 = vmul.f32 %v1509, %v1509
      %v1585 = vmul.f32 %v1510, %v1510
      %v1586 = vmul.f32 %v1511, %v1511
      %v1587 = vmul.f32 %v1512, %v1512
      %v1588 = vmul.f32 %v1513, %v1513
      %v1589 = vmul.f32 %v1514, %v1514
      %v1590 = vmul.f32 %v1515, %v1515
      %v1591 = vmul.f32 %v1516, %v1516
      %v1592 = vsel %vm1517, %v1576, 0.0
      %v1593 = vsel %vm1517, %v1577, 0.0
      %v1594 = vadd.f32 %v1592, %v1593
      %v1595 = vsel %vm1517, %v1578, 0.0
      %v1596 = vadd.f32 %v1594, %v1595
      %v1597 = vsel %vm1517, %v1579, 0.0
      %v1598 = vadd.f32 %v1596, %v1597
      %v1599 = vsel %vm1517, %v1580, 0.0
      %v1600 = vadd.f32 %v1598, %v1599
      %v1601 = vsel %vm1517, %v1581, 0.0
      %v1602 = vadd.f32 %v1600, %v1601
      %v1603 = vsel %vm1517, %v1582, 0.0
      %v1604 = vadd.f32 %v1602, %v1603
      %v1605 = vsel %vm1517, %v1583, 0.0
      %v1606 = vadd.f32 %v1604, %v1605
      %v1607 = vsel %vm1517, %v1584, 0.0
      %v1608 = vadd.f32 %v1606, %v1607
      %v1609 = vsel %vm1517, %v1585, 0.0
      %v1610 = vadd.f32 %v1608, %v1609
      %v1611 = vsel %vm1517, %v1586, 0.0
      %v1612 = vadd.f32 %v1610, %v1611
      %v1613 = vsel %vm1517, %v1587, 0.0
      %v1614 = vadd.f32 %v1612, %v1613
      %v1615 = vsel %vm1517, %v1588, 0.0
      %v1616 = vadd.f32 %v1614, %v1615
      %v1617 = vsel %vm1517, %v1589, 0.0
      %v1618 = vadd.f32 %v1616, %v1617
      %v1619 = vsel %vm1517, %v1590, 0.0
      %v1620 = vadd.f32 %v1618, %v1619
      %v1621 = vsel %vm1517, %v1591, 0.0
      %v1622 = vadd.f32 %v1620, %v1621
      %v1623 = vrot.slane %v1622, 4
      %v1624 = vadd.f32 %v1622, %v1623
      %v1625 = vrot.slane %v1624, 2
      %v1626 = vadd.f32 %v1624, %v1625
      %v1627 = vrot.slane %v1626, 1
      %v1628 = vadd.f32 %v1626, %v1627
      %v1629 = vadd.f32 %v1575, %v1628
      %1630 = vst.msk [vmem:[%s293] sm:$0x1] %vm1573, %v1629
      %s1631 = smul.u32 8, %s23
      %p1632 = scmp.lt.s32.totalorder %s22, 1
      %s1633 = scalar_select %p1632, %s22, 1
      %p1634 = scmp.lt.s32.totalorder %s1631, 15
      %s1635 = scalar_select %p1634, %s1631, 15
      %s1636 = smul.addr %s1635, 2
      %s1637 = smul.addr %s1633, 32
      %s1638 = sadd.s32 %s1636, %s1637
      %s1639 = smul.addr %s1638, 8
      %s1640 = scalar_lea.vmem %s4, %s1639
      %p1641 = scmp.lt.s32.totalorder %s22, 1
      %s1642 = scalar_select %p1641, %s22, 1
      %s1643 = scalar_lea.vmem %s5, %s1642
      %p1644 = scmp.lt.s32.totalorder %s22, 1
      %s1645 = scalar_select %p1644, %s22, 1
      %s1646 = scalar_lea.vmem %s6, %s1645
      // Predicated region
      $region41: #{_lambda_.4} parent=35 // pred_check
        %p1647 = pneg %p139
      $region42: #{_lambda_.4} parent=35 // pred_check_branch
        %1649 = sbr.rel (%p1647) target = $region44
      $region43: #{_lambda_.4} parent=35 // pred_region
        %s1650 = smul.u32 8, %s23
      $region44: #{_lambda_.4} parent=35 // pred_fallthru
        _
      // Predicated region
      $region45: #{_lambda_.4} parent=35 // pred_check
        %p1651 = pneg %p165
      $region46: #{_lambda_.4} parent=35 // pred_check_branch
        %1653 = sbr.rel (%p1651) target = $region48
      $region47: #{_lambda_.4} parent=35 // pred_region
        _
      $region48: #{_lambda_.4} parent=35 // pred_fallthru
        _
      // Predicated region
      $region49: #{_lambda_.4} parent=35 // pred_check
        %p1654 = pneg %p191
      $region50: #{_lambda_.4} parent=35 // pred_check_branch
        %1656 = sbr.rel (%p1654) target = $region52
      $region51: #{_lambda_.4} parent=35 // pred_region
        _
      $region52: #{_lambda_.4} parent=35 // pred_fallthru
        _
    $region36: #{_lambda_.4} parent=5 // pred_fallthru
      _
    %p1657 = scmp.le.s32.totalorder 2, %s13
    // Predicated region
    $region53: #{_lambda_.4} parent=5 // pred_check
      %p1658 = pneg %p1657
    $region54: #{_lambda_.4} parent=5 // pred_check_branch
      %1660 = sbr.rel (%p1658) target = $region56
    $region55: #{_lambda_.4} parent=5 // pred_region
      %s1661 = ssub.s32 %s13, 2
      // Predicated region
      $region57: #{_lambda_.4} parent=55 // pred_check
        %p1662 = pneg %p145
      $region58: #{_lambda_.4} parent=55 // pred_check_branch
        %1664 = sbr.rel (%p1662) target = $region60
      $region59: #{_lambda_.4} parent=55 // pred_region
        %s1665 = smul.u32 8, %s25
        %p1666 = scmp.lt.s32.totalorder %s24, 1
        %s1667 = scalar_select %p1666, %s24, 1
        %p1668 = scmp.lt.s32.totalorder %s1665, 15
        %s1669 = scalar_select %p1668, %s1665, 15
        %s1670 = smul.addr %s1669, 2
        %s1671 = smul.addr %s1667, 32
        %s1672 = sadd.s32 %s1670, %s1671
        %s1673 = smul.addr %s1672, 8
        %s1674 = scalar_lea.vmem %s4, %s1673
      $region60: #{_lambda_.4} parent=55 // pred_fallthru
        _
      // Predicated region
      $region61: #{_lambda_.4} parent=55 // pred_check
        %p1675 = pneg %p171
      $region62: #{_lambda_.4} parent=55 // pred_check_branch
        %1677 = sbr.rel (%p1675) target = $region64
      $region63: #{_lambda_.4} parent=55 // pred_region
        %p1678 = scmp.lt.s32.totalorder %s24, 1
        %s1679 = scalar_select %p1678, %s24, 1
        %s1680 = scalar_lea.vmem %s5, %s1679
      $region64: #{_lambda_.4} parent=55 // pred_fallthru
        _
      // Predicated region
      $region65: #{_lambda_.4} parent=55 // pred_check
        %p1681 = pneg %p197
      $region66: #{_lambda_.4} parent=55 // pred_check_branch
        %1683 = sbr.rel (%p1681) target = $region68
      $region67: #{_lambda_.4} parent=55 // pred_region
        %p1684 = scmp.lt.s32.totalorder %s24, 1
        %s1685 = scalar_select %p1684, %s24, 1
        %s1686 = scalar_lea.vmem %s6, %s1685
      $region68: #{_lambda_.4} parent=55 // pred_fallthru
        _
    $region56: #{_lambda_.4} parent=5 // pred_fallthru
      _
  $region6: #{_lambda_.4} parent=0 // loop_footer
    %s17 = sadd.s32 1, %s13
  $region7: #{_lambda_.4} parent=0 // loop_footer_branch
    %12 = sbr.rel target = $region3
  $region8: #{_lambda_.4} parent=0 // loop_exit
    _

</llo_original>
